<compile_context>
chip_gen: v6e
topology: v6e:2x2x1
jax: 0.10.0
libtpu: 0.0.40
codegen_flags: <defaults>
</compile_context>

<pallas_src>
import jax
import jax.numpy as jnp
from jax.experimental import pallas as pl
from jax.experimental.pallas import tpu as pltpu

SUBLANE_BF16 = 16        # bf16 min tile is (16, 128)


def _round_up(n, m):
    return ((n + m - 1) // m) * m


def _vmem_capacity_bytes():
    """Physical per-core VMEM (generation-aware); conservative fallback."""
    try:
        cap = getattr(pltpu.get_tpu_info(), "vmem_capacity_bytes", None)
        if cap:
            return int(cap)
    except Exception:
        pass
    return 64 << 20      # v7x per-TC size; v5e/v6e actually have 128 MiB


def _silu_f32(x):
    # SiLU(x) = x*sigmoid(x) = 0.5*x*(tanh(x/2)+1): a single (exact) EUP op per
    # element; the extra mul/add ride free in spare VALU slots under the MXU.
    return 0.5 * x * (jnp.tanh(0.5 * x) + 1.0)


def mlp_kernel(x_ref, *rest):
    """Fused 5-layer MLP forward for one batch tile.

    rest = (w1, b1, w2, b2, w3, b3, w4, b4, w5, b5, out).  Weights are bf16
    (in, out), biases f32 (1, out); matmuls accumulate in f32 on the MXU.
    """
    o_ref = rest[-1]
    wb_refs = rest[:-1]
    n_layers = len(wb_refs) // 2

    h = x_ref[...].astype(jnp.bfloat16)              # in-kernel cast (VPU)
    for li in range(n_layers):
        w_ref = wb_refs[2 * li]
        b_ref = wb_refs[2 * li + 1]
        acc = jnp.dot(h, w_ref[...], preferred_element_type=jnp.float32)
        acc = acc + b_ref[...]                       # f32 bias add
        if li < n_layers - 1:
            h = _silu_f32(acc).astype(jnp.bfloat16)  # bf16 into next matmul
        else:
            o_ref[...] = acc.astype(o_ref.dtype)


def prepare_params(params, *, lane_align=None):
    """One-time (model-load) weight prep: transpose-layout (in, out), zero-pad
    feature dims to the lane alignment, cast weights to bf16, biases to f32.

    params: list of (W_t, b) with W_t (in, out), b broadcastable to (1, out),
    matching nn.Linear(in, out).weight.T / .bias.  Returns (layers, nout).
    """
    prepared = []
    din_p = params[0][0].shape[0]          # layer-0 K stays the true nin
    for (w, b) in params:
        din, dout = w.shape
        # 256 alignment fills the 2x256x256 MXUs on v6e/v7x for larger dims;
        # 128 otherwise (and the right choice on v5e's 128-wide MXUs).
        align = lane_align or (256 if dout >= 256 else 128)
        dout_p = _round_up(dout, align)
        # TODO(synk): on v7x, fp8(e4m3) weight storage would halve resident
        # VMEM / DMA bytes; needs accuracy validation, so bf16 is kept here.
        w_p = jnp.zeros((din_p, dout_p), jnp.bfloat16).at[:din, :dout].set(
            w.astype(jnp.bfloat16))
        b_p = jnp.zeros((1, dout_p), jnp.float32).at[:, :dout].set(
            jnp.reshape(b, (1, dout)).astype(jnp.float32))
        prepared.append((w_p, b_p))
        din_p = dout_p
    return prepared, params[-1][0].shape[1]


def mlp_forward(x, prepared_params, *, bm=256):
    """x: (B, nin).  prepared_params: output of prepare_params()."""
    layers, nout = prepared_params
    B, nin = x.shape
    assert layers[0][0].shape[0] == nin, "params were prepared for another nin"
    nout_p = layers[-1][0].shape[1]
    nh_p_max = max(w.shape[1] for (w, _) in layers)

    weight_bytes = sum(w.size * w.dtype.itemsize + b.size * b.dtype.itemsize
                       for (w, b) in layers)

    # ---- batch tile selection ------------------------------------------------
    # bf16 intermediates want >=16 sublanes; bm=256 amortizes the ~0.35us
    # per-grid-step overhead; split small batches so both v7x TCs get work.
    bm = max(SUBLANE_BF16,
             _round_up(min(bm, _round_up(B, SUBLANE_BF16)), SUBLANE_BF16))
    if B > SUBLANE_BF16 and pl.cdiv(B, bm) < 2:
        bm = _round_up(pl.cdiv(B, 2), SUBLANE_BF16)

    # ---- generation-aware VMEM budget ----------------------------------------
    vmem_cap = _vmem_capacity_bytes()

    def vmem_need(bm_, single_buffer):
        w_factor = 1 if single_buffer else 2
        return int(w_factor * weight_bytes                     # resident W/b
                   + 2 * bm_ * nin * x.dtype.itemsize          # 2x x tile
                   + 2 * bm_ * nout_p * 4                      # 2x out tile
                   + 4 * bm_ * nh_p_max * 4)                   # live interm.

    budget = int(vmem_cap * 0.8)
    while vmem_need(bm, True) > budget and bm > SUBLANE_BF16:
        bm = max(SUBLANE_BF16, _round_up(bm // 2, SUBLANE_BF16))
    # TODO(synk): if the resident weights alone exceed the budget (nh ~> 1.7k
    # bf16 on v7x's 64 MiB), add N/K grid axes over the hidden dims with a VMEM
    # f32 accumulator instead of full weight residency.

    grid_steps = pl.cdiv(B, bm)

    # ---- cost estimate --------------------------------------------------------
    flops = sum(2 * B * w.shape[0] * w.shape[1] for (w, _) in layers)
    trans = sum(B * w.shape[1] for (w, _) in layers[:-1])      # 1 tanh / elem
    bytes_accessed = x.size * x.dtype.itemsize + weight_bytes + B * nout_p * 4
    cost = pl.CostEstimate(flops=flops, transcendentals=trans,
                           bytes_accessed=bytes_accessed)

    def build(single_buffer):
        vmem_limit = int(min(max(2 * vmem_need(bm, single_buffer), 16 << 20),
                             int(vmem_cap * 0.85)))
        in_specs = [pl.BlockSpec((bm, nin), lambda i: (i, 0))]
        for (w_p, b_p) in layers:
            if single_buffer:
                # Constant index_map + Buffered(1): fetched once, resident in
                # VMEM with no double-buffer copy.
                in_specs.append(pl.BlockSpec(w_p.shape, lambda i: (0, 0),
                                             pipeline_mode=pl.Buffered(1)))
                in_specs.append(pl.BlockSpec(b_p.shape, lambda i: (0, 0),
                                             pipeline_mode=pl.Buffered(1)))
            else:
                in_specs.append(pl.BlockSpec(w_p.shape, lambda i: (0, 0)))
                in_specs.append(pl.BlockSpec(b_p.shape, lambda i: (0, 0)))
        out_specs = pl.BlockSpec((bm, nout_p), lambda i: (i, 0))
        return pl.pallas_call(
            mlp_kernel,
            out_shape=jax.ShapeDtypeStruct((B, nout_p), jnp.float32),
            grid_spec=pltpu.PrefetchScalarGridSpec(
                num_scalar_prefetch=0,
                grid=(grid_steps,),
                in_specs=in_specs,
                out_specs=out_specs,
            ),
            compiler_params=pltpu.CompilerParams(
                dimension_semantics=("parallel",),
                vmem_limit_bytes=vmem_limit,
            ),
            cost_estimate=cost,
        )

    flat_args = [x] + [t for wb in layers for t in wb]
    try:
        out_p = build(single_buffer=True)(*flat_args)
    except Exception:
        # Fallback if this JAX build rejects pl.Buffered(1): default (double-
        # buffered) resident weights -- still correct, just more VMEM.
        out_p = build(single_buffer=False)(*flat_args)

    return out_p[:, :nout].astype(x.dtype)


def init_params(key, nin, nout, nh):
    """Deterministic init matching the PyTorch module's layer shapes.

    nn.Linear(in, out) has W: (out, in), b: (out,).  We store W transposed to
    (in, out) and b as (1, out); both f32 (the reference precision).
    """
    dims = [(nin, nh), (nh, nh), (nh, nh), (nh, nh), (nh, nout)]
    params = []
    for (din, dout) in dims:
        kw, kb, key = jax.random.split(key, 3)
        bound = 1.0 / jnp.sqrt(din)
        w = jax.random.uniform(kw, (din, dout), jnp.float32, -bound, bound)
        b = jax.random.uniform(kb, (1, dout), jnp.float32, -bound, bound)
        params.append((w, b))
    return params


def mlp_reference(x, params):
    h = x
    for i, (w, b) in enumerate(params):
        h = h @ w + b
        if i < len(params) - 1:
            h = jax.nn.silu(h)
    return h


if __name__ == "__main__":
    key = jax.random.PRNGKey(0)
    kx, kp = jax.random.split(key)

    # Small shapes consistent with the module: B=200 exercises the partial-tail
    # path (2 tiles of 112, the second with 88 valid rows -> both v7x TCs get
    # work); nin=32 exercises the unpadded-K full-dim block; nh=64 / nout=16
    # pad to 128 lanes inside prepare_params.
    B, nin, nh, nout = 200, 32, 64, 16
    x = jax.random.normal(kx, (B, nin), jnp.float32)
    params = init_params(kp, nin, nout, nh)

    prep = prepare_params(params)          # one-time, at model-load time
    out = jax.block_until_ready(mlp_forward(x, prep, bm=256))
    ref = mlp_reference(x, params)

    assert out.shape == (B, nout)
    max_err = float(jnp.max(jnp.abs(out - ref)))
    # bf16 matmul operands (exact tanh-form SiLU, f32 accumulation) vs. the
    # full-f32 reference.
    assert jnp.allclose(out, ref, atol=3e-2, rtol=3e-2), (
        f"mismatch vs reference, max abs err {max_err}")

    print("KERNEL_OK")
</pallas_src>

<mosaic_0001>
module attributes {stable_mosaic.version = 11 : i64} {
  func.func @mlp_kernel(%arg0: i32, %arg1: memref<112x32xf32, #tpu.memory_space<vmem>>, %arg2: memref<32x128xbf16, #tpu.memory_space<vmem>>, %arg3: memref<1x128xf32, #tpu.memory_space<vmem>>, %arg4: memref<128x128xbf16, #tpu.memory_space<vmem>>, %arg5: memref<1x128xf32, #tpu.memory_space<vmem>>, %arg6: memref<128x128xbf16, #tpu.memory_space<vmem>>, %arg7: memref<1x128xf32, #tpu.memory_space<vmem>>, %arg8: memref<128x128xbf16, #tpu.memory_space<vmem>>, %arg9: memref<1x128xf32, #tpu.memory_space<vmem>>, %arg10: memref<128x128xbf16, #tpu.memory_space<vmem>>, %arg11: memref<1x128xf32, #tpu.memory_space<vmem>>, %arg12: memref<112x128xf32, #tpu.memory_space<vmem>>) attributes {dimension_semantics = [#tpu.dimension_semantics<parallel>], iteration_bounds = array<i64: 2>, scalar_prefetch = 0 : i64, scratch_operands = 0 : i64, tpu.core_type = #tpu.core_type<tc>, window_params = [{transform_indices = @transform_0, window_bounds = array<i64: 112, 32>}, {pipeline_mode = #tpu.pipeline_mode<synchronous>, transform_indices = @transform_1, window_bounds = array<i64: 32, 128>}, {pipeline_mode = #tpu.pipeline_mode<synchronous>, transform_indices = @transform_2, window_bounds = array<i64: 1, 128>}, {pipeline_mode = #tpu.pipeline_mode<synchronous>, transform_indices = @transform_3, window_bounds = array<i64: 128, 128>}, {pipeline_mode = #tpu.pipeline_mode<synchronous>, transform_indices = @transform_4, window_bounds = array<i64: 1, 128>}, {pipeline_mode = #tpu.pipeline_mode<synchronous>, transform_indices = @transform_5, window_bounds = array<i64: 128, 128>}, {pipeline_mode = #tpu.pipeline_mode<synchronous>, transform_indices = @transform_6, window_bounds = array<i64: 1, 128>}, {pipeline_mode = #tpu.pipeline_mode<synchronous>, transform_indices = @transform_7, window_bounds = array<i64: 128, 128>}, {pipeline_mode = #tpu.pipeline_mode<synchronous>, transform_indices = @transform_8, window_bounds = array<i64: 1, 128>}, {pipeline_mode = #tpu.pipeline_mode<synchronous>, transform_indices = @transform_9, window_bounds = array<i64: 128, 128>}, {pipeline_mode = #tpu.pipeline_mode<synchronous>, transform_indices = @transform_10, window_bounds = array<i64: 1, 128>}, {transform_indices = @transform_11, window_bounds = array<i64: 112, 128>}]} {
    %c0 = arith.constant 0 : index
    %c0_0 = arith.constant 0 : index
    %0 = vector.load %arg1[%c0, %c0_0] : memref<112x32xf32, #tpu.memory_space<vmem>>, vector<112x32xf32>
    %1 = arith.truncf %0 : vector<112x32xf32> to vector<112x32xbf16>
    %c0_1 = arith.constant 0 : index
    %c0_2 = arith.constant 0 : index
    %2 = vector.load %arg2[%c0_1, %c0_2] : memref<32x128xbf16, #tpu.memory_space<vmem>>, vector<32x128xbf16>
    %cst = arith.constant dense<0.000000e+00> : vector<112x128xf32>
    %3 = tpu.matmul %1, %2, %cst {dimension_numbers = #tpu.dot_dimension_numbers<[1], [0], [0], [1], [0, 0, 1, 1], [], []>} : vector<112x32xbf16>, vector<32x128xbf16>, vector<112x128xf32> -> vector<112x128xf32>
    %c0_3 = arith.constant 0 : index
    %c0_4 = arith.constant 0 : index
    %4 = vector.load %arg3[%c0_3, %c0_4] : memref<1x128xf32, #tpu.memory_space<vmem>>, vector<1x128xf32>
    %5 = vector.broadcast %4 : vector<1x128xf32> to vector<112x128xf32>
    %6 = arith.addf %3, %5 : vector<112x128xf32>
    %cst_5 = arith.constant 5.000000e-01 : f32
    %7 = vector.broadcast %cst_5 : f32 to vector<112x128xf32>
    %8 = arith.mulf %7, %6 : vector<112x128xf32>
    %cst_6 = arith.constant 5.000000e-01 : f32
    %9 = vector.broadcast %cst_6 : f32 to vector<112x128xf32>
    %10 = arith.mulf %9, %6 : vector<112x128xf32>
    %11 = math.tanh %10 : vector<112x128xf32>
    %cst_7 = arith.constant 1.000000e+00 : f32
    %12 = vector.broadcast %cst_7 : f32 to vector<112x128xf32>
    %13 = arith.addf %11, %12 : vector<112x128xf32>
    %14 = arith.mulf %8, %13 : vector<112x128xf32>
    %15 = arith.truncf %14 : vector<112x128xf32> to vector<112x128xbf16>
    %c0_8 = arith.constant 0 : index
    %c0_9 = arith.constant 0 : index
    %16 = vector.load %arg4[%c0_8, %c0_9] : memref<128x128xbf16, #tpu.memory_space<vmem>>, vector<128x128xbf16>
    %cst_10 = arith.constant dense<0.000000e+00> : vector<112x128xf32>
    %17 = tpu.matmul %15, %16, %cst_10 {dimension_numbers = #tpu.dot_dimension_numbers<[1], [0], [0], [1], [0, 0, 1, 1], [], []>} : vector<112x128xbf16>, vector<128x128xbf16>, vector<112x128xf32> -> vector<112x128xf32>
    %c0_11 = arith.constant 0 : index
    %c0_12 = arith.constant 0 : index
    %18 = vector.load %arg5[%c0_11, %c0_12] : memref<1x128xf32, #tpu.memory_space<vmem>>, vector<1x128xf32>
    %19 = vector.broadcast %18 : vector<1x128xf32> to vector<112x128xf32>
    %20 = arith.addf %17, %19 : vector<112x128xf32>
    %cst_13 = arith.constant 5.000000e-01 : f32
    %21 = vector.broadcast %cst_13 : f32 to vector<112x128xf32>
    %22 = arith.mulf %21, %20 : vector<112x128xf32>
    %cst_14 = arith.constant 5.000000e-01 : f32
    %23 = vector.broadcast %cst_14 : f32 to vector<112x128xf32>
    %24 = arith.mulf %23, %20 : vector<112x128xf32>
    %25 = math.tanh %24 : vector<112x128xf32>
    %cst_15 = arith.constant 1.000000e+00 : f32
    %26 = vector.broadcast %cst_15 : f32 to vector<112x128xf32>
    %27 = arith.addf %25, %26 : vector<112x128xf32>
    %28 = arith.mulf %22, %27 : vector<112x128xf32>
    %29 = arith.truncf %28 : vector<112x128xf32> to vector<112x128xbf16>
    %c0_16 = arith.constant 0 : index
    %c0_17 = arith.constant 0 : index
    %30 = vector.load %arg6[%c0_16, %c0_17] : memref<128x128xbf16, #tpu.memory_space<vmem>>, vector<128x128xbf16>
    %cst_18 = arith.constant dense<0.000000e+00> : vector<112x128xf32>
    %31 = tpu.matmul %29, %30, %cst_18 {dimension_numbers = #tpu.dot_dimension_numbers<[1], [0], [0], [1], [0, 0, 1, 1], [], []>} : vector<112x128xbf16>, vector<128x128xbf16>, vector<112x128xf32> -> vector<112x128xf32>
    %c0_19 = arith.constant 0 : index
    %c0_20 = arith.constant 0 : index
    %32 = vector.load %arg7[%c0_19, %c0_20] : memref<1x128xf32, #tpu.memory_space<vmem>>, vector<1x128xf32>
    %33 = vector.broadcast %32 : vector<1x128xf32> to vector<112x128xf32>
    %34 = arith.addf %31, %33 : vector<112x128xf32>
    %cst_21 = arith.constant 5.000000e-01 : f32
    %35 = vector.broadcast %cst_21 : f32 to vector<112x128xf32>
    %36 = arith.mulf %35, %34 : vector<112x128xf32>
    %cst_22 = arith.constant 5.000000e-01 : f32
    %37 = vector.broadcast %cst_22 : f32 to vector<112x128xf32>
    %38 = arith.mulf %37, %34 : vector<112x128xf32>
    %39 = math.tanh %38 : vector<112x128xf32>
    %cst_23 = arith.constant 1.000000e+00 : f32
    %40 = vector.broadcast %cst_23 : f32 to vector<112x128xf32>
    %41 = arith.addf %39, %40 : vector<112x128xf32>
    %42 = arith.mulf %36, %41 : vector<112x128xf32>
    %43 = arith.truncf %42 : vector<112x128xf32> to vector<112x128xbf16>
    %c0_24 = arith.constant 0 : index
    %c0_25 = arith.constant 0 : index
    %44 = vector.load %arg8[%c0_24, %c0_25] : memref<128x128xbf16, #tpu.memory_space<vmem>>, vector<128x128xbf16>
    %cst_26 = arith.constant dense<0.000000e+00> : vector<112x128xf32>
    %45 = tpu.matmul %43, %44, %cst_26 {dimension_numbers = #tpu.dot_dimension_numbers<[1], [0], [0], [1], [0, 0, 1, 1], [], []>} : vector<112x128xbf16>, vector<128x128xbf16>, vector<112x128xf32> -> vector<112x128xf32>
    %c0_27 = arith.constant 0 : index
    %c0_28 = arith.constant 0 : index
    %46 = vector.load %arg9[%c0_27, %c0_28] : memref<1x128xf32, #tpu.memory_space<vmem>>, vector<1x128xf32>
    %47 = vector.broadcast %46 : vector<1x128xf32> to vector<112x128xf32>
    %48 = arith.addf %45, %47 : vector<112x128xf32>
    %cst_29 = arith.constant 5.000000e-01 : f32
    %49 = vector.broadcast %cst_29 : f32 to vector<112x128xf32>
    %50 = arith.mulf %49, %48 : vector<112x128xf32>
    %cst_30 = arith.constant 5.000000e-01 : f32
    %51 = vector.broadcast %cst_30 : f32 to vector<112x128xf32>
    %52 = arith.mulf %51, %48 : vector<112x128xf32>
    %53 = math.tanh %52 : vector<112x128xf32>
    %cst_31 = arith.constant 1.000000e+00 : f32
    %54 = vector.broadcast %cst_31 : f32 to vector<112x128xf32>
    %55 = arith.addf %53, %54 : vector<112x128xf32>
    %56 = arith.mulf %50, %55 : vector<112x128xf32>
    %57 = arith.truncf %56 : vector<112x128xf32> to vector<112x128xbf16>
    %c0_32 = arith.constant 0 : index
    %c0_33 = arith.constant 0 : index
    %58 = vector.load %arg10[%c0_32, %c0_33] : memref<128x128xbf16, #tpu.memory_space<vmem>>, vector<128x128xbf16>
    %cst_34 = arith.constant dense<0.000000e+00> : vector<112x128xf32>
    %59 = tpu.matmul %57, %58, %cst_34 {dimension_numbers = #tpu.dot_dimension_numbers<[1], [0], [0], [1], [0, 0, 1, 1], [], []>} : vector<112x128xbf16>, vector<128x128xbf16>, vector<112x128xf32> -> vector<112x128xf32>
    %c0_35 = arith.constant 0 : index
    %c0_36 = arith.constant 0 : index
    %60 = vector.load %arg11[%c0_35, %c0_36] : memref<1x128xf32, #tpu.memory_space<vmem>>, vector<1x128xf32>
    %61 = vector.broadcast %60 : vector<1x128xf32> to vector<112x128xf32>
    %62 = arith.addf %59, %61 : vector<112x128xf32>
    %c0_37 = arith.constant 0 : index
    %c0_38 = arith.constant 0 : index
    %63 = vector.load %arg12[%c0_37, %c0_38] : memref<112x128xf32, #tpu.memory_space<vmem>>, vector<112x128xf32>
    tpu.vector_store %arg12[%c0_37, %c0_38], %62 {strides = array<i32>} : memref<112x128xf32, #tpu.memory_space<vmem>>, vector<112x128xf32>,
    return
  }
  func.func @transform_0(%arg0: i32) -> (i32, i32) {
    %c0_i32 = arith.constant 0 : i32
    %c0_i32_0 = arith.constant 0 : i32
    return %arg0, %c0_i32 : i32, i32
  }
  func.func @transform_1(%arg0: i32) -> (i32, i32) {
    %c0_i32 = arith.constant 0 : i32
    %c0_i32_0 = arith.constant 0 : i32
    %c0_i32_1 = arith.constant 0 : i32
    return %c0_i32, %c0_i32_0 : i32, i32
  }
  func.func @transform_2(%arg0: i32) -> (i32, i32) {
    %c0_i32 = arith.constant 0 : i32
    %c0_i32_0 = arith.constant 0 : i32
    %c0_i32_1 = arith.constant 0 : i32
    return %c0_i32, %c0_i32_0 : i32, i32
  }
  func.func @transform_3(%arg0: i32) -> (i32, i32) {
    %c0_i32 = arith.constant 0 : i32
    %c0_i32_0 = arith.constant 0 : i32
    %c0_i32_1 = arith.constant 0 : i32
    return %c0_i32, %c0_i32_0 : i32, i32
  }
  func.func @transform_4(%arg0: i32) -> (i32, i32) {
    %c0_i32 = arith.constant 0 : i32
    %c0_i32_0 = arith.constant 0 : i32
    %c0_i32_1 = arith.constant 0 : i32
    return %c0_i32, %c0_i32_0 : i32, i32
  }
  func.func @transform_5(%arg0: i32) -> (i32, i32) {
    %c0_i32 = arith.constant 0 : i32
    %c0_i32_0 = arith.constant 0 : i32
    %c0_i32_1 = arith.constant 0 : i32
    return %c0_i32, %c0_i32_0 : i32, i32
  }
  func.func @transform_6(%arg0: i32) -> (i32, i32) {
    %c0_i32 = arith.constant 0 : i32
    %c0_i32_0 = arith.constant 0 : i32
    %c0_i32_1 = arith.constant 0 : i32
    return %c0_i32, %c0_i32_0 : i32, i32
  }
  func.func @transform_7(%arg0: i32) -> (i32, i32) {
    %c0_i32 = arith.constant 0 : i32
    %c0_i32_0 = arith.constant 0 : i32
    %c0_i32_1 = arith.constant 0 : i32
    return %c0_i32, %c0_i32_0 : i32, i32
  }
  func.func @transform_8(%arg0: i32) -> (i32, i32) {
    %c0_i32 = arith.constant 0 : i32
    %c0_i32_0 = arith.constant 0 : i32
    %c0_i32_1 = arith.constant 0 : i32
    return %c0_i32, %c0_i32_0 : i32, i32
  }
  func.func @transform_9(%arg0: i32) -> (i32, i32) {
    %c0_i32 = arith.constant 0 : i32
    %c0_i32_0 = arith.constant 0 : i32
    %c0_i32_1 = arith.constant 0 : i32
    return %c0_i32, %c0_i32_0 : i32, i32
  }
  func.func @transform_10(%arg0: i32) -> (i32, i32) {
    %c0_i32 = arith.constant 0 : i32
    %c0_i32_0 = arith.constant 0 : i32
    %c0_i32_1 = arith.constant 0 : i32
    return %c0_i32, %c0_i32_0 : i32, i32
  }
  func.func @transform_11(%arg0: i32) -> (i32, i32) {
    %c0_i32 = arith.constant 0 : i32
    %c0_i32_0 = arith.constant 0 : i32
    return %arg0, %c0_i32 : i32, i32
  }
}

module attributes {stable_mosaic.version = 11 : i64} {
  func.func @mlp_kernel(%arg0: i32, %arg1: memref<112x32xf32, #tpu.memory_space<vmem>>, %arg2: memref<32x128xbf16, #tpu.memory_space<vmem>>, %arg3: memref<1x128xf32, #tpu.memory_space<vmem>>, %arg4: memref<128x128xbf16, #tpu.memory_space<vmem>>, %arg5: memref<1x128xf32, #tpu.memory_space<vmem>>, %arg6: memref<128x128xbf16, #tpu.memory_space<vmem>>, %arg7: memref<1x128xf32, #tpu.memory_space<vmem>>, %arg8: memref<128x128xbf16, #tpu.memory_space<vmem>>, %arg9: memref<1x128xf32, #tpu.memory_space<vmem>>, %arg10: memref<128x128xbf16, #tpu.memory_space<vmem>>, %arg11: memref<1x128xf32, #tpu.memory_space<vmem>>, %arg12: memref<112x128xf32, #tpu.memory_space<vmem>>) attributes {dimension_semantics = [#tpu.dimension_semantics<parallel>], iteration_bounds = array<i64: 2>, scalar_prefetch = 0 : i64, scratch_operands = 0 : i64, tpu.core_type = #tpu.core_type<tc>, window_params = [{transform_indices = @transform_0, window_bounds = array<i64: 112, 32>}, {pipeline_mode = #tpu.pipeline_mode<synchronous>, transform_indices = @transform_1, window_bounds = array<i64: 32, 128>}, {pipeline_mode = #tpu.pipeline_mode<synchronous>, transform_indices = @transform_2, window_bounds = array<i64: 1, 128>}, {pipeline_mode = #tpu.pipeline_mode<synchronous>, transform_indices = @transform_3, window_bounds = array<i64: 128, 128>}, {pipeline_mode = #tpu.pipeline_mode<synchronous>, transform_indices = @transform_4, window_bounds = array<i64: 1, 128>}, {pipeline_mode = #tpu.pipeline_mode<synchronous>, transform_indices = @transform_5, window_bounds = array<i64: 128, 128>}, {pipeline_mode = #tpu.pipeline_mode<synchronous>, transform_indices = @transform_6, window_bounds = array<i64: 1, 128>}, {pipeline_mode = #tpu.pipeline_mode<synchronous>, transform_indices = @transform_7, window_bounds = array<i64: 128, 128>}, {pipeline_mode = #tpu.pipeline_mode<synchronous>, transform_indices = @transform_8, window_bounds = array<i64: 1, 128>}, {pipeline_mode = #tpu.pipeline_mode<synchronous>, transform_indices = @transform_9, window_bounds = array<i64: 128, 128>}, {pipeline_mode = #tpu.pipeline_mode<synchronous>, transform_indices = @transform_10, window_bounds = array<i64: 1, 128>}, {transform_indices = @transform_11, window_bounds = array<i64: 112, 128>}]} {
    %c0 = arith.constant 0 : index
    %c0_0 = arith.constant 0 : index
    %0 = vector.load %arg1[%c0, %c0_0] : memref<112x32xf32, #tpu.memory_space<vmem>>, vector<112x32xf32>
    %1 = arith.truncf %0 : vector<112x32xf32> to vector<112x32xbf16>
    %c0_1 = arith.constant 0 : index
    %c0_2 = arith.constant 0 : index
    %2 = vector.load %arg2[%c0_1, %c0_2] : memref<32x128xbf16, #tpu.memory_space<vmem>>, vector<32x128xbf16>
    %cst = arith.constant dense<0.000000e+00> : vector<112x128xf32>
    %3 = tpu.matmul %1, %2, %cst {dimension_numbers = #tpu.dot_dimension_numbers<[1], [0], [0], [1], [0, 0, 1, 1], [], []>} : vector<112x32xbf16>, vector<32x128xbf16>, vector<112x128xf32> -> vector<112x128xf32>
    %c0_3 = arith.constant 0 : index
    %c0_4 = arith.constant 0 : index
    %4 = vector.load %arg3[%c0_3, %c0_4] : memref<1x128xf32, #tpu.memory_space<vmem>>, vector<1x128xf32>
    %5 = vector.broadcast %4 : vector<1x128xf32> to vector<112x128xf32>
    %6 = arith.addf %3, %5 : vector<112x128xf32>
    %cst_5 = arith.constant 5.000000e-01 : f32
    %7 = vector.broadcast %cst_5 : f32 to vector<112x128xf32>
    %8 = arith.mulf %7, %6 : vector<112x128xf32>
    %cst_6 = arith.constant 5.000000e-01 : f32
    %9 = vector.broadcast %cst_6 : f32 to vector<112x128xf32>
    %10 = arith.mulf %9, %6 : vector<112x128xf32>
    %11 = math.tanh %10 : vector<112x128xf32>
    %cst_7 = arith.constant 1.000000e+00 : f32
    %12 = vector.broadcast %cst_7 : f32 to vector<112x128xf32>
    %13 = arith.addf %11, %12 : vector<112x128xf32>
    %14 = arith.mulf %8, %13 : vector<112x128xf32>
    %15 = arith.truncf %14 : vector<112x128xf32> to vector<112x128xbf16>
    %c0_8 = arith.constant 0 : index
    %c0_9 = arith.constant 0 : index
    %16 = vector.load %arg4[%c0_8, %c0_9] : memref<128x128xbf16, #tpu.memory_space<vmem>>, vector<128x128xbf16>
    %cst_10 = arith.constant dense<0.000000e+00> : vector<112x128xf32>
    %17 = tpu.matmul %15, %16, %cst_10 {dimension_numbers = #tpu.dot_dimension_numbers<[1], [0], [0], [1], [0, 0, 1, 1], [], []>} : vector<112x128xbf16>, vector<128x128xbf16>, vector<112x128xf32> -> vector<112x128xf32>
    %c0_11 = arith.constant 0 : index
    %c0_12 = arith.constant 0 : index
    %18 = vector.load %arg5[%c0_11, %c0_12] : memref<1x128xf32, #tpu.memory_space<vmem>>, vector<1x128xf32>
    %19 = vector.broadcast %18 : vector<1x128xf32> to vector<112x128xf32>
    %20 = arith.addf %17, %19 : vector<112x128xf32>
    %cst_13 = arith.constant 5.000000e-01 : f32
    %21 = vector.broadcast %cst_13 : f32 to vector<112x128xf32>
    %22 = arith.mulf %21, %20 : vector<112x128xf32>
    %cst_14 = arith.constant 5.000000e-01 : f32
    %23 = vector.broadcast %cst_14 : f32 to vector<112x128xf32>
    %24 = arith.mulf %23, %20 : vector<112x128xf32>
    %25 = math.tanh %24 : vector<112x128xf32>
    %cst_15 = arith.constant 1.000000e+00 : f32
    %26 = vector.broadcast %cst_15 : f32 to vector<112x128xf32>
    %27 = arith.addf %25, %26 : vector<112x128xf32>
    %28 = arith.mulf %22, %27 : vector<112x128xf32>
    %29 = arith.truncf %28 : vector<112x128xf32> to vector<112x128xbf16>
    %c0_16 = arith.constant 0 : index
    %c0_17 = arith.constant 0 : index
    %30 = vector.load %arg6[%c0_16, %c0_17] : memref<128x128xbf16, #tpu.memory_space<vmem>>, vector<128x128xbf16>
    %cst_18 = arith.constant dense<0.000000e+00> : vector<112x128xf32>
    %31 = tpu.matmul %29, %30, %cst_18 {dimension_numbers = #tpu.dot_dimension_numbers<[1], [0], [0], [1], [0, 0, 1, 1], [], []>} : vector<112x128xbf16>, vector<128x128xbf16>, vector<112x128xf32> -> vector<112x128xf32>
    %c0_19 = arith.constant 0 : index
    %c0_20 = arith.constant 0 : index
    %32 = vector.load %arg7[%c0_19, %c0_20] : memref<1x128xf32, #tpu.memory_space<vmem>>, vector<1x128xf32>
    %33 = vector.broadcast %32 : vector<1x128xf32> to vector<112x128xf32>
    %34 = arith.addf %31, %33 : vector<112x128xf32>
    %cst_21 = arith.constant 5.000000e-01 : f32
    %35 = vector.broadcast %cst_21 : f32 to vector<112x128xf32>
    %36 = arith.mulf %35, %34 : vector<112x128xf32>
    %cst_22 = arith.constant 5.000000e-01 : f32
    %37 = vector.broadcast %cst_22 : f32 to vector<112x128xf32>
    %38 = arith.mulf %37, %34 : vector<112x128xf32>
    %39 = math.tanh %38 : vector<112x128xf32>
    %cst_23 = arith.constant 1.000000e+00 : f32
    %40 = vector.broadcast %cst_23 : f32 to vector<112x128xf32>
    %41 = arith.addf %39, %40 : vector<112x128xf32>
    %42 = arith.mulf %36, %41 : vector<112x128xf32>
    %43 = arith.truncf %42 : vector<112x128xf32> to vector<112x128xbf16>
    %c0_24 = arith.constant 0 : index
    %c0_25 = arith.constant 0 : index
    %44 = vector.load %arg8[%c0_24, %c0_25] : memref<128x128xbf16, #tpu.memory_space<vmem>>, vector<128x128xbf16>
    %cst_26 = arith.constant dense<0.000000e+00> : vector<112x128xf32>
    %45 = tpu.matmul %43, %44, %cst_26 {dimension_numbers = #tpu.dot_dimension_numbers<[1], [0], [0], [1], [0, 0, 1, 1], [], []>} : vector<112x128xbf16>, vector<128x128xbf16>, vector<112x128xf32> -> vector<112x128xf32>
    %c0_27 = arith.constant 0 : index
    %c0_28 = arith.constant 0 : index
    %46 = vector.load %arg9[%c0_27, %c0_28] : memref<1x128xf32, #tpu.memory_space<vmem>>, vector<1x128xf32>
    %47 = vector.broadcast %46 : vector<1x128xf32> to vector<112x128xf32>
    %48 = arith.addf %45, %47 : vector<112x128xf32>
    %cst_29 = arith.constant 5.000000e-01 : f32
    %49 = vector.broadcast %cst_29 : f32 to vector<112x128xf32>
    %50 = arith.mulf %49, %48 : vector<112x128xf32>
    %cst_30 = arith.constant 5.000000e-01 : f32
    %51 = vector.broadcast %cst_30 : f32 to vector<112x128xf32>
    %52 = arith.mulf %51, %48 : vector<112x128xf32>
    %53 = math.tanh %52 : vector<112x128xf32>
    %cst_31 = arith.constant 1.000000e+00 : f32
    %54 = vector.broadcast %cst_31 : f32 to vector<112x128xf32>
    %55 = arith.addf %53, %54 : vector<112x128xf32>
    %56 = arith.mulf %50, %55 : vector<112x128xf32>
    %57 = arith.truncf %56 : vector<112x128xf32> to vector<112x128xbf16>
    %c0_32 = arith.constant 0 : index
    %c0_33 = arith.constant 0 : index
    %58 = vector.load %arg10[%c0_32, %c0_33] : memref<128x128xbf16, #tpu.memory_space<vmem>>, vector<128x128xbf16>
    %cst_34 = arith.constant dense<0.000000e+00> : vector<112x128xf32>
    %59 = tpu.matmul %57, %58, %cst_34 {dimension_numbers = #tpu.dot_dimension_numbers<[1], [0], [0], [1], [0, 0, 1, 1], [], []>} : vector<112x128xbf16>, vector<128x128xbf16>, vector<112x128xf32> -> vector<112x128xf32>
    %c0_35 = arith.constant 0 : index
    %c0_36 = arith.constant 0 : index
    %60 = vector.load %arg11[%c0_35, %c0_36] : memref<1x128xf32, #tpu.memory_space<vmem>>, vector<1x128xf32>
    %61 = vector.broadcast %60 : vector<1x128xf32> to vector<112x128xf32>
    %62 = arith.addf %59, %61 : vector<112x128xf32>
    %c0_37 = arith.constant 0 : index
    %c0_38 = arith.constant 0 : index
    %63 = vector.load %arg12[%c0_37, %c0_38] : memref<112x128xf32, #tpu.memory_space<vmem>>, vector<112x128xf32>
    tpu.vector_store %arg12[%c0_37, %c0_38], %62 {strides = array<i32>} : memref<112x128xf32, #tpu.memory_space<vmem>>, vector<112x128xf32>,
    return
  }
  func.func @transform_0(%arg0: i32) -> (i32, i32) {
    %c0_i32 = arith.constant 0 : i32
    %c0_i32_0 = arith.constant 0 : i32
    return %arg0, %c0_i32 : i32, i32
  }
  func.func @transform_1(%arg0: i32) -> (i32, i32) {
    %c0_i32 = arith.constant 0 : i32
    %c0_i32_0 = arith.constant 0 : i32
    %c0_i32_1 = arith.constant 0 : i32
    return %c0_i32, %c0_i32_0 : i32, i32
  }
  func.func @transform_2(%arg0: i32) -> (i32, i32) {
    %c0_i32 = arith.constant 0 : i32
    %c0_i32_0 = arith.constant 0 : i32
    %c0_i32_1 = arith.constant 0 : i32
    return %c0_i32, %c0_i32_0 : i32, i32
  }
  func.func @transform_3(%arg0: i32) -> (i32, i32) {
    %c0_i32 = arith.constant 0 : i32
    %c0_i32_0 = arith.constant 0 : i32
    %c0_i32_1 = arith.constant 0 : i32
    return %c0_i32, %c0_i32_0 : i32, i32
  }
  func.func @transform_4(%arg0: i32) -> (i32, i32) {
    %c0_i32 = arith.constant 0 : i32
    %c0_i32_0 = arith.constant 0 : i32
    %c0_i32_1 = arith.constant 0 : i32
    return %c0_i32, %c0_i32_0 : i32, i32
  }
  func.func @transform_5(%arg0: i32) -> (i32, i32) {
    %c0_i32 = arith.constant 0 : i32
    %c0_i32_0 = arith.constant 0 : i32
    %c0_i32_1 = arith.constant 0 : i32
    return %c0_i32, %c0_i32_0 : i32, i32
  }
  func.func @transform_6(%arg0: i32) -> (i32, i32) {
    %c0_i32 = arith.constant 0 : i32
    %c0_i32_0 = arith.constant 0 : i32
    %c0_i32_1 = arith.constant 0 : i32
    return %c0_i32, %c0_i32_0 : i32, i32
  }
  func.func @transform_7(%arg0: i32) -> (i32, i32) {
    %c0_i32 = arith.constant 0 : i32
    %c0_i32_0 = arith.constant 0 : i32
    %c0_i32_1 = arith.constant 0 : i32
    return %c0_i32, %c0_i32_0 : i32, i32
  }
  func.func @transform_8(%arg0: i32) -> (i32, i32) {
    %c0_i32 = arith.constant 0 : i32
    %c0_i32_0 = arith.constant 0 : i32
    %c0_i32_1 = arith.constant 0 : i32
    return %c0_i32, %c0_i32_0 : i32, i32
  }
  func.func @transform_9(%arg0: i32) -> (i32, i32) {
    %c0_i32 = arith.constant 0 : i32
    %c0_i32_0 = arith.constant 0 : i32
    %c0_i32_1 = arith.constant 0 : i32
    return %c0_i32, %c0_i32_0 : i32, i32
  }
  func.func @transform_10(%arg0: i32) -> (i32, i32) {
    %c0_i32 = arith.constant 0 : i32
    %c0_i32_0 = arith.constant 0 : i32
    %c0_i32_1 = arith.constant 0 : i32
    return %c0_i32, %c0_i32_0 : i32, i32
  }
  func.func @transform_11(%arg0: i32) -> (i32, i32) {
    %c0_i32 = arith.constant 0 : i32
    %c0_i32_0 = arith.constant 0 : i32
    return %arg0, %c0_i32 : i32, i32
  }
}

</mosaic_0001>

<llo_original>
// kernel: tpu_custom_call.1
$region0: #{tpu_custom_call.1}
  #allocation0 [shape = 'u32[]', space=smem, size = 0x4, offset = 0x4, fixed_abs, tag = 'smem constant byte address 0x4 - core index']
  #allocation1 [shape = 'u32[144,128]{1,0:T(1,128)}', space=vmem, size = 0x12000, scoped, tag = 'internal scratch']
  %s0 = inlined_call_operand.vmem [shape: f32[200,32], index: 0, kind: input, shape index: {}]
  %s1 = inlined_call_operand.hbm [shape: bf16[32,128], index: 1, kind: input, shape index: {}]
  %s2 = inlined_call_operand.vmem [shape: f32[1,128], index: 2, kind: input, shape index: {}]
  %s3 = inlined_call_operand.vmem [shape: bf16[128,128], index: 3, kind: input, shape index: {}]
  %s4 = inlined_call_operand.vmem [shape: f32[1,128], index: 4, kind: input, shape index: {}]
  %s5 = inlined_call_operand.vmem [shape: bf16[128,128], index: 5, kind: input, shape index: {}]
  %s6 = inlined_call_operand.vmem [shape: f32[1,128], index: 6, kind: input, shape index: {}]
  %s7 = inlined_call_operand.vmem [shape: bf16[128,128], index: 7, kind: input, shape index: {}]
  %s8 = inlined_call_operand.vmem [shape: f32[1,128], index: 8, kind: input, shape index: {}]
  %s9 = inlined_call_operand.vmem [shape: bf16[128,128], index: 9, kind: input, shape index: {}]
  %s10 = inlined_call_operand.vmem [shape: f32[1,128], index: 10, kind: input, shape index: {}]
  %s11 = inlined_call_operand.hbm [shape: f32[200,128], index: 11, kind: output, shape index: {}]
  %s12 = sld [smem:[#allocation0]]
  $region81: #{tpu_custom_call.1} parent=0
    _
  %s14 = ssub.s32 1, %s12
  %s15 = scalar_select 0, %s14, %s12
  $region1: #{tpu_custom_call.1} parent=0
    #allocation2 [shape = 'u8[8192]{0}', space=vmem, size = 0x2000, scoped, tag = 'input window, operand 1, single buffered']
    #allocation3 [shape = 's32[2]{0}', space=sflag, size = 0x8, scoped, tag = 'scoped memory for tpu_custom_call.1']
    #allocation4 [shape = 's32[2]{0}', space=sflag, size = 0x8, scoped, tag = 'scoped memory for tpu_custom_call.1']
    #allocation5 [shape = 'u8[114688]{0}', space=vmem, size = 0x1c000, scoped, tag = 'output window, operand 0']
    %16 = vsyncpa [#allocation3], 0
    %17 = vsyncpa [#allocation4], 0
    %s18 = scalar_lea.sflag [#allocation4], 1
    %19 = vsyncpa %s18, 0
    loop: start=0, step=1, limit=4
    $region2: #{tpu_custom_call.1} parent=1 // loop_pre_header
      _
    $region3: #{tpu_custom_call.1} parent=1 // loop_header
      %s21 = sphi 0, %s25
      %p22 = scmp.ge.s32.totalorder %s21, 4
      %s31 = sphi 0, %s33
      %s34 = sphi 0, %s31
      %s35 = sphi 0, %s34
      %s51 = sphi 0, %s35
      %s55 = sphi 0, %s55
      %s57 = sphi 0, %s55
      %s58 = sphi 0, %s57
      %s72 = sphi 0, %s58
      %s76 = sphi 0, %s76
      %s78 = sphi 0, %s76
      %s79 = sphi 0, %s78
      %s93 = sphi 0, %s79
      %s97 = sphi 0, %s97
      %s99 = sphi 0, %s97
      %s100 = sphi 0, %s99
      %s114 = sphi 0, %s100
      %s118 = sphi 0, %s118
      %s120 = sphi 0, %s118
      %s121 = sphi 0, %s120
      %s135 = sphi 0, %s121
      %s139 = sphi 0, %s139
      %s141 = sphi 0, %s139
      %s142 = sphi 0, %s141
      %s156 = sphi 0, %s142
      %s160 = sphi 0, %s160
      %s162 = sphi 0, %s160
      %s163 = sphi 0, %s162
      %s177 = sphi 0, %s163
      %s181 = sphi 0, %s181
      %s183 = sphi 0, %s181
      %s184 = sphi 0, %s183
      %s198 = sphi 0, %s184
      %s202 = sphi 0, %s202
      %s204 = sphi 0, %s202
      %s205 = sphi 0, %s204
      %s219 = sphi 0, %s205
      %s223 = sphi 0, %s223
      %s225 = sphi 0, %s223
      %s226 = sphi 0, %s225
      %s240 = sphi 0, %s226
      %s244 = sphi 0, %s244
      %s246 = sphi 0, %s244
      %s247 = sphi 0, %s246
      %s261 = sphi 0, %s247
      %s267 = sphi 0, %s269
      %s270 = sphi 0, %s267
      %s271 = sphi 0, %s270
      %s287 = sphi 0, %s271
    $region4: #{tpu_custom_call.1} parent=1 // loop_header_branch
      %24 = sbr.rel (%p22) target = $region8
    $region5: #{tpu_custom_call.1} parent=1 // loop_body
      %s26 = ssub.s32 %s21, 1
      %s27 = ssub.s32 %s21, 2
      %s28 = sadd.s32 %s21, 1
      %s29 = ssub.s32 %s21, %s28
      %p30 = scmp.eq.s32.totalorder %s29, 0
      %s32 = sadd.s32 %s31, 1
      %s33 = scalar_select %p30, %s31, %s32
      %p36 = pneg %p30
      %p37 = scmp.eq.s32.totalorder %s21, 1
      %p38 = por %p36, %p37
      %p39 = scmp.ne.s32.totalorder %s31, %s34
      %p40 = scmp.eq.s32.totalorder %s21, 0
      %p41 = por %p39, %p40
      %p42 = scmp.ne.s32.totalorder %s31, %s34
      %p43 = scmp.eq.s32.totalorder %s26, 1
      %p44 = por %p42, %p43
      %p45 = scmp.ne.s32.totalorder %s34, %s35
      %p46 = scmp.eq.s32.totalorder %s26, 0
      %p47 = por %p45, %p46
      %p48 = scmp.ne.s32.totalorder %s34, %s35
      %p49 = scmp.eq.s32.totalorder %s27, 1
      %p50 = por %p48, %p49
      %p52 = scmp.ne.s32.totalorder %s35, %s51
      %p53 = scmp.eq.s32.totalorder %s27, 0
      %p54 = por %p52, %p53
      %s56 = sadd.s32 %s55, 1
      %p59 = scmp.eq.s32.totalorder %s21, 1
      %p60 = scmp.ne.s32.totalorder %s55, %s57
      %p61 = scmp.eq.s32.totalorder %s21, 0
      %p62 = por %p60, %p61
      %p63 = scmp.ne.s32.totalorder %s55, %s57
      %p64 = scmp.eq.s32.totalorder %s26, 1
      %p65 = por %p63, %p64
      %p66 = scmp.ne.s32.totalorder %s57, %s58
      %p67 = scmp.eq.s32.totalorder %s26, 0
      %p68 = por %p66, %p67
      %p69 = scmp.ne.s32.totalorder %s57, %s58
      %p70 = scmp.eq.s32.totalorder %s27, 1
      %p71 = por %p69, %p70
      %p73 = scmp.ne.s32.totalorder %s58, %s72
      %p74 = scmp.eq.s32.totalorder %s27, 0
      %p75 = por %p73, %p74
      %s77 = sadd.s32 %s76, 1
      %p80 = scmp.eq.s32.totalorder %s21, 1
      %p81 = scmp.ne.s32.totalorder %s76, %s78
      %p82 = scmp.eq.s32.totalorder %s21, 0
      %p83 = por %p81, %p82
      %p84 = scmp.ne.s32.totalorder %s76, %s78
      %p85 = scmp.eq.s32.totalorder %s26, 1
      %p86 = por %p84, %p85
      %p87 = scmp.ne.s32.totalorder %s78, %s79
      %p88 = scmp.eq.s32.totalorder %s26, 0
      %p89 = por %p87, %p88
      %p90 = scmp.ne.s32.totalorder %s78, %s79
      %p91 = scmp.eq.s32.totalorder %s27, 1
      %p92 = por %p90, %p91
      %p94 = scmp.ne.s32.totalorder %s79, %s93
      %p95 = scmp.eq.s32.totalorder %s27, 0
      %p96 = por %p94, %p95
      %s98 = sadd.s32 %s97, 1
      %p101 = scmp.eq.s32.totalorder %s21, 1
      %p102 = scmp.ne.s32.totalorder %s97, %s99
      %p103 = scmp.eq.s32.totalorder %s21, 0
      %p104 = por %p102, %p103
      %p105 = scmp.ne.s32.totalorder %s97, %s99
      %p106 = scmp.eq.s32.totalorder %s26, 1
      %p107 = por %p105, %p106
      %p108 = scmp.ne.s32.totalorder %s99, %s100
      %p109 = scmp.eq.s32.totalorder %s26, 0
      %p110 = por %p108, %p109
      %p111 = scmp.ne.s32.totalorder %s99, %s100
      %p112 = scmp.eq.s32.totalorder %s27, 1
      %p113 = por %p111, %p112
      %p115 = scmp.ne.s32.totalorder %s100, %s114
      %p116 = scmp.eq.s32.totalorder %s27, 0
      %p117 = por %p115, %p116
      %s119 = sadd.s32 %s118, 1
      %p122 = scmp.eq.s32.totalorder %s21, 1
      %p123 = scmp.ne.s32.totalorder %s118, %s120
      %p124 = scmp.eq.s32.totalorder %s21, 0
      %p125 = por %p123, %p124
      %p126 = scmp.ne.s32.totalorder %s118, %s120
      %p127 = scmp.eq.s32.totalorder %s26, 1
      %p128 = por %p126, %p127
      %p129 = scmp.ne.s32.totalorder %s120, %s121
      %p130 = scmp.eq.s32.totalorder %s26, 0
      %p131 = por %p129, %p130
      %p132 = scmp.ne.s32.totalorder %s120, %s121
      %p133 = scmp.eq.s32.totalorder %s27, 1
      %p134 = por %p132, %p133
      %p136 = scmp.ne.s32.totalorder %s121, %s135
      %p137 = scmp.eq.s32.totalorder %s27, 0
      %p138 = por %p136, %p137
      %s140 = sadd.s32 %s139, 1
      %p143 = scmp.eq.s32.totalorder %s21, 1
      %p144 = scmp.ne.s32.totalorder %s139, %s141
      %p145 = scmp.eq.s32.totalorder %s21, 0
      %p146 = por %p144, %p145
      %p147 = scmp.ne.s32.totalorder %s139, %s141
      %p148 = scmp.eq.s32.totalorder %s26, 1
      %p149 = por %p147, %p148
      %p150 = scmp.ne.s32.totalorder %s141, %s142
      %p151 = scmp.eq.s32.totalorder %s26, 0
      %p152 = por %p150, %p151
      %p153 = scmp.ne.s32.totalorder %s141, %s142
      %p154 = scmp.eq.s32.totalorder %s27, 1
      %p155 = por %p153, %p154
      %p157 = scmp.ne.s32.totalorder %s142, %s156
      %p158 = scmp.eq.s32.totalorder %s27, 0
      %p159 = por %p157, %p158
      %s161 = sadd.s32 %s160, 1
      %p164 = scmp.eq.s32.totalorder %s21, 1
      %p165 = scmp.ne.s32.totalorder %s160, %s162
      %p166 = scmp.eq.s32.totalorder %s21, 0
      %p167 = por %p165, %p166
      %p168 = scmp.ne.s32.totalorder %s160, %s162
      %p169 = scmp.eq.s32.totalorder %s26, 1
      %p170 = por %p168, %p169
      %p171 = scmp.ne.s32.totalorder %s162, %s163
      %p172 = scmp.eq.s32.totalorder %s26, 0
      %p173 = por %p171, %p172
      %p174 = scmp.ne.s32.totalorder %s162, %s163
      %p175 = scmp.eq.s32.totalorder %s27, 1
      %p176 = por %p174, %p175
      %p178 = scmp.ne.s32.totalorder %s163, %s177
      %p179 = scmp.eq.s32.totalorder %s27, 0
      %p180 = por %p178, %p179
      %s182 = sadd.s32 %s181, 1
      %p185 = scmp.eq.s32.totalorder %s21, 1
      %p186 = scmp.ne.s32.totalorder %s181, %s183
      %p187 = scmp.eq.s32.totalorder %s21, 0
      %p188 = por %p186, %p187
      %p189 = scmp.ne.s32.totalorder %s181, %s183
      %p190 = scmp.eq.s32.totalorder %s26, 1
      %p191 = por %p189, %p190
      %p192 = scmp.ne.s32.totalorder %s183, %s184
      %p193 = scmp.eq.s32.totalorder %s26, 0
      %p194 = por %p192, %p193
      %p195 = scmp.ne.s32.totalorder %s183, %s184
      %p196 = scmp.eq.s32.totalorder %s27, 1
      %p197 = por %p195, %p196
      %p199 = scmp.ne.s32.totalorder %s184, %s198
      %p200 = scmp.eq.s32.totalorder %s27, 0
      %p201 = por %p199, %p200
      %s203 = sadd.s32 %s202, 1
      %p206 = scmp.eq.s32.totalorder %s21, 1
      %p207 = scmp.ne.s32.totalorder %s202, %s204
      %p208 = scmp.eq.s32.totalorder %s21, 0
      %p209 = por %p207, %p208
      %p210 = scmp.ne.s32.totalorder %s202, %s204
      %p211 = scmp.eq.s32.totalorder %s26, 1
      %p212 = por %p210, %p211
      %p213 = scmp.ne.s32.totalorder %s204, %s205
      %p214 = scmp.eq.s32.totalorder %s26, 0
      %p215 = por %p213, %p214
      %p216 = scmp.ne.s32.totalorder %s204, %s205
      %p217 = scmp.eq.s32.totalorder %s27, 1
      %p218 = por %p216, %p217
      %p220 = scmp.ne.s32.totalorder %s205, %s219
      %p221 = scmp.eq.s32.totalorder %s27, 0
      %p222 = por %p220, %p221
      %s224 = sadd.s32 %s223, 1
      %p227 = scmp.eq.s32.totalorder %s21, 1
      %p228 = scmp.ne.s32.totalorder %s223, %s225
      %p229 = scmp.eq.s32.totalorder %s21, 0
      %p230 = por %p228, %p229
      %p231 = scmp.ne.s32.totalorder %s223, %s225
      %p232 = scmp.eq.s32.totalorder %s26, 1
      %p233 = por %p231, %p232
      %p234 = scmp.ne.s32.totalorder %s225, %s226
      %p235 = scmp.eq.s32.totalorder %s26, 0
      %p236 = por %p234, %p235
      %p237 = scmp.ne.s32.totalorder %s225, %s226
      %p238 = scmp.eq.s32.totalorder %s27, 1
      %p239 = por %p237, %p238
      %p241 = scmp.ne.s32.totalorder %s226, %s240
      %p242 = scmp.eq.s32.totalorder %s27, 0
      %p243 = por %p241, %p242
      %s245 = sadd.s32 %s244, 1
      %p248 = scmp.eq.s32.totalorder %s21, 1
      %p249 = scmp.ne.s32.totalorder %s244, %s246
      %p250 = scmp.eq.s32.totalorder %s21, 0
      %p251 = por %p249, %p250
      %p252 = scmp.ne.s32.totalorder %s244, %s246
      %p253 = scmp.eq.s32.totalorder %s26, 1
      %p254 = por %p252, %p253
      %p255 = scmp.ne.s32.totalorder %s246, %s247
      %p256 = scmp.eq.s32.totalorder %s26, 0
      %p257 = por %p255, %p256
      %p258 = scmp.ne.s32.totalorder %s246, %s247
      %p259 = scmp.eq.s32.totalorder %s27, 1
      %p260 = por %p258, %p259
      %p262 = scmp.ne.s32.totalorder %s247, %s261
      %p263 = scmp.eq.s32.totalorder %s27, 0
      %p264 = por %p262, %p263
      %s265 = ssub.s32 %s21, %s28
      %p266 = scmp.eq.s32.totalorder %s265, 0
      %s268 = sadd.s32 %s267, 1
      %s269 = scalar_select %p266, %s267, %s268
      %p272 = pneg %p266
      %p273 = scmp.eq.s32.totalorder %s21, 1
      %p274 = por %p272, %p273
      %p275 = scmp.ne.s32.totalorder %s267, %s270
      %p276 = scmp.eq.s32.totalorder %s21, 0
      %p277 = por %p275, %p276
      %p278 = scmp.ne.s32.totalorder %s267, %s270
      %p279 = scmp.eq.s32.totalorder %s26, 1
      %p280 = por %p278, %p279
      %p281 = scmp.ne.s32.totalorder %s270, %s271
      %p282 = scmp.eq.s32.totalorder %s26, 0
      %p283 = por %p281, %p282
      %p284 = scmp.ne.s32.totalorder %s270, %s271
      %p285 = scmp.eq.s32.totalorder %s27, 1
      %p286 = por %p284, %p285
      %p288 = scmp.ne.s32.totalorder %s271, %s287
      %p289 = scmp.eq.s32.totalorder %s27, 0
      %p290 = por %p288, %p289
      %p291 = scmp.le.s32.totalorder 1, %s21
      %p292 = scmp.lt.s32.totalorder %s21, 3
      %p293 = pnand %p291, %p292
      %p294 = pneg %p293
      // Predicated region
      $region9: #{tpu_custom_call.1} parent=5 // pred_check
        _
      $region10: #{tpu_custom_call.1} parent=5 // pred_check_branch
        %296 = sbr.rel (%p293) target = $region12
      $region11: #{tpu_custom_call.1} parent=5 // pred_region
        %s297 = ssub.s32 %s21, 1
        // Predicated region
        $region13: #{tpu_custom_call.1} parent=11 // pred_check
          %p298 = pneg %p68
        $region14: #{tpu_custom_call.1} parent=11 // pred_check_branch
          %300 = sbr.rel (%p298) target = $region16
        $region15: #{tpu_custom_call.1} parent=11 // pred_region
          %s302 = ssub.s32 256, 256
          %303 = vsyncadd [#allocation3], %s302
          %s304 = sshll.u32 [#allocation2], 4
          %s305 = int_to_ptr.vmem [resolvable:$true] %s304
          %310 = dma.hbm_to_vmem [thread:$0]  %s1, 256, %s305, [#allocation3], 64, 64, 4
        $region16: #{tpu_custom_call.1} parent=11 // pred_fallthru
          _
        // Predicated region
        $region17: #{tpu_custom_call.1} parent=11 // pred_check
          %p311 = pneg %p89
        $region18: #{tpu_custom_call.1} parent=11 // pred_check_branch
          %313 = sbr.rel (%p311) target = $region20
        $region19: #{tpu_custom_call.1} parent=11 // pred_region
          _
        $region20: #{tpu_custom_call.1} parent=11 // pred_fallthru
          _
        // Predicated region
        $region21: #{tpu_custom_call.1} parent=11 // pred_check
          %p314 = pneg %p110
        $region22: #{tpu_custom_call.1} parent=11 // pred_check_branch
          %316 = sbr.rel (%p314) target = $region24
        $region23: #{tpu_custom_call.1} parent=11 // pred_region
          _
        $region24: #{tpu_custom_call.1} parent=11 // pred_fallthru
          _
        // Predicated region
        $region25: #{tpu_custom_call.1} parent=11 // pred_check
          %p317 = pneg %p131
        $region26: #{tpu_custom_call.1} parent=11 // pred_check_branch
          %319 = sbr.rel (%p317) target = $region28
        $region27: #{tpu_custom_call.1} parent=11 // pred_region
          _
        $region28: #{tpu_custom_call.1} parent=11 // pred_fallthru
          _
        // Predicated region
        $region29: #{tpu_custom_call.1} parent=11 // pred_check
          %p320 = pneg %p152
        $region30: #{tpu_custom_call.1} parent=11 // pred_check_branch
          %322 = sbr.rel (%p320) target = $region32
        $region31: #{tpu_custom_call.1} parent=11 // pred_region
          _
        $region32: #{tpu_custom_call.1} parent=11 // pred_fallthru
          _
        // Predicated region
        $region33: #{tpu_custom_call.1} parent=11 // pred_check
          %p323 = pneg %p173
        $region34: #{tpu_custom_call.1} parent=11 // pred_check_branch
          %325 = sbr.rel (%p323) target = $region36
        $region35: #{tpu_custom_call.1} parent=11 // pred_region
          _
        $region36: #{tpu_custom_call.1} parent=11 // pred_fallthru
          _
        // Predicated region
        $region37: #{tpu_custom_call.1} parent=11 // pred_check
          %p326 = pneg %p194
        $region38: #{tpu_custom_call.1} parent=11 // pred_check_branch
          %328 = sbr.rel (%p326) target = $region40
        $region39: #{tpu_custom_call.1} parent=11 // pred_region
          _
        $region40: #{tpu_custom_call.1} parent=11 // pred_fallthru
          _
        // Predicated region
        $region41: #{tpu_custom_call.1} parent=11 // pred_check
          %p329 = pneg %p215
        $region42: #{tpu_custom_call.1} parent=11 // pred_check_branch
          %331 = sbr.rel (%p329) target = $region44
        $region43: #{tpu_custom_call.1} parent=11 // pred_region
          _
        $region44: #{tpu_custom_call.1} parent=11 // pred_fallthru
          _
        // Predicated region
        $region45: #{tpu_custom_call.1} parent=11 // pred_check
          %p332 = pneg %p236
        $region46: #{tpu_custom_call.1} parent=11 // pred_check_branch
          %334 = sbr.rel (%p332) target = $region48
        $region47: #{tpu_custom_call.1} parent=11 // pred_region
          _
        $region48: #{tpu_custom_call.1} parent=11 // pred_fallthru
          _
        // Predicated region
        $region49: #{tpu_custom_call.1} parent=11 // pred_check
          %p335 = pneg %p257
        $region50: #{tpu_custom_call.1} parent=11 // pred_check_branch
          %337 = sbr.rel (%p335) target = $region52
        $region51: #{tpu_custom_call.1} parent=11 // pred_region
          _
        $region52: #{tpu_custom_call.1} parent=11 // pred_fallthru
          _
      $region12: #{tpu_custom_call.1} parent=5 // pred_fallthru
        _
      %p338 = scmp.lt.s32.totalorder %s21, 2
      // Predicated region
      $region53: #{tpu_custom_call.1} parent=5 // pred_check
        %p339 = pneg %p338
      $region54: #{tpu_custom_call.1} parent=5 // pred_check_branch
        %341 = sbr.rel (%p339) target = $region56
      $region55: #{tpu_custom_call.1} parent=5 // pred_region
        // Predicated region
        $region57: #{tpu_custom_call.1} parent=55 // pred_check
          %p342 = pneg %p41
        $region58: #{tpu_custom_call.1} parent=55 // pred_check_branch
          %344 = sbr.rel (%p342) target = $region60
        $region59: #{tpu_custom_call.1} parent=55 // pred_region
          %s345 = smul.u32 14, %s21
          %s346 = ssub.s32 25, %s345
          %p347 = scmp.lt.s32.totalorder %s346, 14
          %s348 = scalar_select %p347, %s346, 14
          %s349 = smul.u32 128, %s348
          %p350 = scmp.lt.s32.totalorder %s345, 24
          %s351 = scalar_select %p350, %s345, 24
          %s352 = smul.addr %s351, 8
          %s353 = scalar_lea.vmem %s0, %s352
          %s354 = smul.u32 14, %s21
          %s355 = ssub.s32 25, %s354
          %p356 = scmp.lt.s32.totalorder %s355, 14
          %s357 = scalar_select %p356, %s355, 14
          %s358 = smul.u32 128, %s357
        $region60: #{tpu_custom_call.1} parent=55 // pred_fallthru
          _
      $region56: #{tpu_custom_call.1} parent=5 // pred_fallthru
        _
      %p359 = scmp.le.s32.totalorder 1, %s21
      %p360 = scmp.lt.s32.totalorder %s21, 3
      %p361 = pnand %p359, %p360
      %p362 = pneg %p361
      // Predicated region
      $region61: #{tpu_custom_call.1} parent=5 // pred_check
        _
      $region62: #{tpu_custom_call.1} parent=5 // pred_check_branch
        %364 = sbr.rel (%p361) target = $region64
      $region63: #{tpu_custom_call.1} parent=5 // pred_region
        %s365 = ssub.s32 %s21, 1
        // Predicated region
        $region65: #{tpu_custom_call.1} parent=63 // pred_check
          %p366 = pneg %p68
        $region66: #{tpu_custom_call.1} parent=63 // pred_check_branch
          %368 = sbr.rel (%p366) target = $region68
        $region67: #{tpu_custom_call.1} parent=63 // pred_region
          %369 = dma.done [#allocation3], 256
        $region68: #{tpu_custom_call.1} parent=63 // pred_fallthru
          _
        %s370 = smul.u32 14, %s26
        %s371 = ssub.s32 25, %s370
        %p372 = scmp.lt.s32.totalorder %s371, 14
        %s373 = scalar_select %p372, %s371, 14
        %s374 = smul.u32 128, %s373
        %p375 = scmp.lt.s32.totalorder %s370, 24
        %s376 = scalar_select %p375, %s370, 24
        %s377 = smul.addr %s376, 8
        %s378 = scalar_lea.vmem %s0, %s377
        %p379 = pneg %p47
        %p380 = pneg %p44
        %p381 = pneg %p68
        %p382 = pneg %p65
        %p383 = pneg %p89
        %p384 = pneg %p86
        %p385 = pneg %p110
        %p386 = pneg %p107
        %p387 = pneg %p131
        %p388 = pneg %p128
        %p389 = pneg %p152
        %p390 = pneg %p149
        %p391 = pneg %p173
        %p392 = pneg %p170
        %p393 = pneg %p194
        %p394 = pneg %p191
        %p395 = pneg %p215
        %p396 = pneg %p212
        %p397 = pneg %p236
        %p398 = pneg %p233
        %p399 = pneg %p257
        %p400 = pneg %p254
        %p401 = pneg %p283
        %p402 = pneg %p280
        %s403 = sand.u32 %s270, 1
        %s404 = scalar_lea.sflag [#allocation4], %s403
        %s405 = sand.u32 %s270, 1
        %s406 = smul.addr %s405, 112
        %s407 = scalar_lea.vmem [#allocation5], %s406
        %s408 = smul.u32 14, %s26
        %s409 = ssub.s32 25, %s408
        %p410 = scmp.lt.s32.totalorder %s409, 14
        %s411 = scalar_select %p410, %s409, 14
        %s412 = smul.u32 128, %s411
        %p413 = scmp.lt.s32.totalorder %s408, 24
        %s414 = scalar_select %p413, %s408, 24
        %s415 = smul.addr %s414, 8
        %s416 = scalar_lea.vmem %s0, %s415
        %s417 = smul.u32 14, %s26
        %s418 = ssub.s32 25, %s417
        %p419 = scmp.lt.s32.totalorder %s418, 14
        %s420 = scalar_select %p419, %s418, 14
        %s421 = smul.u32 128, %s420
        %s422 = smul.u32 14, %s26
        %s423 = ssub.s32 25, %s422
        %p424 = scmp.lt.s32.totalorder %s423, 14
        %s425 = scalar_select %p424, %s423, 14
        %s426 = smul.u32 128, %s425
        %v428 = vld [vmem:[%s416] sm:$0xff]
        %v429 = vld [vmem:[%s416 + $0x8] sm:$0xff]
        %v430 = vld [vmem:[%s416 + $0x10] sm:$0xff]
        %v431 = vld [vmem:[%s416 + $0x18] sm:$0xff]
        %v432 = vld [vmem:[%s416 + $0x20] sm:$0xff]
        %v433 = vld [vmem:[%s416 + $0x28] sm:$0xff]
        %v434 = vld [vmem:[%s416 + $0x30] sm:$0xff]
        %v435 = vld [vmem:[%s416 + $0x38] sm:$0xff]
        %v436 = vld [vmem:[%s416 + $0x40] sm:$0xff]
        %v437 = vld [vmem:[%s416 + $0x48] sm:$0xff]
        %v438 = vld [vmem:[%s416 + $0x50] sm:$0xff]
        %v439 = vld [vmem:[%s416 + $0x58] sm:$0xff]
        %v440 = vld [vmem:[%s416 + $0x60] sm:$0xff]
        %v441 = vld [vmem:[%s416 + $0x68] sm:$0xff]
        %v442 = vpack.c.bf16 %v429, %v428
        %v443 = vpack.c.bf16 %v431, %v430
        %v444 = vpack.c.bf16 %v433, %v432
        %v445 = vpack.c.bf16 %v435, %v434
        %v446 = vpack.c.bf16 %v437, %v436
        %v447 = vpack.c.bf16 %v439, %v438
        %v448 = vpack.c.bf16 %v441, %v440
        %v449 = vld [vmem:[#allocation2] sm:$0xf]
        %v450 = vld [vmem:[#allocation2 + $0x4] sm:$0xf]
        %v451 = vld [vmem:[#allocation2 + $0x8] sm:$0xf]
        %v452 = vld [vmem:[#allocation2 + $0xc] sm:$0xf]
        %v453 = vld [vmem:[%s2] sm:$0x1]
        %v455 = vlaneseq
        %v456 = vshrl.u32 %v455, 7
        %v457 = vsub.s32 0, %v456
        %v458 = vrot.slane %v453, %v457
        %v464 = vunpack.c.l.b16 %v449
        %v465 = vunpack.c.l.b16 %v450
        %v466 = vunpack.c.l.b16 %v451
        %v467 = vunpack.c.l.b16 %v452
        %v468 = vpack.c.b16 %v465, %v464
        %v469 = vpack.c.b16 %v467, %v466
        %vm472 = vcmask 261120
        %v474 = vsel %vm472, %v442, 0
        %v477 = vsel %vm472, %v443, 0
        %v480 = vsel %vm472, %v444, 0
        %v483 = vsel %vm472, %v445, 0
        %v486 = vsel %vm472, %v446, 0
        %v489 = vsel %vm472, %v447, 0
        %v492 = vsel %vm472, %v448, 0
        %494 = vmatprep.subr.bf16.mxu0 0
        %495 = vmatpush1.bf16.msra.mxu0 0
        %496 = vmatprep.subr.bf16.mxu0 0
        %497 = vmatpush1.bf16.msra.mxu0 0
        %498 = vmatprep.subr.bf16.mxu0 0
        %499 = vmatpush1.bf16.msra.mxu0 0
        %500 = vmatprep.subr.bf16.mxu0 0
        %501 = vmatpush1.bf16.msra.mxu0 0
        %502 = vmatprep.subr.bf16.mxu0 0
        %503 = vmatpush1.bf16.msra.mxu0 0
        %504 = vmatprep.subr.bf16.mxu0 0
        %505 = vmatpush1.bf16.msra.mxu0 0
        %506 = vmatprep.subr.bf16.mxu0 0
        %507 = vmatpush1.bf16.msra.mxu0 %v469
        %508 = vmatprep.subr.bf16.mxu0 0
        %509 = vmatpush1.bf16.msra.mxu0 %v468
        %510 = vmatprep.subr.bf16.mxu0 0
        %511 = vmatpush2.bf16.msra.mxu0 0
        %512 = vmatprep.subr.bf16.mxu0 0
        %513 = vmatpush2.bf16.msra.mxu0 0
        %514 = vmatprep.subr.bf16.mxu0 0
        %515 = vmatpush2.bf16.msra.mxu0 0
        %516 = vmatprep.subr.bf16.mxu0 0
        %517 = vmatpush2.bf16.msra.mxu0 0
        %518 = vmatprep.subr.bf16.mxu0 0
        %519 = vmatpush2.bf16.msra.mxu0 0
        %520 = vmatprep.subr.bf16.mxu0 0
        %521 = vmatpush2.bf16.msra.mxu0 0
        %522 = vmatprep.subr.bf16.mxu0 0
        %523 = vmatpush2.bf16.msra.mxu0 0
        %524 = vmatprep.subr.bf16.mxu0 0
        %525 = vmatpush2.bf16.msra.mxu0 0
        %526 = vmatprep.mubr.bf16.mxu0 0
        %527 = vmatmul.mubr.bf16.gmra.mxu0 %v474
        %v528 = vpop.f32.mrf.mxu0
        %v529 = vadd.f32 %v458, %v528
        %v530 = vpop.f32.mrf.mxu0
        %v531 = vpop.f32.mrf.mxu0
        %v532 = vadd.f32 %v458, %v531
        %v533 = vpop.f32.mrf.mxu0
        %534 = vmatprep.mubr.bf16.mxu0 0
        %535 = vmatmul.mubr.bf16.gmra.mxu0 %v477
        %v536 = vpop.f32.mrf.mxu0
        %v537 = vadd.f32 %v458, %v536
        %v538 = vpop.f32.mrf.mxu0
        %v539 = vpop.f32.mrf.mxu0
        %v540 = vadd.f32 %v458, %v539
        %v541 = vpop.f32.mrf.mxu0
        %542 = vmatprep.mubr.bf16.mxu0 0
        %543 = vmatmul.mubr.bf16.gmra.mxu0 %v480
        %v544 = vpop.f32.mrf.mxu0
        %v545 = vadd.f32 %v458, %v544
        %v546 = vpop.f32.mrf.mxu0
        %v547 = vpop.f32.mrf.mxu0
        %v548 = vadd.f32 %v458, %v547
        %v549 = vpop.f32.mrf.mxu0
        %550 = vmatprep.mubr.bf16.mxu0 0
        %551 = vmatmul.mubr.bf16.gmra.mxu0 %v483
        %v552 = vpop.f32.mrf.mxu0
        %v553 = vadd.f32 %v458, %v552
        %v554 = vpop.f32.mrf.mxu0
        %v555 = vpop.f32.mrf.mxu0
        %v556 = vadd.f32 %v458, %v555
        %v557 = vpop.f32.mrf.mxu0
        %558 = vmatprep.mubr.bf16.mxu0 0
        %559 = vmatmul.mubr.bf16.gmra.mxu0 %v486
        %v560 = vpop.f32.mrf.mxu0
        %v561 = vadd.f32 %v458, %v560
        %v562 = vpop.f32.mrf.mxu0
        %v563 = vpop.f32.mrf.mxu0
        %v564 = vadd.f32 %v458, %v563
        %v565 = vpop.f32.mrf.mxu0
        %566 = vmatprep.mubr.bf16.mxu0 0
        %567 = vmatmul.mubr.bf16.gmra.mxu0 %v489
        %v568 = vpop.f32.mrf.mxu0
        %v569 = vadd.f32 %v458, %v568
        %v570 = vpop.f32.mrf.mxu0
        %v571 = vpop.f32.mrf.mxu0
        %v572 = vadd.f32 %v458, %v571
        %v573 = vpop.f32.mrf.mxu0
        %574 = vmatprep.mubr.bf16.mxu0 0
        %575 = vmatmul.mubr.bf16.gmra.mxu0 %v492
        %v576 = vpop.f32.mrf.mxu0
        %v577 = vadd.f32 %v458, %v576
        %v578 = vpop.f32.mrf.mxu0
        %v579 = vpop.f32.mrf.mxu0
        %v580 = vadd.f32 %v458, %v579
        %v581 = vpop.f32.mrf.mxu0
        %582 = vdwg.mxu0
        %v583 = vmul.f32 %v529, 0.5
        %v584 = vmul.f32 %v532, 0.5
        %v585 = vmul.f32 %v537, 0.5
        %v586 = vmul.f32 %v540, 0.5
        %v587 = vmul.f32 %v545, 0.5
        %v588 = vmul.f32 %v548, 0.5
        %v589 = vmul.f32 %v553, 0.5
        %v590 = vmul.f32 %v556, 0.5
        %v591 = vmul.f32 %v561, 0.5
        %v592 = vmul.f32 %v564, 0.5
        %v593 = vmul.f32 %v569, 0.5
        %v594 = vmul.f32 %v572, 0.5
        %v595 = vmul.f32 %v577, 0.5
        %v596 = vmul.f32 %v580, 0.5
        %v597 = vtanh.pop %v583
        %v598 = vtanh.pop %v584
        %v599 = vtanh.pop %v585
        %v600 = vtanh.pop %v586
        %v601 = vtanh.pop %v587
        %v602 = vtanh.pop %v588
        %v603 = vtanh.pop %v589
        %v604 = vtanh.pop %v590
        %v605 = vtanh.pop %v591
        %v606 = vtanh.pop %v592
        %v607 = vtanh.pop %v593
        %v608 = vtanh.pop %v594
        %v609 = vtanh.pop %v595
        %v610 = vtanh.pop %v596
        %v611 = vadd.f32 %v597, 1.0
        %v612 = vadd.f32 %v598, 1.0
        %v613 = vadd.f32 %v599, 1.0
        %v614 = vadd.f32 %v600, 1.0
        %v615 = vadd.f32 %v601, 1.0
        %v616 = vadd.f32 %v602, 1.0
        %v617 = vadd.f32 %v603, 1.0
        %v618 = vadd.f32 %v604, 1.0
        %v619 = vadd.f32 %v605, 1.0
        %v620 = vadd.f32 %v606, 1.0
        %v621 = vadd.f32 %v607, 1.0
        %v622 = vadd.f32 %v608, 1.0
        %v623 = vadd.f32 %v609, 1.0
        %v624 = vadd.f32 %v610, 1.0
        %v625 = vmul.f32 %v583, %v611
        %v626 = vmul.f32 %v584, %v612
        %v627 = vmul.f32 %v585, %v613
        %v628 = vmul.f32 %v586, %v614
        %v629 = vmul.f32 %v587, %v615
        %v630 = vmul.f32 %v588, %v616
        %v631 = vmul.f32 %v589, %v617
        %v632 = vmul.f32 %v590, %v618
        %v633 = vmul.f32 %v591, %v619
        %v634 = vmul.f32 %v592, %v620
        %v635 = vmul.f32 %v593, %v621
        %v636 = vmul.f32 %v594, %v622
        %v637 = vmul.f32 %v595, %v623
        %v638 = vmul.f32 %v596, %v624
        %v639 = vpack.c.bf16 %v626, %v625
        %v640 = vpack.c.bf16 %v628, %v627
        %v641 = vpack.c.bf16 %v630, %v629
        %v642 = vpack.c.bf16 %v632, %v631
        %v643 = vpack.c.bf16 %v634, %v633
        %v644 = vpack.c.bf16 %v636, %v635
        %v645 = vpack.c.bf16 %v638, %v637
        %v646 = vld [vmem:[%s3] sm:$0xf]
        %v647 = vld [vmem:[%s3 + $0x4] sm:$0xf]
        %v648 = vld [vmem:[%s3 + $0x8] sm:$0xf]
        %v649 = vld [vmem:[%s3 + $0xc] sm:$0xf]
        %v650 = vld [vmem:[%s3 + $0x10] sm:$0xf]
        %v651 = vld [vmem:[%s3 + $0x14] sm:$0xf]
        %v652 = vld [vmem:[%s3 + $0x18] sm:$0xf]
        %v653 = vld [vmem:[%s3 + $0x1c] sm:$0xf]
        %v654 = vld [vmem:[%s3 + $0x20] sm:$0xf]
        %v655 = vld [vmem:[%s3 + $0x24] sm:$0xf]
        %v656 = vld [vmem:[%s3 + $0x28] sm:$0xf]
        %v657 = vld [vmem:[%s3 + $0x2c] sm:$0xf]
        %v658 = vld [vmem:[%s3 + $0x30] sm:$0xf]
        %v659 = vld [vmem:[%s3 + $0x34] sm:$0xf]
        %v660 = vld [vmem:[%s3 + $0x38] sm:$0xf]
        %v661 = vld [vmem:[%s3 + $0x3c] sm:$0xf]
        %v662 = vld [vmem:[%s4] sm:$0x1]
        %v664 = vlaneseq
        %v665 = vshrl.u32 %v664, 7
        %v666 = vsub.s32 0, %v665
        %v667 = vrot.slane %v662, %v666
        %v685 = vunpack.c.l.b16 %v646
        %v686 = vunpack.c.l.b16 %v647
        %v687 = vunpack.c.l.b16 %v648
        %v688 = vunpack.c.l.b16 %v649
        %v689 = vunpack.c.l.b16 %v650
        %v690 = vunpack.c.l.b16 %v651
        %v691 = vunpack.c.l.b16 %v652
        %v692 = vunpack.c.l.b16 %v653
        %v693 = vunpack.c.l.b16 %v654
        %v694 = vunpack.c.l.b16 %v655
        %v695 = vunpack.c.l.b16 %v656
        %v696 = vunpack.c.l.b16 %v657
        %v697 = vunpack.c.l.b16 %v658
        %v698 = vunpack.c.l.b16 %v659
        %v699 = vunpack.c.l.b16 %v660
        %v700 = vunpack.c.l.b16 %v661
        %v701 = vpack.c.b16 %v686, %v685
        %v702 = vpack.c.b16 %v688, %v687
        %v703 = vpack.c.b16 %v690, %v689
        %v704 = vpack.c.b16 %v692, %v691
        %v705 = vpack.c.b16 %v694, %v693
        %v706 = vpack.c.b16 %v696, %v695
        %v707 = vpack.c.b16 %v698, %v697
        %v708 = vpack.c.b16 %v700, %v699
        %717 = vmatprep.subr.bf16.mxu0 0
        %718 = vmatpush1.bf16.msra.mxu0 %v708
        %719 = vmatprep.subr.bf16.mxu0 0
        %720 = vmatpush1.bf16.msra.mxu0 %v707
        %721 = vmatprep.subr.bf16.mxu0 0
        %722 = vmatpush1.bf16.msra.mxu0 %v706
        %723 = vmatprep.subr.bf16.mxu0 0
        %724 = vmatpush1.bf16.msra.mxu0 %v705
        %725 = vmatprep.subr.bf16.mxu0 0
        %726 = vmatpush1.bf16.msra.mxu0 %v704
        %727 = vmatprep.subr.bf16.mxu0 0
        %728 = vmatpush1.bf16.msra.mxu0 %v703
        %729 = vmatprep.subr.bf16.mxu0 0
        %730 = vmatpush1.bf16.msra.mxu0 %v702
        %731 = vmatprep.subr.bf16.mxu0 0
        %732 = vmatpush1.bf16.msra.mxu0 %v701
        %733 = vmatprep.subr.bf16.mxu0 0
        %734 = vmatpush2.bf16.msra.mxu0 0
        %735 = vmatprep.subr.bf16.mxu0 0
        %736 = vmatpush2.bf16.msra.mxu0 0
        %737 = vmatprep.subr.bf16.mxu0 0
        %738 = vmatpush2.bf16.msra.mxu0 0
        %739 = vmatprep.subr.bf16.mxu0 0
        %740 = vmatpush2.bf16.msra.mxu0 0
        %741 = vmatprep.subr.bf16.mxu0 0
        %742 = vmatpush2.bf16.msra.mxu0 0
        %743 = vmatprep.subr.bf16.mxu0 0
        %744 = vmatpush2.bf16.msra.mxu0 0
        %745 = vmatprep.subr.bf16.mxu0 0
        %746 = vmatpush2.bf16.msra.mxu0 0
        %747 = vmatprep.subr.bf16.mxu0 0
        %748 = vmatpush2.bf16.msra.mxu0 0
        %749 = vmatprep.mubr.bf16.mxu0 0
        %750 = vmatmul.mubr.bf16.gmra.mxu0 %v639
        %v751 = vpop.f32.mrf.mxu0
        %v752 = vadd.f32 %v667, %v751
        %v753 = vpop.f32.mrf.mxu0
        %v754 = vpop.f32.mrf.mxu0
        %v755 = vadd.f32 %v667, %v754
        %v756 = vpop.f32.mrf.mxu0
        %757 = vmatprep.mubr.bf16.mxu0 0
        %758 = vmatmul.mubr.bf16.gmra.mxu0 %v640
        %v759 = vpop.f32.mrf.mxu0
        %v760 = vadd.f32 %v667, %v759
        %v761 = vpop.f32.mrf.mxu0
        %v762 = vpop.f32.mrf.mxu0
        %v763 = vadd.f32 %v667, %v762
        %v764 = vpop.f32.mrf.mxu0
        %765 = vmatprep.mubr.bf16.mxu0 0
        %766 = vmatmul.mubr.bf16.gmra.mxu0 %v641
        %v767 = vpop.f32.mrf.mxu0
        %v768 = vadd.f32 %v667, %v767
        %v769 = vpop.f32.mrf.mxu0
        %v770 = vpop.f32.mrf.mxu0
        %v771 = vadd.f32 %v667, %v770
        %v772 = vpop.f32.mrf.mxu0
        %773 = vmatprep.mubr.bf16.mxu0 0
        %774 = vmatmul.mubr.bf16.gmra.mxu0 %v642
        %v775 = vpop.f32.mrf.mxu0
        %v776 = vadd.f32 %v667, %v775
        %v777 = vpop.f32.mrf.mxu0
        %v778 = vpop.f32.mrf.mxu0
        %v779 = vadd.f32 %v667, %v778
        %v780 = vpop.f32.mrf.mxu0
        %781 = vmatprep.mubr.bf16.mxu0 0
        %782 = vmatmul.mubr.bf16.gmra.mxu0 %v643
        %v783 = vpop.f32.mrf.mxu0
        %v784 = vadd.f32 %v667, %v783
        %v785 = vpop.f32.mrf.mxu0
        %v786 = vpop.f32.mrf.mxu0
        %v787 = vadd.f32 %v667, %v786
        %v788 = vpop.f32.mrf.mxu0
        %789 = vmatprep.mubr.bf16.mxu0 0
        %790 = vmatmul.mubr.bf16.gmra.mxu0 %v644
        %v791 = vpop.f32.mrf.mxu0
        %v792 = vadd.f32 %v667, %v791
        %v793 = vpop.f32.mrf.mxu0
        %v794 = vpop.f32.mrf.mxu0
        %v795 = vadd.f32 %v667, %v794
        %v796 = vpop.f32.mrf.mxu0
        %797 = vmatprep.mubr.bf16.mxu0 0
        %798 = vmatmul.mubr.bf16.gmra.mxu0 %v645
        %v799 = vpop.f32.mrf.mxu0
        %v800 = vadd.f32 %v667, %v799
        %v801 = vpop.f32.mrf.mxu0
        %v802 = vpop.f32.mrf.mxu0
        %v803 = vadd.f32 %v667, %v802
        %v804 = vpop.f32.mrf.mxu0
        %805 = vdwg.mxu0
        %v806 = vmul.f32 %v752, 0.5
        %v807 = vmul.f32 %v755, 0.5
        %v808 = vmul.f32 %v760, 0.5
        %v809 = vmul.f32 %v763, 0.5
        %v810 = vmul.f32 %v768, 0.5
        %v811 = vmul.f32 %v771, 0.5
        %v812 = vmul.f32 %v776, 0.5
        %v813 = vmul.f32 %v779, 0.5
        %v814 = vmul.f32 %v784, 0.5
        %v815 = vmul.f32 %v787, 0.5
        %v816 = vmul.f32 %v792, 0.5
        %v817 = vmul.f32 %v795, 0.5
        %v818 = vmul.f32 %v800, 0.5
        %v819 = vmul.f32 %v803, 0.5
        %v820 = vtanh.pop %v806
        %v821 = vtanh.pop %v807
        %v822 = vtanh.pop %v808
        %v823 = vtanh.pop %v809
        %v824 = vtanh.pop %v810
        %v825 = vtanh.pop %v811
        %v826 = vtanh.pop %v812
        %v827 = vtanh.pop %v813
        %v828 = vtanh.pop %v814
        %v829 = vtanh.pop %v815
        %v830 = vtanh.pop %v816
        %v831 = vtanh.pop %v817
        %v832 = vtanh.pop %v818
        %v833 = vtanh.pop %v819
        %v834 = vadd.f32 %v820, 1.0
        %v835 = vadd.f32 %v821, 1.0
        %v836 = vadd.f32 %v822, 1.0
        %v837 = vadd.f32 %v823, 1.0
        %v838 = vadd.f32 %v824, 1.0
        %v839 = vadd.f32 %v825, 1.0
        %v840 = vadd.f32 %v826, 1.0
        %v841 = vadd.f32 %v827, 1.0
        %v842 = vadd.f32 %v828, 1.0
        %v843 = vadd.f32 %v829, 1.0
        %v844 = vadd.f32 %v830, 1.0
        %v845 = vadd.f32 %v831, 1.0
        %v846 = vadd.f32 %v832, 1.0
        %v847 = vadd.f32 %v833, 1.0
        %v848 = vmul.f32 %v806, %v834
        %v849 = vmul.f32 %v807, %v835
        %v850 = vmul.f32 %v808, %v836
        %v851 = vmul.f32 %v809, %v837
        %v852 = vmul.f32 %v810, %v838
        %v853 = vmul.f32 %v811, %v839
        %v854 = vmul.f32 %v812, %v840
        %v855 = vmul.f32 %v813, %v841
        %v856 = vmul.f32 %v814, %v842
        %v857 = vmul.f32 %v815, %v843
        %v858 = vmul.f32 %v816, %v844
        %v859 = vmul.f32 %v817, %v845
        %v860 = vmul.f32 %v818, %v846
        %v861 = vmul.f32 %v819, %v847
        %v862 = vpack.c.bf16 %v849, %v848
        %v863 = vpack.c.bf16 %v851, %v850
        %v864 = vpack.c.bf16 %v853, %v852
        %v865 = vpack.c.bf16 %v855, %v854
        %v866 = vpack.c.bf16 %v857, %v856
        %v867 = vpack.c.bf16 %v859, %v858
        %v868 = vpack.c.bf16 %v861, %v860
        %v869 = vld [vmem:[%s5] sm:$0xf]
        %v870 = vld [vmem:[%s5 + $0x4] sm:$0xf]
        %v871 = vld [vmem:[%s5 + $0x8] sm:$0xf]
        %v872 = vld [vmem:[%s5 + $0xc] sm:$0xf]
        %v873 = vld [vmem:[%s5 + $0x10] sm:$0xf]
        %v874 = vld [vmem:[%s5 + $0x14] sm:$0xf]
        %v875 = vld [vmem:[%s5 + $0x18] sm:$0xf]
        %v876 = vld [vmem:[%s5 + $0x1c] sm:$0xf]
        %v877 = vld [vmem:[%s5 + $0x20] sm:$0xf]
        %v878 = vld [vmem:[%s5 + $0x24] sm:$0xf]
        %v879 = vld [vmem:[%s5 + $0x28] sm:$0xf]
        %v880 = vld [vmem:[%s5 + $0x2c] sm:$0xf]
        %v881 = vld [vmem:[%s5 + $0x30] sm:$0xf]
        %v882 = vld [vmem:[%s5 + $0x34] sm:$0xf]
        %v883 = vld [vmem:[%s5 + $0x38] sm:$0xf]
        %v884 = vld [vmem:[%s5 + $0x3c] sm:$0xf]
        %v885 = vld [vmem:[%s6] sm:$0x1]
        %v887 = vlaneseq
        %v888 = vshrl.u32 %v887, 7
        %v889 = vsub.s32 0, %v888
        %v890 = vrot.slane %v885, %v889
        %v908 = vunpack.c.l.b16 %v869
        %v909 = vunpack.c.l.b16 %v870
        %v910 = vunpack.c.l.b16 %v871
        %v911 = vunpack.c.l.b16 %v872
        %v912 = vunpack.c.l.b16 %v873
        %v913 = vunpack.c.l.b16 %v874
        %v914 = vunpack.c.l.b16 %v875
        %v915 = vunpack.c.l.b16 %v876
        %v916 = vunpack.c.l.b16 %v877
        %v917 = vunpack.c.l.b16 %v878
        %v918 = vunpack.c.l.b16 %v879
        %v919 = vunpack.c.l.b16 %v880
        %v920 = vunpack.c.l.b16 %v881
        %v921 = vunpack.c.l.b16 %v882
        %v922 = vunpack.c.l.b16 %v883
        %v923 = vunpack.c.l.b16 %v884
        %v924 = vpack.c.b16 %v909, %v908
        %v925 = vpack.c.b16 %v911, %v910
        %v926 = vpack.c.b16 %v913, %v912
        %v927 = vpack.c.b16 %v915, %v914
        %v928 = vpack.c.b16 %v917, %v916
        %v929 = vpack.c.b16 %v919, %v918
        %v930 = vpack.c.b16 %v921, %v920
        %v931 = vpack.c.b16 %v923, %v922
        %940 = vmatprep.subr.bf16.mxu0 0
        %941 = vmatpush1.bf16.msra.mxu0 %v931
        %942 = vmatprep.subr.bf16.mxu0 0
        %943 = vmatpush1.bf16.msra.mxu0 %v930
        %944 = vmatprep.subr.bf16.mxu0 0
        %945 = vmatpush1.bf16.msra.mxu0 %v929
        %946 = vmatprep.subr.bf16.mxu0 0
        %947 = vmatpush1.bf16.msra.mxu0 %v928
        %948 = vmatprep.subr.bf16.mxu0 0
        %949 = vmatpush1.bf16.msra.mxu0 %v927
        %950 = vmatprep.subr.bf16.mxu0 0
        %951 = vmatpush1.bf16.msra.mxu0 %v926
        %952 = vmatprep.subr.bf16.mxu0 0
        %953 = vmatpush1.bf16.msra.mxu0 %v925
        %954 = vmatprep.subr.bf16.mxu0 0
        %955 = vmatpush1.bf16.msra.mxu0 %v924
        %956 = vmatprep.subr.bf16.mxu0 0
        %957 = vmatpush2.bf16.msra.mxu0 0
        %958 = vmatprep.subr.bf16.mxu0 0
        %959 = vmatpush2.bf16.msra.mxu0 0
        %960 = vmatprep.subr.bf16.mxu0 0
        %961 = vmatpush2.bf16.msra.mxu0 0
        %962 = vmatprep.subr.bf16.mxu0 0
        %963 = vmatpush2.bf16.msra.mxu0 0
        %964 = vmatprep.subr.bf16.mxu0 0
        %965 = vmatpush2.bf16.msra.mxu0 0
        %966 = vmatprep.subr.bf16.mxu0 0
        %967 = vmatpush2.bf16.msra.mxu0 0
        %968 = vmatprep.subr.bf16.mxu0 0
        %969 = vmatpush2.bf16.msra.mxu0 0
        %970 = vmatprep.subr.bf16.mxu0 0
        %971 = vmatpush2.bf16.msra.mxu0 0
        %972 = vmatprep.mubr.bf16.mxu0 0
        %973 = vmatmul.mubr.bf16.gmra.mxu0 %v862
        %v974 = vpop.f32.mrf.mxu0
        %v975 = vadd.f32 %v890, %v974
        %v976 = vpop.f32.mrf.mxu0
        %v977 = vpop.f32.mrf.mxu0
        %v978 = vadd.f32 %v890, %v977
        %v979 = vpop.f32.mrf.mxu0
        %980 = vmatprep.mubr.bf16.mxu0 0
        %981 = vmatmul.mubr.bf16.gmra.mxu0 %v863
        %v982 = vpop.f32.mrf.mxu0
        %v983 = vadd.f32 %v890, %v982
        %v984 = vpop.f32.mrf.mxu0
        %v985 = vpop.f32.mrf.mxu0
        %v986 = vadd.f32 %v890, %v985
        %v987 = vpop.f32.mrf.mxu0
        %988 = vmatprep.mubr.bf16.mxu0 0
        %989 = vmatmul.mubr.bf16.gmra.mxu0 %v864
        %v990 = vpop.f32.mrf.mxu0
        %v991 = vadd.f32 %v890, %v990
        %v992 = vpop.f32.mrf.mxu0
        %v993 = vpop.f32.mrf.mxu0
        %v994 = vadd.f32 %v890, %v993
        %v995 = vpop.f32.mrf.mxu0
        %996 = vmatprep.mubr.bf16.mxu0 0
        %997 = vmatmul.mubr.bf16.gmra.mxu0 %v865
        %v998 = vpop.f32.mrf.mxu0
        %v999 = vadd.f32 %v890, %v998
        %v1000 = vpop.f32.mrf.mxu0
        %v1001 = vpop.f32.mrf.mxu0
        %v1002 = vadd.f32 %v890, %v1001
        %v1003 = vpop.f32.mrf.mxu0
        %1004 = vmatprep.mubr.bf16.mxu0 0
        %1005 = vmatmul.mubr.bf16.gmra.mxu0 %v866
        %v1006 = vpop.f32.mrf.mxu0
        %v1007 = vadd.f32 %v890, %v1006
        %v1008 = vpop.f32.mrf.mxu0
        %v1009 = vpop.f32.mrf.mxu0
        %v1010 = vadd.f32 %v890, %v1009
        %v1011 = vpop.f32.mrf.mxu0
        %1012 = vmatprep.mubr.bf16.mxu0 0
        %1013 = vmatmul.mubr.bf16.gmra.mxu0 %v867
        %v1014 = vpop.f32.mrf.mxu0
        %v1015 = vadd.f32 %v890, %v1014
        %v1016 = vpop.f32.mrf.mxu0
        %v1017 = vpop.f32.mrf.mxu0
        %v1018 = vadd.f32 %v890, %v1017
        %v1019 = vpop.f32.mrf.mxu0
        %1020 = vmatprep.mubr.bf16.mxu0 0
        %1021 = vmatmul.mubr.bf16.gmra.mxu0 %v868
        %v1022 = vpop.f32.mrf.mxu0
        %v1023 = vadd.f32 %v890, %v1022
        %v1024 = vpop.f32.mrf.mxu0
        %v1025 = vpop.f32.mrf.mxu0
        %v1026 = vadd.f32 %v890, %v1025
        %v1027 = vpop.f32.mrf.mxu0
        %1028 = vdwg.mxu0
        %v1029 = vmul.f32 %v975, 0.5
        %v1030 = vmul.f32 %v978, 0.5
        %v1031 = vmul.f32 %v983, 0.5
        %v1032 = vmul.f32 %v986, 0.5
        %v1033 = vmul.f32 %v991, 0.5
        %v1034 = vmul.f32 %v994, 0.5
        %v1035 = vmul.f32 %v999, 0.5
        %v1036 = vmul.f32 %v1002, 0.5
        %v1037 = vmul.f32 %v1007, 0.5
        %v1038 = vmul.f32 %v1010, 0.5
        %v1039 = vmul.f32 %v1015, 0.5
        %v1040 = vmul.f32 %v1018, 0.5
        %v1041 = vmul.f32 %v1023, 0.5
        %v1042 = vmul.f32 %v1026, 0.5
        %v1043 = vtanh.pop %v1029
        %v1044 = vtanh.pop %v1030
        %v1045 = vtanh.pop %v1031
        %v1046 = vtanh.pop %v1032
        %v1047 = vtanh.pop %v1033
        %v1048 = vtanh.pop %v1034
        %v1049 = vtanh.pop %v1035
        %v1050 = vtanh.pop %v1036
        %v1051 = vtanh.pop %v1037
        %v1052 = vtanh.pop %v1038
        %v1053 = vtanh.pop %v1039
        %v1054 = vtanh.pop %v1040
        %v1055 = vtanh.pop %v1041
        %v1056 = vtanh.pop %v1042
        %v1057 = vadd.f32 %v1043, 1.0
        %v1058 = vadd.f32 %v1044, 1.0
        %v1059 = vadd.f32 %v1045, 1.0
        %v1060 = vadd.f32 %v1046, 1.0
        %v1061 = vadd.f32 %v1047, 1.0
        %v1062 = vadd.f32 %v1048, 1.0
        %v1063 = vadd.f32 %v1049, 1.0
        %v1064 = vadd.f32 %v1050, 1.0
        %v1065 = vadd.f32 %v1051, 1.0
        %v1066 = vadd.f32 %v1052, 1.0
        %v1067 = vadd.f32 %v1053, 1.0
        %v1068 = vadd.f32 %v1054, 1.0
        %v1069 = vadd.f32 %v1055, 1.0
        %v1070 = vadd.f32 %v1056, 1.0
        %v1071 = vmul.f32 %v1029, %v1057
        %v1072 = vmul.f32 %v1030, %v1058
        %v1073 = vmul.f32 %v1031, %v1059
        %v1074 = vmul.f32 %v1032, %v1060
        %v1075 = vmul.f32 %v1033, %v1061
        %v1076 = vmul.f32 %v1034, %v1062
        %v1077 = vmul.f32 %v1035, %v1063
        %v1078 = vmul.f32 %v1036, %v1064
        %v1079 = vmul.f32 %v1037, %v1065
        %v1080 = vmul.f32 %v1038, %v1066
        %v1081 = vmul.f32 %v1039, %v1067
        %v1082 = vmul.f32 %v1040, %v1068
        %v1083 = vmul.f32 %v1041, %v1069
        %v1084 = vmul.f32 %v1042, %v1070
        %v1085 = vpack.c.bf16 %v1072, %v1071
        %v1086 = vpack.c.bf16 %v1074, %v1073
        %v1087 = vpack.c.bf16 %v1076, %v1075
        %v1088 = vpack.c.bf16 %v1078, %v1077
        %v1089 = vpack.c.bf16 %v1080, %v1079
        %v1090 = vpack.c.bf16 %v1082, %v1081
        %v1091 = vpack.c.bf16 %v1084, %v1083
        %v1092 = vld [vmem:[%s7] sm:$0xf]
        %v1093 = vld [vmem:[%s7 + $0x4] sm:$0xf]
        %v1094 = vld [vmem:[%s7 + $0x8] sm:$0xf]
        %v1095 = vld [vmem:[%s7 + $0xc] sm:$0xf]
        %v1096 = vld [vmem:[%s7 + $0x10] sm:$0xf]
        %v1097 = vld [vmem:[%s7 + $0x14] sm:$0xf]
        %v1098 = vld [vmem:[%s7 + $0x18] sm:$0xf]
        %v1099 = vld [vmem:[%s7 + $0x1c] sm:$0xf]
        %v1100 = vld [vmem:[%s7 + $0x20] sm:$0xf]
        %v1101 = vld [vmem:[%s7 + $0x24] sm:$0xf]
        %v1102 = vld [vmem:[%s7 + $0x28] sm:$0xf]
        %v1103 = vld [vmem:[%s7 + $0x2c] sm:$0xf]
        %v1104 = vld [vmem:[%s7 + $0x30] sm:$0xf]
        %v1105 = vld [vmem:[%s7 + $0x34] sm:$0xf]
        %v1106 = vld [vmem:[%s7 + $0x38] sm:$0xf]
        %v1107 = vld [vmem:[%s7 + $0x3c] sm:$0xf]
        %v1108 = vld [vmem:[%s8] sm:$0x1]
        %v1110 = vlaneseq
        %v1111 = vshrl.u32 %v1110, 7
        %v1112 = vsub.s32 0, %v1111
        %v1113 = vrot.slane %v1108, %v1112
        %v1131 = vunpack.c.l.b16 %v1092
        %v1132 = vunpack.c.l.b16 %v1093
        %v1133 = vunpack.c.l.b16 %v1094
        %v1134 = vunpack.c.l.b16 %v1095
        %v1135 = vunpack.c.l.b16 %v1096
        %v1136 = vunpack.c.l.b16 %v1097
        %v1137 = vunpack.c.l.b16 %v1098
        %v1138 = vunpack.c.l.b16 %v1099
        %v1139 = vunpack.c.l.b16 %v1100
        %v1140 = vunpack.c.l.b16 %v1101
        %v1141 = vunpack.c.l.b16 %v1102
        %v1142 = vunpack.c.l.b16 %v1103
        %v1143 = vunpack.c.l.b16 %v1104
        %v1144 = vunpack.c.l.b16 %v1105
        %v1145 = vunpack.c.l.b16 %v1106
        %v1146 = vunpack.c.l.b16 %v1107
        %v1147 = vpack.c.b16 %v1132, %v1131
        %v1148 = vpack.c.b16 %v1134, %v1133
        %v1149 = vpack.c.b16 %v1136, %v1135
        %v1150 = vpack.c.b16 %v1138, %v1137
        %v1151 = vpack.c.b16 %v1140, %v1139
        %v1152 = vpack.c.b16 %v1142, %v1141
        %v1153 = vpack.c.b16 %v1144, %v1143
        %v1154 = vpack.c.b16 %v1146, %v1145
        %1163 = vmatprep.subr.bf16.mxu0 0
        %1164 = vmatpush1.bf16.msra.mxu0 %v1154
        %1165 = vmatprep.subr.bf16.mxu0 0
        %1166 = vmatpush1.bf16.msra.mxu0 %v1153
        %1167 = vmatprep.subr.bf16.mxu0 0
        %1168 = vmatpush1.bf16.msra.mxu0 %v1152
        %1169 = vmatprep.subr.bf16.mxu0 0
        %1170 = vmatpush1.bf16.msra.mxu0 %v1151
        %1171 = vmatprep.subr.bf16.mxu0 0
        %1172 = vmatpush1.bf16.msra.mxu0 %v1150
        %1173 = vmatprep.subr.bf16.mxu0 0
        %1174 = vmatpush1.bf16.msra.mxu0 %v1149
        %1175 = vmatprep.subr.bf16.mxu0 0
        %1176 = vmatpush1.bf16.msra.mxu0 %v1148
        %1177 = vmatprep.subr.bf16.mxu0 0
        %1178 = vmatpush1.bf16.msra.mxu0 %v1147
        %1179 = vmatprep.subr.bf16.mxu0 0
        %1180 = vmatpush2.bf16.msra.mxu0 0
        %1181 = vmatprep.subr.bf16.mxu0 0
        %1182 = vmatpush2.bf16.msra.mxu0 0
        %1183 = vmatprep.subr.bf16.mxu0 0
        %1184 = vmatpush2.bf16.msra.mxu0 0
        %1185 = vmatprep.subr.bf16.mxu0 0
        %1186 = vmatpush2.bf16.msra.mxu0 0
        %1187 = vmatprep.subr.bf16.mxu0 0
        %1188 = vmatpush2.bf16.msra.mxu0 0
        %1189 = vmatprep.subr.bf16.mxu0 0
        %1190 = vmatpush2.bf16.msra.mxu0 0
        %1191 = vmatprep.subr.bf16.mxu0 0
        %1192 = vmatpush2.bf16.msra.mxu0 0
        %1193 = vmatprep.subr.bf16.mxu0 0
        %1194 = vmatpush2.bf16.msra.mxu0 0
        %1195 = vmatprep.mubr.bf16.mxu0 0
        %1196 = vmatmul.mubr.bf16.gmra.mxu0 %v1085
        %v1197 = vpop.f32.mrf.mxu0
        %v1198 = vadd.f32 %v1113, %v1197
        %v1199 = vpop.f32.mrf.mxu0
        %v1200 = vpop.f32.mrf.mxu0
        %v1201 = vadd.f32 %v1113, %v1200
        %v1202 = vpop.f32.mrf.mxu0
        %1203 = vmatprep.mubr.bf16.mxu0 0
        %1204 = vmatmul.mubr.bf16.gmra.mxu0 %v1086
        %v1205 = vpop.f32.mrf.mxu0
        %v1206 = vadd.f32 %v1113, %v1205
        %v1207 = vpop.f32.mrf.mxu0
        %v1208 = vpop.f32.mrf.mxu0
        %v1209 = vadd.f32 %v1113, %v1208
        %v1210 = vpop.f32.mrf.mxu0
        %1211 = vmatprep.mubr.bf16.mxu0 0
        %1212 = vmatmul.mubr.bf16.gmra.mxu0 %v1087
        %v1213 = vpop.f32.mrf.mxu0
        %v1214 = vadd.f32 %v1113, %v1213
        %v1215 = vpop.f32.mrf.mxu0
        %v1216 = vpop.f32.mrf.mxu0
        %v1217 = vadd.f32 %v1113, %v1216
        %v1218 = vpop.f32.mrf.mxu0
        %1219 = vmatprep.mubr.bf16.mxu0 0
        %1220 = vmatmul.mubr.bf16.gmra.mxu0 %v1088
        %v1221 = vpop.f32.mrf.mxu0
        %v1222 = vadd.f32 %v1113, %v1221
        %v1223 = vpop.f32.mrf.mxu0
        %v1224 = vpop.f32.mrf.mxu0
        %v1225 = vadd.f32 %v1113, %v1224
        %v1226 = vpop.f32.mrf.mxu0
        %1227 = vmatprep.mubr.bf16.mxu0 0
        %1228 = vmatmul.mubr.bf16.gmra.mxu0 %v1089
        %v1229 = vpop.f32.mrf.mxu0
        %v1230 = vadd.f32 %v1113, %v1229
        %v1231 = vpop.f32.mrf.mxu0
        %v1232 = vpop.f32.mrf.mxu0
        %v1233 = vadd.f32 %v1113, %v1232
        %v1234 = vpop.f32.mrf.mxu0
        %1235 = vmatprep.mubr.bf16.mxu0 0
        %1236 = vmatmul.mubr.bf16.gmra.mxu0 %v1090
        %v1237 = vpop.f32.mrf.mxu0
        %v1238 = vadd.f32 %v1113, %v1237
        %v1239 = vpop.f32.mrf.mxu0
        %v1240 = vpop.f32.mrf.mxu0
        %v1241 = vadd.f32 %v1113, %v1240
        %v1242 = vpop.f32.mrf.mxu0
        %1243 = vmatprep.mubr.bf16.mxu0 0
        %1244 = vmatmul.mubr.bf16.gmra.mxu0 %v1091
        %v1245 = vpop.f32.mrf.mxu0
        %v1246 = vadd.f32 %v1113, %v1245
        %v1247 = vpop.f32.mrf.mxu0
        %v1248 = vpop.f32.mrf.mxu0
        %v1249 = vadd.f32 %v1113, %v1248
        %v1250 = vpop.f32.mrf.mxu0
        %1251 = vdwg.mxu0
        %v1252 = vmul.f32 %v1198, 0.5
        %v1253 = vmul.f32 %v1201, 0.5
        %v1254 = vmul.f32 %v1206, 0.5
        %v1255 = vmul.f32 %v1209, 0.5
        %v1256 = vmul.f32 %v1214, 0.5
        %v1257 = vmul.f32 %v1217, 0.5
        %v1258 = vmul.f32 %v1222, 0.5
        %v1259 = vmul.f32 %v1225, 0.5
        %v1260 = vmul.f32 %v1230, 0.5
        %v1261 = vmul.f32 %v1233, 0.5
        %v1262 = vmul.f32 %v1238, 0.5
        %v1263 = vmul.f32 %v1241, 0.5
        %v1264 = vmul.f32 %v1246, 0.5
        %v1265 = vmul.f32 %v1249, 0.5
        %v1266 = vtanh.pop %v1252
        %v1267 = vtanh.pop %v1253
        %v1268 = vtanh.pop %v1254
        %v1269 = vtanh.pop %v1255
        %v1270 = vtanh.pop %v1256
        %v1271 = vtanh.pop %v1257
        %v1272 = vtanh.pop %v1258
        %v1273 = vtanh.pop %v1259
        %v1274 = vtanh.pop %v1260
        %v1275 = vtanh.pop %v1261
        %v1276 = vtanh.pop %v1262
        %v1277 = vtanh.pop %v1263
        %v1278 = vtanh.pop %v1264
        %v1279 = vtanh.pop %v1265
        %v1280 = vadd.f32 %v1266, 1.0
        %v1281 = vadd.f32 %v1267, 1.0
        %v1282 = vadd.f32 %v1268, 1.0
        %v1283 = vadd.f32 %v1269, 1.0
        %v1284 = vadd.f32 %v1270, 1.0
        %v1285 = vadd.f32 %v1271, 1.0
        %v1286 = vadd.f32 %v1272, 1.0
        %v1287 = vadd.f32 %v1273, 1.0
        %v1288 = vadd.f32 %v1274, 1.0
        %v1289 = vadd.f32 %v1275, 1.0
        %v1290 = vadd.f32 %v1276, 1.0
        %v1291 = vadd.f32 %v1277, 1.0
        %v1292 = vadd.f32 %v1278, 1.0
        %v1293 = vadd.f32 %v1279, 1.0
        %v1294 = vmul.f32 %v1252, %v1280
        %v1295 = vmul.f32 %v1253, %v1281
        %v1296 = vmul.f32 %v1254, %v1282
        %v1297 = vmul.f32 %v1255, %v1283
        %v1298 = vmul.f32 %v1256, %v1284
        %v1299 = vmul.f32 %v1257, %v1285
        %v1300 = vmul.f32 %v1258, %v1286
        %v1301 = vmul.f32 %v1259, %v1287
        %v1302 = vmul.f32 %v1260, %v1288
        %v1303 = vmul.f32 %v1261, %v1289
        %v1304 = vmul.f32 %v1262, %v1290
        %v1305 = vmul.f32 %v1263, %v1291
        %v1306 = vmul.f32 %v1264, %v1292
        %v1307 = vmul.f32 %v1265, %v1293
        %v1308 = vpack.c.bf16 %v1295, %v1294
        %v1309 = vpack.c.bf16 %v1297, %v1296
        %v1310 = vpack.c.bf16 %v1299, %v1298
        %v1311 = vpack.c.bf16 %v1301, %v1300
        %v1312 = vpack.c.bf16 %v1303, %v1302
        %v1313 = vpack.c.bf16 %v1305, %v1304
        %v1314 = vpack.c.bf16 %v1307, %v1306
        %v1315 = vld [vmem:[%s9] sm:$0xf]
        %v1316 = vld [vmem:[%s9 + $0x4] sm:$0xf]
        %v1317 = vld [vmem:[%s9 + $0x8] sm:$0xf]
        %v1318 = vld [vmem:[%s9 + $0xc] sm:$0xf]
        %v1319 = vld [vmem:[%s9 + $0x10] sm:$0xf]
        %v1320 = vld [vmem:[%s9 + $0x14] sm:$0xf]
        %v1321 = vld [vmem:[%s9 + $0x18] sm:$0xf]
        %v1322 = vld [vmem:[%s9 + $0x1c] sm:$0xf]
        %v1323 = vld [vmem:[%s9 + $0x20] sm:$0xf]
        %v1324 = vld [vmem:[%s9 + $0x24] sm:$0xf]
        %v1325 = vld [vmem:[%s9 + $0x28] sm:$0xf]
        %v1326 = vld [vmem:[%s9 + $0x2c] sm:$0xf]
        %v1327 = vld [vmem:[%s9 + $0x30] sm:$0xf]
        %v1328 = vld [vmem:[%s9 + $0x34] sm:$0xf]
        %v1329 = vld [vmem:[%s9 + $0x38] sm:$0xf]
        %v1330 = vld [vmem:[%s9 + $0x3c] sm:$0xf]
        %v1331 = vld [vmem:[%s10] sm:$0x1]
        %v1333 = vlaneseq
        %v1334 = vshrl.u32 %v1333, 7
        %v1335 = vsub.s32 0, %v1334
        %v1336 = vrot.slane %v1331, %v1335
        %v1354 = vunpack.c.l.b16 %v1315
        %v1355 = vunpack.c.l.b16 %v1316
        %v1356 = vunpack.c.l.b16 %v1317
        %v1357 = vunpack.c.l.b16 %v1318
        %v1358 = vunpack.c.l.b16 %v1319
        %v1359 = vunpack.c.l.b16 %v1320
        %v1360 = vunpack.c.l.b16 %v1321
        %v1361 = vunpack.c.l.b16 %v1322
        %v1362 = vunpack.c.l.b16 %v1323
        %v1363 = vunpack.c.l.b16 %v1324
        %v1364 = vunpack.c.l.b16 %v1325
        %v1365 = vunpack.c.l.b16 %v1326
        %v1366 = vunpack.c.l.b16 %v1327
        %v1367 = vunpack.c.l.b16 %v1328
        %v1368 = vunpack.c.l.b16 %v1329
        %v1369 = vunpack.c.l.b16 %v1330
        %v1370 = vpack.c.b16 %v1355, %v1354
        %v1371 = vpack.c.b16 %v1357, %v1356
        %v1372 = vpack.c.b16 %v1359, %v1358
        %v1373 = vpack.c.b16 %v1361, %v1360
        %v1374 = vpack.c.b16 %v1363, %v1362
        %v1375 = vpack.c.b16 %v1365, %v1364
        %v1376 = vpack.c.b16 %v1367, %v1366
        %v1377 = vpack.c.b16 %v1369, %v1368
        %1386 = vmatprep.subr.bf16.mxu0 0
        %1387 = vmatpush1.bf16.msra.mxu0 %v1377
        %1388 = vmatprep.subr.bf16.mxu0 0
        %1389 = vmatpush1.bf16.msra.mxu0 %v1376
        %1390 = vmatprep.subr.bf16.mxu0 0
        %1391 = vmatpush1.bf16.msra.mxu0 %v1375
        %1392 = vmatprep.subr.bf16.mxu0 0
        %1393 = vmatpush1.bf16.msra.mxu0 %v1374
        %1394 = vmatprep.subr.bf16.mxu0 0
        %1395 = vmatpush1.bf16.msra.mxu0 %v1373
        %1396 = vmatprep.subr.bf16.mxu0 0
        %1397 = vmatpush1.bf16.msra.mxu0 %v1372
        %1398 = vmatprep.subr.bf16.mxu0 0
        %1399 = vmatpush1.bf16.msra.mxu0 %v1371
        %1400 = vmatprep.subr.bf16.mxu0 0
        %1401 = vmatpush1.bf16.msra.mxu0 %v1370
        %1402 = vmatprep.subr.bf16.mxu0 0
        %1403 = vmatpush2.bf16.msra.mxu0 0
        %1404 = vmatprep.subr.bf16.mxu0 0
        %1405 = vmatpush2.bf16.msra.mxu0 0
        %1406 = vmatprep.subr.bf16.mxu0 0
        %1407 = vmatpush2.bf16.msra.mxu0 0
        %1408 = vmatprep.subr.bf16.mxu0 0
        %1409 = vmatpush2.bf16.msra.mxu0 0
        %1410 = vmatprep.subr.bf16.mxu0 0
        %1411 = vmatpush2.bf16.msra.mxu0 0
        %1412 = vmatprep.subr.bf16.mxu0 0
        %1413 = vmatpush2.bf16.msra.mxu0 0
        %1414 = vmatprep.subr.bf16.mxu0 0
        %1415 = vmatpush2.bf16.msra.mxu0 0
        %1416 = vmatprep.subr.bf16.mxu0 0
        %1417 = vmatpush2.bf16.msra.mxu0 0
        %1418 = vmatprep.mubr.bf16.mxu0 0
        %1419 = vmatmul.mubr.bf16.gmra.mxu0 %v1308
        %v1420 = vpop.f32.mrf.mxu0
        %v1421 = vadd.f32 %v1336, %v1420
        %v1422 = vpop.f32.mrf.mxu0
        %v1423 = vpop.f32.mrf.mxu0
        %v1424 = vadd.f32 %v1336, %v1423
        %v1425 = vpop.f32.mrf.mxu0
        %1426 = vmatprep.mubr.bf16.mxu0 0
        %1427 = vmatmul.mubr.bf16.gmra.mxu0 %v1309
        %v1428 = vpop.f32.mrf.mxu0
        %v1429 = vadd.f32 %v1336, %v1428
        %v1430 = vpop.f32.mrf.mxu0
        %v1431 = vpop.f32.mrf.mxu0
        %v1432 = vadd.f32 %v1336, %v1431
        %v1433 = vpop.f32.mrf.mxu0
        %1434 = vmatprep.mubr.bf16.mxu0 0
        %1435 = vmatmul.mubr.bf16.gmra.mxu0 %v1310
        %v1436 = vpop.f32.mrf.mxu0
        %v1437 = vadd.f32 %v1336, %v1436
        %v1438 = vpop.f32.mrf.mxu0
        %v1439 = vpop.f32.mrf.mxu0
        %v1440 = vadd.f32 %v1336, %v1439
        %v1441 = vpop.f32.mrf.mxu0
        %1442 = vmatprep.mubr.bf16.mxu0 0
        %1443 = vmatmul.mubr.bf16.gmra.mxu0 %v1311
        %v1444 = vpop.f32.mrf.mxu0
        %v1445 = vadd.f32 %v1336, %v1444
        %v1446 = vpop.f32.mrf.mxu0
        %v1447 = vpop.f32.mrf.mxu0
        %v1448 = vadd.f32 %v1336, %v1447
        %v1449 = vpop.f32.mrf.mxu0
        %1450 = vmatprep.mubr.bf16.mxu0 0
        %1451 = vmatmul.mubr.bf16.gmra.mxu0 %v1312
        %v1452 = vpop.f32.mrf.mxu0
        %v1453 = vadd.f32 %v1336, %v1452
        %v1454 = vpop.f32.mrf.mxu0
        %v1455 = vpop.f32.mrf.mxu0
        %v1456 = vadd.f32 %v1336, %v1455
        %v1457 = vpop.f32.mrf.mxu0
        %1458 = vmatprep.mubr.bf16.mxu0 0
        %1459 = vmatmul.mubr.bf16.gmra.mxu0 %v1313
        %v1460 = vpop.f32.mrf.mxu0
        %v1461 = vadd.f32 %v1336, %v1460
        %v1462 = vpop.f32.mrf.mxu0
        %v1463 = vpop.f32.mrf.mxu0
        %v1464 = vadd.f32 %v1336, %v1463
        %v1465 = vpop.f32.mrf.mxu0
        %1466 = vmatprep.mubr.bf16.mxu0 0
        %1467 = vmatmul.mubr.bf16.gmra.mxu0 %v1314
        %v1468 = vpop.f32.mrf.mxu0
        %v1469 = vadd.f32 %v1336, %v1468
        %v1470 = vpop.f32.mrf.mxu0
        %v1471 = vpop.f32.mrf.mxu0
        %v1472 = vadd.f32 %v1336, %v1471
        %v1473 = vpop.f32.mrf.mxu0
        %1474 = vdwg.mxu0
        %1475 = vst [vmem:[%s407] sm:$0xff] %v1421
        %1476 = vst [vmem:[%s407 + $0x8] sm:$0xff] %v1424
        %1477 = vst [vmem:[%s407 + $0x10] sm:$0xff] %v1429
        %1478 = vst [vmem:[%s407 + $0x18] sm:$0xff] %v1432
        %1479 = vst [vmem:[%s407 + $0x20] sm:$0xff] %v1437
        %1480 = vst [vmem:[%s407 + $0x28] sm:$0xff] %v1440
        %1481 = vst [vmem:[%s407 + $0x30] sm:$0xff] %v1445
        %1482 = vst [vmem:[%s407 + $0x38] sm:$0xff] %v1448
        %1483 = vst [vmem:[%s407 + $0x40] sm:$0xff] %v1453
        %1484 = vst [vmem:[%s407 + $0x48] sm:$0xff] %v1456
        %1485 = vst [vmem:[%s407 + $0x50] sm:$0xff] %v1461
        %1486 = vst [vmem:[%s407 + $0x58] sm:$0xff] %v1464
        %1487 = vst [vmem:[%s407 + $0x60] sm:$0xff] %v1469
        %1488 = vst [vmem:[%s407 + $0x68] sm:$0xff] %v1472
        %s1489 = sand.u32 %s270, 1
        %s1490 = scalar_lea.sflag [#allocation4], %s1489
        %s1491 = sand.u32 %s270, 1
        %s1492 = smul.addr %s1491, 112
        %s1493 = scalar_lea.vmem [#allocation5], %s1492
        // Predicated region
        $region69: #{tpu_custom_call.1} parent=63 // pred_check
          %p1494 = pneg %p280
        $region70: #{tpu_custom_call.1} parent=63 // pred_check_branch
          %1496 = sbr.rel (%p1494) target = $region72
        $region71: #{tpu_custom_call.1} parent=63 // pred_region
          %s1497 = smul.u32 14, %s26
          %s1498 = ssub.s32 25, %s1497
          %p1499 = scmp.lt.s32.totalorder %s1498, 14
          %s1500 = scalar_select %p1499, %s1498, 14
          %s1501 = smul.u32 128, %s1500
          %s1503 = ssub.s32 1792, %s1501
          %1504 = vsyncadd %s1490, %s1503
          %p1505 = scmp.ne.s32.totalorder 0, %s1501
          %s1506 = smul.addr %s1497, 128
          %s1507 = scalar_lea.hbm %s11, %s1506
          %s1508 = smul.u32 8, %s1500
          %s1509 = sshll.u32 %s1493, 4
          %s1510 = int_to_ptr.vmem [resolvable:$true] %s1509
          %s1511 = sshll.u32 %s1508, 4
          %1515 = dma.vmem_to_hbm [thread:$0]  (%p1505), %s1510, %s1511, %s1507, %s1490, 128, 128, 8
        $region72: #{tpu_custom_call.1} parent=63 // pred_fallthru
          _
      $region64: #{tpu_custom_call.1} parent=5 // pred_fallthru
        _
      %p1516 = scmp.le.s32.totalorder 2, %s21
      // Predicated region
      $region73: #{tpu_custom_call.1} parent=5 // pred_check
        %p1517 = pneg %p1516
      $region74: #{tpu_custom_call.1} parent=5 // pred_check_branch
        %1519 = sbr.rel (%p1517) target = $region76
      $region75: #{tpu_custom_call.1} parent=5 // pred_region
        %s1520 = ssub.s32 %s21, 2
        // Predicated region
        $region77: #{tpu_custom_call.1} parent=75 // pred_check
          %p1521 = pneg %p286
        $region78: #{tpu_custom_call.1} parent=75 // pred_check_branch
          %1523 = sbr.rel (%p1521) target = $region80
        $region79: #{tpu_custom_call.1} parent=75 // pred_region
          %s1524 = sand.u32 %s271, 1
          %s1525 = scalar_lea.sflag [#allocation4], %s1524
          %s1526 = sand.u32 %s271, 1
          %s1527 = smul.addr %s1526, 112
          %s1528 = scalar_lea.vmem [#allocation5], %s1527
          %1529 = dma.done %s1525, 1792
        $region80: #{tpu_custom_call.1} parent=75 // pred_fallthru
          _
      $region76: #{tpu_custom_call.1} parent=5 // pred_fallthru
        _
    $region6: #{tpu_custom_call.1} parent=1 // loop_footer
      %s25 = sadd.s32 1, %s21
    $region7: #{tpu_custom_call.1} parent=1 // loop_footer_branch
      %20 = sbr.rel target = $region3
    $region8: #{tpu_custom_call.1} parent=1 // loop_exit
      _
    %1530 = vsyncpa [#allocation3], 1
    %s1531 = scalar_lea.sflag [#allocation3], 1
    %1532 = vsyncpa %s1531, 1
    %1533 = vsyncpa [#allocation4], 1
    %s1534 = scalar_lea.sflag [#allocation4], 1
    %1535 = vsyncpa %s1534, 1

// kernel: tpu_custom_call.1
$region0: #{tpu_custom_call.1}
  #allocation0 [shape = 'u32[]', space=smem, size = 0x4, offset = 0x4, fixed_abs, tag = 'smem constant byte address 0x4 - core index']
  #allocation1 [shape = 'u32[144,128]{1,0:T(1,128)}', space=vmem, size = 0x12000, scoped, tag = 'internal scratch']
  %s0 = inlined_call_operand.vmem [shape: f32[200,32], index: 0, kind: input, shape index: {}]
  %s1 = inlined_call_operand.hbm [shape: bf16[32,128], index: 1, kind: input, shape index: {}]
  %s2 = inlined_call_operand.vmem [shape: f32[1,128], index: 2, kind: input, shape index: {}]
  %s3 = inlined_call_operand.vmem [shape: bf16[128,128], index: 3, kind: input, shape index: {}]
  %s4 = inlined_call_operand.vmem [shape: f32[1,128], index: 4, kind: input, shape index: {}]
  %s5 = inlined_call_operand.vmem [shape: bf16[128,128], index: 5, kind: input, shape index: {}]
  %s6 = inlined_call_operand.vmem [shape: f32[1,128], index: 6, kind: input, shape index: {}]
  %s7 = inlined_call_operand.vmem [shape: bf16[128,128], index: 7, kind: input, shape index: {}]
  %s8 = inlined_call_operand.vmem [shape: f32[1,128], index: 8, kind: input, shape index: {}]
  %s9 = inlined_call_operand.vmem [shape: bf16[128,128], index: 9, kind: input, shape index: {}]
  %s10 = inlined_call_operand.vmem [shape: f32[1,128], index: 10, kind: input, shape index: {}]
  %s11 = inlined_call_operand.hbm [shape: f32[200,128], index: 11, kind: output, shape index: {}]
  %s12 = sld [smem:[#allocation0]]
  $region81: #{tpu_custom_call.1} parent=0
    _
  %s14 = ssub.s32 1, %s12
  %s15 = scalar_select 0, %s14, %s12
  $region1: #{tpu_custom_call.1} parent=0
    #allocation2 [shape = 'u8[8192]{0}', space=vmem, size = 0x2000, scoped, tag = 'input window, operand 1, single buffered']
    #allocation3 [shape = 's32[2]{0}', space=sflag, size = 0x8, scoped, tag = 'scoped memory for tpu_custom_call.1']
    #allocation4 [shape = 's32[2]{0}', space=sflag, size = 0x8, scoped, tag = 'scoped memory for tpu_custom_call.1']
    #allocation5 [shape = 'u8[114688]{0}', space=vmem, size = 0x1c000, scoped, tag = 'output window, operand 0']
    %16 = vsyncpa [#allocation3], 0
    %17 = vsyncpa [#allocation4], 0
    %s18 = scalar_lea.sflag [#allocation4], 1
    %19 = vsyncpa %s18, 0
    loop: start=0, step=1, limit=4
    $region2: #{tpu_custom_call.1} parent=1 // loop_pre_header
      _
    $region3: #{tpu_custom_call.1} parent=1 // loop_header
      %s21 = sphi 0, %s25
      %p22 = scmp.ge.s32.totalorder %s21, 4
      %s31 = sphi 0, %s33
      %s34 = sphi 0, %s31
      %s35 = sphi 0, %s34
      %s51 = sphi 0, %s35
      %s55 = sphi 0, %s55
      %s57 = sphi 0, %s55
      %s58 = sphi 0, %s57
      %s72 = sphi 0, %s58
      %s76 = sphi 0, %s76
      %s78 = sphi 0, %s76
      %s79 = sphi 0, %s78
      %s93 = sphi 0, %s79
      %s97 = sphi 0, %s97
      %s99 = sphi 0, %s97
      %s100 = sphi 0, %s99
      %s114 = sphi 0, %s100
      %s118 = sphi 0, %s118
      %s120 = sphi 0, %s118
      %s121 = sphi 0, %s120
      %s135 = sphi 0, %s121
      %s139 = sphi 0, %s139
      %s141 = sphi 0, %s139
      %s142 = sphi 0, %s141
      %s156 = sphi 0, %s142
      %s160 = sphi 0, %s160
      %s162 = sphi 0, %s160
      %s163 = sphi 0, %s162
      %s177 = sphi 0, %s163
      %s181 = sphi 0, %s181
      %s183 = sphi 0, %s181
      %s184 = sphi 0, %s183
      %s198 = sphi 0, %s184
      %s202 = sphi 0, %s202
      %s204 = sphi 0, %s202
      %s205 = sphi 0, %s204
      %s219 = sphi 0, %s205
      %s223 = sphi 0, %s223
      %s225 = sphi 0, %s223
      %s226 = sphi 0, %s225
      %s240 = sphi 0, %s226
      %s244 = sphi 0, %s244
      %s246 = sphi 0, %s244
      %s247 = sphi 0, %s246
      %s261 = sphi 0, %s247
      %s267 = sphi 0, %s269
      %s270 = sphi 0, %s267
      %s271 = sphi 0, %s270
      %s287 = sphi 0, %s271
    $region4: #{tpu_custom_call.1} parent=1 // loop_header_branch
      %24 = sbr.rel (%p22) target = $region8
    $region5: #{tpu_custom_call.1} parent=1 // loop_body
      %s26 = ssub.s32 %s21, 1
      %s27 = ssub.s32 %s21, 2
      %s28 = sadd.s32 %s21, 1
      %s29 = ssub.s32 %s21, %s28
      %p30 = scmp.eq.s32.totalorder %s29, 0
      %s32 = sadd.s32 %s31, 1
      %s33 = scalar_select %p30, %s31, %s32
      %p36 = pneg %p30
      %p37 = scmp.eq.s32.totalorder %s21, 1
      %p38 = por %p36, %p37
      %p39 = scmp.ne.s32.totalorder %s31, %s34
      %p40 = scmp.eq.s32.totalorder %s21, 0
      %p41 = por %p39, %p40
      %p42 = scmp.ne.s32.totalorder %s31, %s34
      %p43 = scmp.eq.s32.totalorder %s26, 1
      %p44 = por %p42, %p43
      %p45 = scmp.ne.s32.totalorder %s34, %s35
      %p46 = scmp.eq.s32.totalorder %s26, 0
      %p47 = por %p45, %p46
      %p48 = scmp.ne.s32.totalorder %s34, %s35
      %p49 = scmp.eq.s32.totalorder %s27, 1
      %p50 = por %p48, %p49
      %p52 = scmp.ne.s32.totalorder %s35, %s51
      %p53 = scmp.eq.s32.totalorder %s27, 0
      %p54 = por %p52, %p53
      %s56 = sadd.s32 %s55, 1
      %p59 = scmp.eq.s32.totalorder %s21, 1
      %p60 = scmp.ne.s32.totalorder %s55, %s57
      %p61 = scmp.eq.s32.totalorder %s21, 0
      %p62 = por %p60, %p61
      %p63 = scmp.ne.s32.totalorder %s55, %s57
      %p64 = scmp.eq.s32.totalorder %s26, 1
      %p65 = por %p63, %p64
      %p66 = scmp.ne.s32.totalorder %s57, %s58
      %p67 = scmp.eq.s32.totalorder %s26, 0
      %p68 = por %p66, %p67
      %p69 = scmp.ne.s32.totalorder %s57, %s58
      %p70 = scmp.eq.s32.totalorder %s27, 1
      %p71 = por %p69, %p70
      %p73 = scmp.ne.s32.totalorder %s58, %s72
      %p74 = scmp.eq.s32.totalorder %s27, 0
      %p75 = por %p73, %p74
      %s77 = sadd.s32 %s76, 1
      %p80 = scmp.eq.s32.totalorder %s21, 1
      %p81 = scmp.ne.s32.totalorder %s76, %s78
      %p82 = scmp.eq.s32.totalorder %s21, 0
      %p83 = por %p81, %p82
      %p84 = scmp.ne.s32.totalorder %s76, %s78
      %p85 = scmp.eq.s32.totalorder %s26, 1
      %p86 = por %p84, %p85
      %p87 = scmp.ne.s32.totalorder %s78, %s79
      %p88 = scmp.eq.s32.totalorder %s26, 0
      %p89 = por %p87, %p88
      %p90 = scmp.ne.s32.totalorder %s78, %s79
      %p91 = scmp.eq.s32.totalorder %s27, 1
      %p92 = por %p90, %p91
      %p94 = scmp.ne.s32.totalorder %s79, %s93
      %p95 = scmp.eq.s32.totalorder %s27, 0
      %p96 = por %p94, %p95
      %s98 = sadd.s32 %s97, 1
      %p101 = scmp.eq.s32.totalorder %s21, 1
      %p102 = scmp.ne.s32.totalorder %s97, %s99
      %p103 = scmp.eq.s32.totalorder %s21, 0
      %p104 = por %p102, %p103
      %p105 = scmp.ne.s32.totalorder %s97, %s99
      %p106 = scmp.eq.s32.totalorder %s26, 1
      %p107 = por %p105, %p106
      %p108 = scmp.ne.s32.totalorder %s99, %s100
      %p109 = scmp.eq.s32.totalorder %s26, 0
      %p110 = por %p108, %p109
      %p111 = scmp.ne.s32.totalorder %s99, %s100
      %p112 = scmp.eq.s32.totalorder %s27, 1
      %p113 = por %p111, %p112
      %p115 = scmp.ne.s32.totalorder %s100, %s114
      %p116 = scmp.eq.s32.totalorder %s27, 0
      %p117 = por %p115, %p116
      %s119 = sadd.s32 %s118, 1
      %p122 = scmp.eq.s32.totalorder %s21, 1
      %p123 = scmp.ne.s32.totalorder %s118, %s120
      %p124 = scmp.eq.s32.totalorder %s21, 0
      %p125 = por %p123, %p124
      %p126 = scmp.ne.s32.totalorder %s118, %s120
      %p127 = scmp.eq.s32.totalorder %s26, 1
      %p128 = por %p126, %p127
      %p129 = scmp.ne.s32.totalorder %s120, %s121
      %p130 = scmp.eq.s32.totalorder %s26, 0
      %p131 = por %p129, %p130
      %p132 = scmp.ne.s32.totalorder %s120, %s121
      %p133 = scmp.eq.s32.totalorder %s27, 1
      %p134 = por %p132, %p133
      %p136 = scmp.ne.s32.totalorder %s121, %s135
      %p137 = scmp.eq.s32.totalorder %s27, 0
      %p138 = por %p136, %p137
      %s140 = sadd.s32 %s139, 1
      %p143 = scmp.eq.s32.totalorder %s21, 1
      %p144 = scmp.ne.s32.totalorder %s139, %s141
      %p145 = scmp.eq.s32.totalorder %s21, 0
      %p146 = por %p144, %p145
      %p147 = scmp.ne.s32.totalorder %s139, %s141
      %p148 = scmp.eq.s32.totalorder %s26, 1
      %p149 = por %p147, %p148
      %p150 = scmp.ne.s32.totalorder %s141, %s142
      %p151 = scmp.eq.s32.totalorder %s26, 0
      %p152 = por %p150, %p151
      %p153 = scmp.ne.s32.totalorder %s141, %s142
      %p154 = scmp.eq.s32.totalorder %s27, 1
      %p155 = por %p153, %p154
      %p157 = scmp.ne.s32.totalorder %s142, %s156
      %p158 = scmp.eq.s32.totalorder %s27, 0
      %p159 = por %p157, %p158
      %s161 = sadd.s32 %s160, 1
      %p164 = scmp.eq.s32.totalorder %s21, 1
      %p165 = scmp.ne.s32.totalorder %s160, %s162
      %p166 = scmp.eq.s32.totalorder %s21, 0
      %p167 = por %p165, %p166
      %p168 = scmp.ne.s32.totalorder %s160, %s162
      %p169 = scmp.eq.s32.totalorder %s26, 1
      %p170 = por %p168, %p169
      %p171 = scmp.ne.s32.totalorder %s162, %s163
      %p172 = scmp.eq.s32.totalorder %s26, 0
      %p173 = por %p171, %p172
      %p174 = scmp.ne.s32.totalorder %s162, %s163
      %p175 = scmp.eq.s32.totalorder %s27, 1
      %p176 = por %p174, %p175
      %p178 = scmp.ne.s32.totalorder %s163, %s177
      %p179 = scmp.eq.s32.totalorder %s27, 0
      %p180 = por %p178, %p179
      %s182 = sadd.s32 %s181, 1
      %p185 = scmp.eq.s32.totalorder %s21, 1
      %p186 = scmp.ne.s32.totalorder %s181, %s183
      %p187 = scmp.eq.s32.totalorder %s21, 0
      %p188 = por %p186, %p187
      %p189 = scmp.ne.s32.totalorder %s181, %s183
      %p190 = scmp.eq.s32.totalorder %s26, 1
      %p191 = por %p189, %p190
      %p192 = scmp.ne.s32.totalorder %s183, %s184
      %p193 = scmp.eq.s32.totalorder %s26, 0
      %p194 = por %p192, %p193
      %p195 = scmp.ne.s32.totalorder %s183, %s184
      %p196 = scmp.eq.s32.totalorder %s27, 1
      %p197 = por %p195, %p196
      %p199 = scmp.ne.s32.totalorder %s184, %s198
      %p200 = scmp.eq.s32.totalorder %s27, 0
      %p201 = por %p199, %p200
      %s203 = sadd.s32 %s202, 1
      %p206 = scmp.eq.s32.totalorder %s21, 1
      %p207 = scmp.ne.s32.totalorder %s202, %s204
      %p208 = scmp.eq.s32.totalorder %s21, 0
      %p209 = por %p207, %p208
      %p210 = scmp.ne.s32.totalorder %s202, %s204
      %p211 = scmp.eq.s32.totalorder %s26, 1
      %p212 = por %p210, %p211
      %p213 = scmp.ne.s32.totalorder %s204, %s205
      %p214 = scmp.eq.s32.totalorder %s26, 0
      %p215 = por %p213, %p214
      %p216 = scmp.ne.s32.totalorder %s204, %s205
      %p217 = scmp.eq.s32.totalorder %s27, 1
      %p218 = por %p216, %p217
      %p220 = scmp.ne.s32.totalorder %s205, %s219
      %p221 = scmp.eq.s32.totalorder %s27, 0
      %p222 = por %p220, %p221
      %s224 = sadd.s32 %s223, 1
      %p227 = scmp.eq.s32.totalorder %s21, 1
      %p228 = scmp.ne.s32.totalorder %s223, %s225
      %p229 = scmp.eq.s32.totalorder %s21, 0
      %p230 = por %p228, %p229
      %p231 = scmp.ne.s32.totalorder %s223, %s225
      %p232 = scmp.eq.s32.totalorder %s26, 1
      %p233 = por %p231, %p232
      %p234 = scmp.ne.s32.totalorder %s225, %s226
      %p235 = scmp.eq.s32.totalorder %s26, 0
      %p236 = por %p234, %p235
      %p237 = scmp.ne.s32.totalorder %s225, %s226
      %p238 = scmp.eq.s32.totalorder %s27, 1
      %p239 = por %p237, %p238
      %p241 = scmp.ne.s32.totalorder %s226, %s240
      %p242 = scmp.eq.s32.totalorder %s27, 0
      %p243 = por %p241, %p242
      %s245 = sadd.s32 %s244, 1
      %p248 = scmp.eq.s32.totalorder %s21, 1
      %p249 = scmp.ne.s32.totalorder %s244, %s246
      %p250 = scmp.eq.s32.totalorder %s21, 0
      %p251 = por %p249, %p250
      %p252 = scmp.ne.s32.totalorder %s244, %s246
      %p253 = scmp.eq.s32.totalorder %s26, 1
      %p254 = por %p252, %p253
      %p255 = scmp.ne.s32.totalorder %s246, %s247
      %p256 = scmp.eq.s32.totalorder %s26, 0
      %p257 = por %p255, %p256
      %p258 = scmp.ne.s32.totalorder %s246, %s247
      %p259 = scmp.eq.s32.totalorder %s27, 1
      %p260 = por %p258, %p259
      %p262 = scmp.ne.s32.totalorder %s247, %s261
      %p263 = scmp.eq.s32.totalorder %s27, 0
      %p264 = por %p262, %p263
      %s265 = ssub.s32 %s21, %s28
      %p266 = scmp.eq.s32.totalorder %s265, 0
      %s268 = sadd.s32 %s267, 1
      %s269 = scalar_select %p266, %s267, %s268
      %p272 = pneg %p266
      %p273 = scmp.eq.s32.totalorder %s21, 1
      %p274 = por %p272, %p273
      %p275 = scmp.ne.s32.totalorder %s267, %s270
      %p276 = scmp.eq.s32.totalorder %s21, 0
      %p277 = por %p275, %p276
      %p278 = scmp.ne.s32.totalorder %s267, %s270
      %p279 = scmp.eq.s32.totalorder %s26, 1
      %p280 = por %p278, %p279
      %p281 = scmp.ne.s32.totalorder %s270, %s271
      %p282 = scmp.eq.s32.totalorder %s26, 0
      %p283 = por %p281, %p282
      %p284 = scmp.ne.s32.totalorder %s270, %s271
      %p285 = scmp.eq.s32.totalorder %s27, 1
      %p286 = por %p284, %p285
      %p288 = scmp.ne.s32.totalorder %s271, %s287
      %p289 = scmp.eq.s32.totalorder %s27, 0
      %p290 = por %p288, %p289
      %p291 = scmp.le.s32.totalorder 1, %s21
      %p292 = scmp.lt.s32.totalorder %s21, 3
      %p293 = pnand %p291, %p292
      %p294 = pneg %p293
      // Predicated region
      $region9: #{tpu_custom_call.1} parent=5 // pred_check
        _
      $region10: #{tpu_custom_call.1} parent=5 // pred_check_branch
        %296 = sbr.rel (%p293) target = $region12
      $region11: #{tpu_custom_call.1} parent=5 // pred_region
        %s297 = ssub.s32 %s21, 1
        // Predicated region
        $region13: #{tpu_custom_call.1} parent=11 // pred_check
          %p298 = pneg %p68
        $region14: #{tpu_custom_call.1} parent=11 // pred_check_branch
          %300 = sbr.rel (%p298) target = $region16
        $region15: #{tpu_custom_call.1} parent=11 // pred_region
          %s302 = ssub.s32 256, 256
          %303 = vsyncadd [#allocation3], %s302
          %s304 = sshll.u32 [#allocation2], 4
          %s305 = int_to_ptr.vmem [resolvable:$true] %s304
          %310 = dma.hbm_to_vmem [thread:$0]  %s1, 256, %s305, [#allocation3], 64, 64, 4
        $region16: #{tpu_custom_call.1} parent=11 // pred_fallthru
          _
        // Predicated region
        $region17: #{tpu_custom_call.1} parent=11 // pred_check
          %p311 = pneg %p89
        $region18: #{tpu_custom_call.1} parent=11 // pred_check_branch
          %313 = sbr.rel (%p311) target = $region20
        $region19: #{tpu_custom_call.1} parent=11 // pred_region
          _
        $region20: #{tpu_custom_call.1} parent=11 // pred_fallthru
          _
        // Predicated region
        $region21: #{tpu_custom_call.1} parent=11 // pred_check
          %p314 = pneg %p110
        $region22: #{tpu_custom_call.1} parent=11 // pred_check_branch
          %316 = sbr.rel (%p314) target = $region24
        $region23: #{tpu_custom_call.1} parent=11 // pred_region
          _
        $region24: #{tpu_custom_call.1} parent=11 // pred_fallthru
          _
        // Predicated region
        $region25: #{tpu_custom_call.1} parent=11 // pred_check
          %p317 = pneg %p131
        $region26: #{tpu_custom_call.1} parent=11 // pred_check_branch
          %319 = sbr.rel (%p317) target = $region28
        $region27: #{tpu_custom_call.1} parent=11 // pred_region
          _
        $region28: #{tpu_custom_call.1} parent=11 // pred_fallthru
          _
        // Predicated region
        $region29: #{tpu_custom_call.1} parent=11 // pred_check
          %p320 = pneg %p152
        $region30: #{tpu_custom_call.1} parent=11 // pred_check_branch
          %322 = sbr.rel (%p320) target = $region32
        $region31: #{tpu_custom_call.1} parent=11 // pred_region
          _
        $region32: #{tpu_custom_call.1} parent=11 // pred_fallthru
          _
        // Predicated region
        $region33: #{tpu_custom_call.1} parent=11 // pred_check
          %p323 = pneg %p173
        $region34: #{tpu_custom_call.1} parent=11 // pred_check_branch
          %325 = sbr.rel (%p323) target = $region36
        $region35: #{tpu_custom_call.1} parent=11 // pred_region
          _
        $region36: #{tpu_custom_call.1} parent=11 // pred_fallthru
          _
        // Predicated region
        $region37: #{tpu_custom_call.1} parent=11 // pred_check
          %p326 = pneg %p194
        $region38: #{tpu_custom_call.1} parent=11 // pred_check_branch
          %328 = sbr.rel (%p326) target = $region40
        $region39: #{tpu_custom_call.1} parent=11 // pred_region
          _
        $region40: #{tpu_custom_call.1} parent=11 // pred_fallthru
          _
        // Predicated region
        $region41: #{tpu_custom_call.1} parent=11 // pred_check
          %p329 = pneg %p215
        $region42: #{tpu_custom_call.1} parent=11 // pred_check_branch
          %331 = sbr.rel (%p329) target = $region44
        $region43: #{tpu_custom_call.1} parent=11 // pred_region
          _
        $region44: #{tpu_custom_call.1} parent=11 // pred_fallthru
          _
        // Predicated region
        $region45: #{tpu_custom_call.1} parent=11 // pred_check
          %p332 = pneg %p236
        $region46: #{tpu_custom_call.1} parent=11 // pred_check_branch
          %334 = sbr.rel (%p332) target = $region48
        $region47: #{tpu_custom_call.1} parent=11 // pred_region
          _
        $region48: #{tpu_custom_call.1} parent=11 // pred_fallthru
          _
        // Predicated region
        $region49: #{tpu_custom_call.1} parent=11 // pred_check
          %p335 = pneg %p257
        $region50: #{tpu_custom_call.1} parent=11 // pred_check_branch
          %337 = sbr.rel (%p335) target = $region52
        $region51: #{tpu_custom_call.1} parent=11 // pred_region
          _
        $region52: #{tpu_custom_call.1} parent=11 // pred_fallthru
          _
      $region12: #{tpu_custom_call.1} parent=5 // pred_fallthru
        _
      %p338 = scmp.lt.s32.totalorder %s21, 2
      // Predicated region
      $region53: #{tpu_custom_call.1} parent=5 // pred_check
        %p339 = pneg %p338
      $region54: #{tpu_custom_call.1} parent=5 // pred_check_branch
        %341 = sbr.rel (%p339) target = $region56
      $region55: #{tpu_custom_call.1} parent=5 // pred_region
        // Predicated region
        $region57: #{tpu_custom_call.1} parent=55 // pred_check
          %p342 = pneg %p41
        $region58: #{tpu_custom_call.1} parent=55 // pred_check_branch
          %344 = sbr.rel (%p342) target = $region60
        $region59: #{tpu_custom_call.1} parent=55 // pred_region
          %s345 = smul.u32 14, %s21
          %s346 = ssub.s32 25, %s345
          %p347 = scmp.lt.s32.totalorder %s346, 14
          %s348 = scalar_select %p347, %s346, 14
          %s349 = smul.u32 128, %s348
          %p350 = scmp.lt.s32.totalorder %s345, 24
          %s351 = scalar_select %p350, %s345, 24
          %s352 = smul.addr %s351, 8
          %s353 = scalar_lea.vmem %s0, %s352
          %s354 = smul.u32 14, %s21
          %s355 = ssub.s32 25, %s354
          %p356 = scmp.lt.s32.totalorder %s355, 14
          %s357 = scalar_select %p356, %s355, 14
          %s358 = smul.u32 128, %s357
        $region60: #{tpu_custom_call.1} parent=55 // pred_fallthru
          _
      $region56: #{tpu_custom_call.1} parent=5 // pred_fallthru
        _
      %p359 = scmp.le.s32.totalorder 1, %s21
      %p360 = scmp.lt.s32.totalorder %s21, 3
      %p361 = pnand %p359, %p360
      %p362 = pneg %p361
      // Predicated region
      $region61: #{tpu_custom_call.1} parent=5 // pred_check
        _
      $region62: #{tpu_custom_call.1} parent=5 // pred_check_branch
        %364 = sbr.rel (%p361) target = $region64
      $region63: #{tpu_custom_call.1} parent=5 // pred_region
        %s365 = ssub.s32 %s21, 1
        // Predicated region
        $region65: #{tpu_custom_call.1} parent=63 // pred_check
          %p366 = pneg %p68
        $region66: #{tpu_custom_call.1} parent=63 // pred_check_branch
          %368 = sbr.rel (%p366) target = $region68
        $region67: #{tpu_custom_call.1} parent=63 // pred_region
          %369 = dma.done [#allocation3], 256
        $region68: #{tpu_custom_call.1} parent=63 // pred_fallthru
          _
        %s370 = smul.u32 14, %s26
        %s371 = ssub.s32 25, %s370
        %p372 = scmp.lt.s32.totalorder %s371, 14
        %s373 = scalar_select %p372, %s371, 14
        %s374 = smul.u32 128, %s373
        %p375 = scmp.lt.s32.totalorder %s370, 24
        %s376 = scalar_select %p375, %s370, 24
        %s377 = smul.addr %s376, 8
        %s378 = scalar_lea.vmem %s0, %s377
        %p379 = pneg %p47
        %p380 = pneg %p44
        %p381 = pneg %p68
        %p382 = pneg %p65
        %p383 = pneg %p89
        %p384 = pneg %p86
        %p385 = pneg %p110
        %p386 = pneg %p107
        %p387 = pneg %p131
        %p388 = pneg %p128
        %p389 = pneg %p152
        %p390 = pneg %p149
        %p391 = pneg %p173
        %p392 = pneg %p170
        %p393 = pneg %p194
        %p394 = pneg %p191
        %p395 = pneg %p215
        %p396 = pneg %p212
        %p397 = pneg %p236
        %p398 = pneg %p233
        %p399 = pneg %p257
        %p400 = pneg %p254
        %p401 = pneg %p283
        %p402 = pneg %p280
        %s403 = sand.u32 %s270, 1
        %s404 = scalar_lea.sflag [#allocation4], %s403
        %s405 = sand.u32 %s270, 1
        %s406 = smul.addr %s405, 112
        %s407 = scalar_lea.vmem [#allocation5], %s406
        %s408 = smul.u32 14, %s26
        %s409 = ssub.s32 25, %s408
        %p410 = scmp.lt.s32.totalorder %s409, 14
        %s411 = scalar_select %p410, %s409, 14
        %s412 = smul.u32 128, %s411
        %p413 = scmp.lt.s32.totalorder %s408, 24
        %s414 = scalar_select %p413, %s408, 24
        %s415 = smul.addr %s414, 8
        %s416 = scalar_lea.vmem %s0, %s415
        %s417 = smul.u32 14, %s26
        %s418 = ssub.s32 25, %s417
        %p419 = scmp.lt.s32.totalorder %s418, 14
        %s420 = scalar_select %p419, %s418, 14
        %s421 = smul.u32 128, %s420
        %s422 = smul.u32 14, %s26
        %s423 = ssub.s32 25, %s422
        %p424 = scmp.lt.s32.totalorder %s423, 14
        %s425 = scalar_select %p424, %s423, 14
        %s426 = smul.u32 128, %s425
        %v428 = vld [vmem:[%s416] sm:$0xff]
        %v429 = vld [vmem:[%s416 + $0x8] sm:$0xff]
        %v430 = vld [vmem:[%s416 + $0x10] sm:$0xff]
        %v431 = vld [vmem:[%s416 + $0x18] sm:$0xff]
        %v432 = vld [vmem:[%s416 + $0x20] sm:$0xff]
        %v433 = vld [vmem:[%s416 + $0x28] sm:$0xff]
        %v434 = vld [vmem:[%s416 + $0x30] sm:$0xff]
        %v435 = vld [vmem:[%s416 + $0x38] sm:$0xff]
        %v436 = vld [vmem:[%s416 + $0x40] sm:$0xff]
        %v437 = vld [vmem:[%s416 + $0x48] sm:$0xff]
        %v438 = vld [vmem:[%s416 + $0x50] sm:$0xff]
        %v439 = vld [vmem:[%s416 + $0x58] sm:$0xff]
        %v440 = vld [vmem:[%s416 + $0x60] sm:$0xff]
        %v441 = vld [vmem:[%s416 + $0x68] sm:$0xff]
        %v442 = vpack.c.bf16 %v429, %v428
        %v443 = vpack.c.bf16 %v431, %v430
        %v444 = vpack.c.bf16 %v433, %v432
        %v445 = vpack.c.bf16 %v435, %v434
        %v446 = vpack.c.bf16 %v437, %v436
        %v447 = vpack.c.bf16 %v439, %v438
        %v448 = vpack.c.bf16 %v441, %v440
        %v449 = vld [vmem:[#allocation2] sm:$0xf]
        %v450 = vld [vmem:[#allocation2 + $0x4] sm:$0xf]
        %v451 = vld [vmem:[#allocation2 + $0x8] sm:$0xf]
        %v452 = vld [vmem:[#allocation2 + $0xc] sm:$0xf]
        %v453 = vld [vmem:[%s2] sm:$0x1]
        %v455 = vlaneseq
        %v456 = vshrl.u32 %v455, 7
        %v457 = vsub.s32 0, %v456
        %v458 = vrot.slane %v453, %v457
        %v464 = vunpack.c.l.b16 %v449
        %v465 = vunpack.c.l.b16 %v450
        %v466 = vunpack.c.l.b16 %v451
        %v467 = vunpack.c.l.b16 %v452
        %v468 = vpack.c.b16 %v465, %v464
        %v469 = vpack.c.b16 %v467, %v466
        %vm472 = vcmask 261120
        %v474 = vsel %vm472, %v442, 0
        %v477 = vsel %vm472, %v443, 0
        %v480 = vsel %vm472, %v444, 0
        %v483 = vsel %vm472, %v445, 0
        %v486 = vsel %vm472, %v446, 0
        %v489 = vsel %vm472, %v447, 0
        %v492 = vsel %vm472, %v448, 0
        %494 = vmatprep.subr.bf16.mxu0 0
        %495 = vmatpush1.bf16.msra.mxu0 0
        %496 = vmatprep.subr.bf16.mxu0 0
        %497 = vmatpush1.bf16.msra.mxu0 0
        %498 = vmatprep.subr.bf16.mxu0 0
        %499 = vmatpush1.bf16.msra.mxu0 0
        %500 = vmatprep.subr.bf16.mxu0 0
        %501 = vmatpush1.bf16.msra.mxu0 0
        %502 = vmatprep.subr.bf16.mxu0 0
        %503 = vmatpush1.bf16.msra.mxu0 0
        %504 = vmatprep.subr.bf16.mxu0 0
        %505 = vmatpush1.bf16.msra.mxu0 0
        %506 = vmatprep.subr.bf16.mxu0 0
        %507 = vmatpush1.bf16.msra.mxu0 %v469
        %508 = vmatprep.subr.bf16.mxu0 0
        %509 = vmatpush1.bf16.msra.mxu0 %v468
        %510 = vmatprep.subr.bf16.mxu0 0
        %511 = vmatpush2.bf16.msra.mxu0 0
        %512 = vmatprep.subr.bf16.mxu0 0
        %513 = vmatpush2.bf16.msra.mxu0 0
        %514 = vmatprep.subr.bf16.mxu0 0
        %515 = vmatpush2.bf16.msra.mxu0 0
        %516 = vmatprep.subr.bf16.mxu0 0
        %517 = vmatpush2.bf16.msra.mxu0 0
        %518 = vmatprep.subr.bf16.mxu0 0
        %519 = vmatpush2.bf16.msra.mxu0 0
        %520 = vmatprep.subr.bf16.mxu0 0
        %521 = vmatpush2.bf16.msra.mxu0 0
        %522 = vmatprep.subr.bf16.mxu0 0
        %523 = vmatpush2.bf16.msra.mxu0 0
        %524 = vmatprep.subr.bf16.mxu0 0
        %525 = vmatpush2.bf16.msra.mxu0 0
        %526 = vmatprep.mubr.bf16.mxu0 0
        %527 = vmatmul.mubr.bf16.gmra.mxu0 %v474
        %v528 = vpop.f32.mrf.mxu0
        %v529 = vadd.f32 %v458, %v528
        %v530 = vpop.f32.mrf.mxu0
        %v531 = vpop.f32.mrf.mxu0
        %v532 = vadd.f32 %v458, %v531
        %v533 = vpop.f32.mrf.mxu0
        %534 = vmatprep.mubr.bf16.mxu0 0
        %535 = vmatmul.mubr.bf16.gmra.mxu0 %v477
        %v536 = vpop.f32.mrf.mxu0
        %v537 = vadd.f32 %v458, %v536
        %v538 = vpop.f32.mrf.mxu0
        %v539 = vpop.f32.mrf.mxu0
        %v540 = vadd.f32 %v458, %v539
        %v541 = vpop.f32.mrf.mxu0
        %542 = vmatprep.mubr.bf16.mxu0 0
        %543 = vmatmul.mubr.bf16.gmra.mxu0 %v480
        %v544 = vpop.f32.mrf.mxu0
        %v545 = vadd.f32 %v458, %v544
        %v546 = vpop.f32.mrf.mxu0
        %v547 = vpop.f32.mrf.mxu0
        %v548 = vadd.f32 %v458, %v547
        %v549 = vpop.f32.mrf.mxu0
        %550 = vmatprep.mubr.bf16.mxu0 0
        %551 = vmatmul.mubr.bf16.gmra.mxu0 %v483
        %v552 = vpop.f32.mrf.mxu0
        %v553 = vadd.f32 %v458, %v552
        %v554 = vpop.f32.mrf.mxu0
        %v555 = vpop.f32.mrf.mxu0
        %v556 = vadd.f32 %v458, %v555
        %v557 = vpop.f32.mrf.mxu0
        %558 = vmatprep.mubr.bf16.mxu0 0
        %559 = vmatmul.mubr.bf16.gmra.mxu0 %v486
        %v560 = vpop.f32.mrf.mxu0
        %v561 = vadd.f32 %v458, %v560
        %v562 = vpop.f32.mrf.mxu0
        %v563 = vpop.f32.mrf.mxu0
        %v564 = vadd.f32 %v458, %v563
        %v565 = vpop.f32.mrf.mxu0
        %566 = vmatprep.mubr.bf16.mxu0 0
        %567 = vmatmul.mubr.bf16.gmra.mxu0 %v489
        %v568 = vpop.f32.mrf.mxu0
        %v569 = vadd.f32 %v458, %v568
        %v570 = vpop.f32.mrf.mxu0
        %v571 = vpop.f32.mrf.mxu0
        %v572 = vadd.f32 %v458, %v571
        %v573 = vpop.f32.mrf.mxu0
        %574 = vmatprep.mubr.bf16.mxu0 0
        %575 = vmatmul.mubr.bf16.gmra.mxu0 %v492
        %v576 = vpop.f32.mrf.mxu0
        %v577 = vadd.f32 %v458, %v576
        %v578 = vpop.f32.mrf.mxu0
        %v579 = vpop.f32.mrf.mxu0
        %v580 = vadd.f32 %v458, %v579
        %v581 = vpop.f32.mrf.mxu0
        %582 = vdwg.mxu0
        %v583 = vmul.f32 %v529, 0.5
        %v584 = vmul.f32 %v532, 0.5
        %v585 = vmul.f32 %v537, 0.5
        %v586 = vmul.f32 %v540, 0.5
        %v587 = vmul.f32 %v545, 0.5
        %v588 = vmul.f32 %v548, 0.5
        %v589 = vmul.f32 %v553, 0.5
        %v590 = vmul.f32 %v556, 0.5
        %v591 = vmul.f32 %v561, 0.5
        %v592 = vmul.f32 %v564, 0.5
        %v593 = vmul.f32 %v569, 0.5
        %v594 = vmul.f32 %v572, 0.5
        %v595 = vmul.f32 %v577, 0.5
        %v596 = vmul.f32 %v580, 0.5
        %v597 = vtanh.pop %v583
        %v598 = vtanh.pop %v584
        %v599 = vtanh.pop %v585
        %v600 = vtanh.pop %v586
        %v601 = vtanh.pop %v587
        %v602 = vtanh.pop %v588
        %v603 = vtanh.pop %v589
        %v604 = vtanh.pop %v590
        %v605 = vtanh.pop %v591
        %v606 = vtanh.pop %v592
        %v607 = vtanh.pop %v593
        %v608 = vtanh.pop %v594
        %v609 = vtanh.pop %v595
        %v610 = vtanh.pop %v596
        %v611 = vadd.f32 %v597, 1.0
        %v612 = vadd.f32 %v598, 1.0
        %v613 = vadd.f32 %v599, 1.0
        %v614 = vadd.f32 %v600, 1.0
        %v615 = vadd.f32 %v601, 1.0
        %v616 = vadd.f32 %v602, 1.0
        %v617 = vadd.f32 %v603, 1.0
        %v618 = vadd.f32 %v604, 1.0
        %v619 = vadd.f32 %v605, 1.0
        %v620 = vadd.f32 %v606, 1.0
        %v621 = vadd.f32 %v607, 1.0
        %v622 = vadd.f32 %v608, 1.0
        %v623 = vadd.f32 %v609, 1.0
        %v624 = vadd.f32 %v610, 1.0
        %v625 = vmul.f32 %v583, %v611
        %v626 = vmul.f32 %v584, %v612
        %v627 = vmul.f32 %v585, %v613
        %v628 = vmul.f32 %v586, %v614
        %v629 = vmul.f32 %v587, %v615
        %v630 = vmul.f32 %v588, %v616
        %v631 = vmul.f32 %v589, %v617
        %v632 = vmul.f32 %v590, %v618
        %v633 = vmul.f32 %v591, %v619
        %v634 = vmul.f32 %v592, %v620
        %v635 = vmul.f32 %v593, %v621
        %v636 = vmul.f32 %v594, %v622
        %v637 = vmul.f32 %v595, %v623
        %v638 = vmul.f32 %v596, %v624
        %v639 = vpack.c.bf16 %v626, %v625
        %v640 = vpack.c.bf16 %v628, %v627
        %v641 = vpack.c.bf16 %v630, %v629
        %v642 = vpack.c.bf16 %v632, %v631
        %v643 = vpack.c.bf16 %v634, %v633
        %v644 = vpack.c.bf16 %v636, %v635
        %v645 = vpack.c.bf16 %v638, %v637
        %v646 = vld [vmem:[%s3] sm:$0xf]
        %v647 = vld [vmem:[%s3 + $0x4] sm:$0xf]
        %v648 = vld [vmem:[%s3 + $0x8] sm:$0xf]
        %v649 = vld [vmem:[%s3 + $0xc] sm:$0xf]
        %v650 = vld [vmem:[%s3 + $0x10] sm:$0xf]
        %v651 = vld [vmem:[%s3 + $0x14] sm:$0xf]
        %v652 = vld [vmem:[%s3 + $0x18] sm:$0xf]
        %v653 = vld [vmem:[%s3 + $0x1c] sm:$0xf]
        %v654 = vld [vmem:[%s3 + $0x20] sm:$0xf]
        %v655 = vld [vmem:[%s3 + $0x24] sm:$0xf]
        %v656 = vld [vmem:[%s3 + $0x28] sm:$0xf]
        %v657 = vld [vmem:[%s3 + $0x2c] sm:$0xf]
        %v658 = vld [vmem:[%s3 + $0x30] sm:$0xf]
        %v659 = vld [vmem:[%s3 + $0x34] sm:$0xf]
        %v660 = vld [vmem:[%s3 + $0x38] sm:$0xf]
        %v661 = vld [vmem:[%s3 + $0x3c] sm:$0xf]
        %v662 = vld [vmem:[%s4] sm:$0x1]
        %v664 = vlaneseq
        %v665 = vshrl.u32 %v664, 7
        %v666 = vsub.s32 0, %v665
        %v667 = vrot.slane %v662, %v666
        %v685 = vunpack.c.l.b16 %v646
        %v686 = vunpack.c.l.b16 %v647
        %v687 = vunpack.c.l.b16 %v648
        %v688 = vunpack.c.l.b16 %v649
        %v689 = vunpack.c.l.b16 %v650
        %v690 = vunpack.c.l.b16 %v651
        %v691 = vunpack.c.l.b16 %v652
        %v692 = vunpack.c.l.b16 %v653
        %v693 = vunpack.c.l.b16 %v654
        %v694 = vunpack.c.l.b16 %v655
        %v695 = vunpack.c.l.b16 %v656
        %v696 = vunpack.c.l.b16 %v657
        %v697 = vunpack.c.l.b16 %v658
        %v698 = vunpack.c.l.b16 %v659
        %v699 = vunpack.c.l.b16 %v660
        %v700 = vunpack.c.l.b16 %v661
        %v701 = vpack.c.b16 %v686, %v685
        %v702 = vpack.c.b16 %v688, %v687
        %v703 = vpack.c.b16 %v690, %v689
        %v704 = vpack.c.b16 %v692, %v691
        %v705 = vpack.c.b16 %v694, %v693
        %v706 = vpack.c.b16 %v696, %v695
        %v707 = vpack.c.b16 %v698, %v697
        %v708 = vpack.c.b16 %v700, %v699
        %717 = vmatprep.subr.bf16.mxu0 0
        %718 = vmatpush1.bf16.msra.mxu0 %v708
        %719 = vmatprep.subr.bf16.mxu0 0
        %720 = vmatpush1.bf16.msra.mxu0 %v707
        %721 = vmatprep.subr.bf16.mxu0 0
        %722 = vmatpush1.bf16.msra.mxu0 %v706
        %723 = vmatprep.subr.bf16.mxu0 0
        %724 = vmatpush1.bf16.msra.mxu0 %v705
        %725 = vmatprep.subr.bf16.mxu0 0
        %726 = vmatpush1.bf16.msra.mxu0 %v704
        %727 = vmatprep.subr.bf16.mxu0 0
        %728 = vmatpush1.bf16.msra.mxu0 %v703
        %729 = vmatprep.subr.bf16.mxu0 0
        %730 = vmatpush1.bf16.msra.mxu0 %v702
        %731 = vmatprep.subr.bf16.mxu0 0
        %732 = vmatpush1.bf16.msra.mxu0 %v701
        %733 = vmatprep.subr.bf16.mxu0 0
        %734 = vmatpush2.bf16.msra.mxu0 0
        %735 = vmatprep.subr.bf16.mxu0 0
        %736 = vmatpush2.bf16.msra.mxu0 0
        %737 = vmatprep.subr.bf16.mxu0 0
        %738 = vmatpush2.bf16.msra.mxu0 0
        %739 = vmatprep.subr.bf16.mxu0 0
        %740 = vmatpush2.bf16.msra.mxu0 0
        %741 = vmatprep.subr.bf16.mxu0 0
        %742 = vmatpush2.bf16.msra.mxu0 0
        %743 = vmatprep.subr.bf16.mxu0 0
        %744 = vmatpush2.bf16.msra.mxu0 0
        %745 = vmatprep.subr.bf16.mxu0 0
        %746 = vmatpush2.bf16.msra.mxu0 0
        %747 = vmatprep.subr.bf16.mxu0 0
        %748 = vmatpush2.bf16.msra.mxu0 0
        %749 = vmatprep.mubr.bf16.mxu0 0
        %750 = vmatmul.mubr.bf16.gmra.mxu0 %v639
        %v751 = vpop.f32.mrf.mxu0
        %v752 = vadd.f32 %v667, %v751
        %v753 = vpop.f32.mrf.mxu0
        %v754 = vpop.f32.mrf.mxu0
        %v755 = vadd.f32 %v667, %v754
        %v756 = vpop.f32.mrf.mxu0
        %757 = vmatprep.mubr.bf16.mxu0 0
        %758 = vmatmul.mubr.bf16.gmra.mxu0 %v640
        %v759 = vpop.f32.mrf.mxu0
        %v760 = vadd.f32 %v667, %v759
        %v761 = vpop.f32.mrf.mxu0
        %v762 = vpop.f32.mrf.mxu0
        %v763 = vadd.f32 %v667, %v762
        %v764 = vpop.f32.mrf.mxu0
        %765 = vmatprep.mubr.bf16.mxu0 0
        %766 = vmatmul.mubr.bf16.gmra.mxu0 %v641
        %v767 = vpop.f32.mrf.mxu0
        %v768 = vadd.f32 %v667, %v767
        %v769 = vpop.f32.mrf.mxu0
        %v770 = vpop.f32.mrf.mxu0
        %v771 = vadd.f32 %v667, %v770
        %v772 = vpop.f32.mrf.mxu0
        %773 = vmatprep.mubr.bf16.mxu0 0
        %774 = vmatmul.mubr.bf16.gmra.mxu0 %v642
        %v775 = vpop.f32.mrf.mxu0
        %v776 = vadd.f32 %v667, %v775
        %v777 = vpop.f32.mrf.mxu0
        %v778 = vpop.f32.mrf.mxu0
        %v779 = vadd.f32 %v667, %v778
        %v780 = vpop.f32.mrf.mxu0
        %781 = vmatprep.mubr.bf16.mxu0 0
        %782 = vmatmul.mubr.bf16.gmra.mxu0 %v643
        %v783 = vpop.f32.mrf.mxu0
        %v784 = vadd.f32 %v667, %v783
        %v785 = vpop.f32.mrf.mxu0
        %v786 = vpop.f32.mrf.mxu0
        %v787 = vadd.f32 %v667, %v786
        %v788 = vpop.f32.mrf.mxu0
        %789 = vmatprep.mubr.bf16.mxu0 0
        %790 = vmatmul.mubr.bf16.gmra.mxu0 %v644
        %v791 = vpop.f32.mrf.mxu0
        %v792 = vadd.f32 %v667, %v791
        %v793 = vpop.f32.mrf.mxu0
        %v794 = vpop.f32.mrf.mxu0
        %v795 = vadd.f32 %v667, %v794
        %v796 = vpop.f32.mrf.mxu0
        %797 = vmatprep.mubr.bf16.mxu0 0
        %798 = vmatmul.mubr.bf16.gmra.mxu0 %v645
        %v799 = vpop.f32.mrf.mxu0
        %v800 = vadd.f32 %v667, %v799
        %v801 = vpop.f32.mrf.mxu0
        %v802 = vpop.f32.mrf.mxu0
        %v803 = vadd.f32 %v667, %v802
        %v804 = vpop.f32.mrf.mxu0
        %805 = vdwg.mxu0
        %v806 = vmul.f32 %v752, 0.5
        %v807 = vmul.f32 %v755, 0.5
        %v808 = vmul.f32 %v760, 0.5
        %v809 = vmul.f32 %v763, 0.5
        %v810 = vmul.f32 %v768, 0.5
        %v811 = vmul.f32 %v771, 0.5
        %v812 = vmul.f32 %v776, 0.5
        %v813 = vmul.f32 %v779, 0.5
        %v814 = vmul.f32 %v784, 0.5
        %v815 = vmul.f32 %v787, 0.5
        %v816 = vmul.f32 %v792, 0.5
        %v817 = vmul.f32 %v795, 0.5
        %v818 = vmul.f32 %v800, 0.5
        %v819 = vmul.f32 %v803, 0.5
        %v820 = vtanh.pop %v806
        %v821 = vtanh.pop %v807
        %v822 = vtanh.pop %v808
        %v823 = vtanh.pop %v809
        %v824 = vtanh.pop %v810
        %v825 = vtanh.pop %v811
        %v826 = vtanh.pop %v812
        %v827 = vtanh.pop %v813
        %v828 = vtanh.pop %v814
        %v829 = vtanh.pop %v815
        %v830 = vtanh.pop %v816
        %v831 = vtanh.pop %v817
        %v832 = vtanh.pop %v818
        %v833 = vtanh.pop %v819
        %v834 = vadd.f32 %v820, 1.0
        %v835 = vadd.f32 %v821, 1.0
        %v836 = vadd.f32 %v822, 1.0
        %v837 = vadd.f32 %v823, 1.0
        %v838 = vadd.f32 %v824, 1.0
        %v839 = vadd.f32 %v825, 1.0
        %v840 = vadd.f32 %v826, 1.0
        %v841 = vadd.f32 %v827, 1.0
        %v842 = vadd.f32 %v828, 1.0
        %v843 = vadd.f32 %v829, 1.0
        %v844 = vadd.f32 %v830, 1.0
        %v845 = vadd.f32 %v831, 1.0
        %v846 = vadd.f32 %v832, 1.0
        %v847 = vadd.f32 %v833, 1.0
        %v848 = vmul.f32 %v806, %v834
        %v849 = vmul.f32 %v807, %v835
        %v850 = vmul.f32 %v808, %v836
        %v851 = vmul.f32 %v809, %v837
        %v852 = vmul.f32 %v810, %v838
        %v853 = vmul.f32 %v811, %v839
        %v854 = vmul.f32 %v812, %v840
        %v855 = vmul.f32 %v813, %v841
        %v856 = vmul.f32 %v814, %v842
        %v857 = vmul.f32 %v815, %v843
        %v858 = vmul.f32 %v816, %v844
        %v859 = vmul.f32 %v817, %v845
        %v860 = vmul.f32 %v818, %v846
        %v861 = vmul.f32 %v819, %v847
        %v862 = vpack.c.bf16 %v849, %v848
        %v863 = vpack.c.bf16 %v851, %v850
        %v864 = vpack.c.bf16 %v853, %v852
        %v865 = vpack.c.bf16 %v855, %v854
        %v866 = vpack.c.bf16 %v857, %v856
        %v867 = vpack.c.bf16 %v859, %v858
        %v868 = vpack.c.bf16 %v861, %v860
        %v869 = vld [vmem:[%s5] sm:$0xf]
        %v870 = vld [vmem:[%s5 + $0x4] sm:$0xf]
        %v871 = vld [vmem:[%s5 + $0x8] sm:$0xf]
        %v872 = vld [vmem:[%s5 + $0xc] sm:$0xf]
        %v873 = vld [vmem:[%s5 + $0x10] sm:$0xf]
        %v874 = vld [vmem:[%s5 + $0x14] sm:$0xf]
        %v875 = vld [vmem:[%s5 + $0x18] sm:$0xf]
        %v876 = vld [vmem:[%s5 + $0x1c] sm:$0xf]
        %v877 = vld [vmem:[%s5 + $0x20] sm:$0xf]
        %v878 = vld [vmem:[%s5 + $0x24] sm:$0xf]
        %v879 = vld [vmem:[%s5 + $0x28] sm:$0xf]
        %v880 = vld [vmem:[%s5 + $0x2c] sm:$0xf]
        %v881 = vld [vmem:[%s5 + $0x30] sm:$0xf]
        %v882 = vld [vmem:[%s5 + $0x34] sm:$0xf]
        %v883 = vld [vmem:[%s5 + $0x38] sm:$0xf]
        %v884 = vld [vmem:[%s5 + $0x3c] sm:$0xf]
        %v885 = vld [vmem:[%s6] sm:$0x1]
        %v887 = vlaneseq
        %v888 = vshrl.u32 %v887, 7
        %v889 = vsub.s32 0, %v888
        %v890 = vrot.slane %v885, %v889
        %v908 = vunpack.c.l.b16 %v869
        %v909 = vunpack.c.l.b16 %v870
        %v910 = vunpack.c.l.b16 %v871
        %v911 = vunpack.c.l.b16 %v872
        %v912 = vunpack.c.l.b16 %v873
        %v913 = vunpack.c.l.b16 %v874
        %v914 = vunpack.c.l.b16 %v875
        %v915 = vunpack.c.l.b16 %v876
        %v916 = vunpack.c.l.b16 %v877
        %v917 = vunpack.c.l.b16 %v878
        %v918 = vunpack.c.l.b16 %v879
        %v919 = vunpack.c.l.b16 %v880
        %v920 = vunpack.c.l.b16 %v881
        %v921 = vunpack.c.l.b16 %v882
        %v922 = vunpack.c.l.b16 %v883
        %v923 = vunpack.c.l.b16 %v884
        %v924 = vpack.c.b16 %v909, %v908
        %v925 = vpack.c.b16 %v911, %v910
        %v926 = vpack.c.b16 %v913, %v912
        %v927 = vpack.c.b16 %v915, %v914
        %v928 = vpack.c.b16 %v917, %v916
        %v929 = vpack.c.b16 %v919, %v918
        %v930 = vpack.c.b16 %v921, %v920
        %v931 = vpack.c.b16 %v923, %v922
        %940 = vmatprep.subr.bf16.mxu0 0
        %941 = vmatpush1.bf16.msra.mxu0 %v931
        %942 = vmatprep.subr.bf16.mxu0 0
        %943 = vmatpush1.bf16.msra.mxu0 %v930
        %944 = vmatprep.subr.bf16.mxu0 0
        %945 = vmatpush1.bf16.msra.mxu0 %v929
        %946 = vmatprep.subr.bf16.mxu0 0
        %947 = vmatpush1.bf16.msra.mxu0 %v928
        %948 = vmatprep.subr.bf16.mxu0 0
        %949 = vmatpush1.bf16.msra.mxu0 %v927
        %950 = vmatprep.subr.bf16.mxu0 0
        %951 = vmatpush1.bf16.msra.mxu0 %v926
        %952 = vmatprep.subr.bf16.mxu0 0
        %953 = vmatpush1.bf16.msra.mxu0 %v925
        %954 = vmatprep.subr.bf16.mxu0 0
        %955 = vmatpush1.bf16.msra.mxu0 %v924
        %956 = vmatprep.subr.bf16.mxu0 0
        %957 = vmatpush2.bf16.msra.mxu0 0
        %958 = vmatprep.subr.bf16.mxu0 0
        %959 = vmatpush2.bf16.msra.mxu0 0
        %960 = vmatprep.subr.bf16.mxu0 0
        %961 = vmatpush2.bf16.msra.mxu0 0
        %962 = vmatprep.subr.bf16.mxu0 0
        %963 = vmatpush2.bf16.msra.mxu0 0
        %964 = vmatprep.subr.bf16.mxu0 0
        %965 = vmatpush2.bf16.msra.mxu0 0
        %966 = vmatprep.subr.bf16.mxu0 0
        %967 = vmatpush2.bf16.msra.mxu0 0
        %968 = vmatprep.subr.bf16.mxu0 0
        %969 = vmatpush2.bf16.msra.mxu0 0
        %970 = vmatprep.subr.bf16.mxu0 0
        %971 = vmatpush2.bf16.msra.mxu0 0
        %972 = vmatprep.mubr.bf16.mxu0 0
        %973 = vmatmul.mubr.bf16.gmra.mxu0 %v862
        %v974 = vpop.f32.mrf.mxu0
        %v975 = vadd.f32 %v890, %v974
        %v976 = vpop.f32.mrf.mxu0
        %v977 = vpop.f32.mrf.mxu0
        %v978 = vadd.f32 %v890, %v977
        %v979 = vpop.f32.mrf.mxu0
        %980 = vmatprep.mubr.bf16.mxu0 0
        %981 = vmatmul.mubr.bf16.gmra.mxu0 %v863
        %v982 = vpop.f32.mrf.mxu0
        %v983 = vadd.f32 %v890, %v982
        %v984 = vpop.f32.mrf.mxu0
        %v985 = vpop.f32.mrf.mxu0
        %v986 = vadd.f32 %v890, %v985
        %v987 = vpop.f32.mrf.mxu0
        %988 = vmatprep.mubr.bf16.mxu0 0
        %989 = vmatmul.mubr.bf16.gmra.mxu0 %v864
        %v990 = vpop.f32.mrf.mxu0
        %v991 = vadd.f32 %v890, %v990
        %v992 = vpop.f32.mrf.mxu0
        %v993 = vpop.f32.mrf.mxu0
        %v994 = vadd.f32 %v890, %v993
        %v995 = vpop.f32.mrf.mxu0
        %996 = vmatprep.mubr.bf16.mxu0 0
        %997 = vmatmul.mubr.bf16.gmra.mxu0 %v865
        %v998 = vpop.f32.mrf.mxu0
        %v999 = vadd.f32 %v890, %v998
        %v1000 = vpop.f32.mrf.mxu0
        %v1001 = vpop.f32.mrf.mxu0
        %v1002 = vadd.f32 %v890, %v1001
        %v1003 = vpop.f32.mrf.mxu0
        %1004 = vmatprep.mubr.bf16.mxu0 0
        %1005 = vmatmul.mubr.bf16.gmra.mxu0 %v866
        %v1006 = vpop.f32.mrf.mxu0
        %v1007 = vadd.f32 %v890, %v1006
        %v1008 = vpop.f32.mrf.mxu0
        %v1009 = vpop.f32.mrf.mxu0
        %v1010 = vadd.f32 %v890, %v1009
        %v1011 = vpop.f32.mrf.mxu0
        %1012 = vmatprep.mubr.bf16.mxu0 0
        %1013 = vmatmul.mubr.bf16.gmra.mxu0 %v867
        %v1014 = vpop.f32.mrf.mxu0
        %v1015 = vadd.f32 %v890, %v1014
        %v1016 = vpop.f32.mrf.mxu0
        %v1017 = vpop.f32.mrf.mxu0
        %v1018 = vadd.f32 %v890, %v1017
        %v1019 = vpop.f32.mrf.mxu0
        %1020 = vmatprep.mubr.bf16.mxu0 0
        %1021 = vmatmul.mubr.bf16.gmra.mxu0 %v868
        %v1022 = vpop.f32.mrf.mxu0
        %v1023 = vadd.f32 %v890, %v1022
        %v1024 = vpop.f32.mrf.mxu0
        %v1025 = vpop.f32.mrf.mxu0
        %v1026 = vadd.f32 %v890, %v1025
        %v1027 = vpop.f32.mrf.mxu0
        %1028 = vdwg.mxu0
        %v1029 = vmul.f32 %v975, 0.5
        %v1030 = vmul.f32 %v978, 0.5
        %v1031 = vmul.f32 %v983, 0.5
        %v1032 = vmul.f32 %v986, 0.5
        %v1033 = vmul.f32 %v991, 0.5
        %v1034 = vmul.f32 %v994, 0.5
        %v1035 = vmul.f32 %v999, 0.5
        %v1036 = vmul.f32 %v1002, 0.5
        %v1037 = vmul.f32 %v1007, 0.5
        %v1038 = vmul.f32 %v1010, 0.5
        %v1039 = vmul.f32 %v1015, 0.5
        %v1040 = vmul.f32 %v1018, 0.5
        %v1041 = vmul.f32 %v1023, 0.5
        %v1042 = vmul.f32 %v1026, 0.5
        %v1043 = vtanh.pop %v1029
        %v1044 = vtanh.pop %v1030
        %v1045 = vtanh.pop %v1031
        %v1046 = vtanh.pop %v1032
        %v1047 = vtanh.pop %v1033
        %v1048 = vtanh.pop %v1034
        %v1049 = vtanh.pop %v1035
        %v1050 = vtanh.pop %v1036
        %v1051 = vtanh.pop %v1037
        %v1052 = vtanh.pop %v1038
        %v1053 = vtanh.pop %v1039
        %v1054 = vtanh.pop %v1040
        %v1055 = vtanh.pop %v1041
        %v1056 = vtanh.pop %v1042
        %v1057 = vadd.f32 %v1043, 1.0
        %v1058 = vadd.f32 %v1044, 1.0
        %v1059 = vadd.f32 %v1045, 1.0
        %v1060 = vadd.f32 %v1046, 1.0
        %v1061 = vadd.f32 %v1047, 1.0
        %v1062 = vadd.f32 %v1048, 1.0
        %v1063 = vadd.f32 %v1049, 1.0
        %v1064 = vadd.f32 %v1050, 1.0
        %v1065 = vadd.f32 %v1051, 1.0
        %v1066 = vadd.f32 %v1052, 1.0
        %v1067 = vadd.f32 %v1053, 1.0
        %v1068 = vadd.f32 %v1054, 1.0
        %v1069 = vadd.f32 %v1055, 1.0
        %v1070 = vadd.f32 %v1056, 1.0
        %v1071 = vmul.f32 %v1029, %v1057
        %v1072 = vmul.f32 %v1030, %v1058
        %v1073 = vmul.f32 %v1031, %v1059
        %v1074 = vmul.f32 %v1032, %v1060
        %v1075 = vmul.f32 %v1033, %v1061
        %v1076 = vmul.f32 %v1034, %v1062
        %v1077 = vmul.f32 %v1035, %v1063
        %v1078 = vmul.f32 %v1036, %v1064
        %v1079 = vmul.f32 %v1037, %v1065
        %v1080 = vmul.f32 %v1038, %v1066
        %v1081 = vmul.f32 %v1039, %v1067
        %v1082 = vmul.f32 %v1040, %v1068
        %v1083 = vmul.f32 %v1041, %v1069
        %v1084 = vmul.f32 %v1042, %v1070
        %v1085 = vpack.c.bf16 %v1072, %v1071
        %v1086 = vpack.c.bf16 %v1074, %v1073
        %v1087 = vpack.c.bf16 %v1076, %v1075
        %v1088 = vpack.c.bf16 %v1078, %v1077
        %v1089 = vpack.c.bf16 %v1080, %v1079
        %v1090 = vpack.c.bf16 %v1082, %v1081
        %v1091 = vpack.c.bf16 %v1084, %v1083
        %v1092 = vld [vmem:[%s7] sm:$0xf]
        %v1093 = vld [vmem:[%s7 + $0x4] sm:$0xf]
        %v1094 = vld [vmem:[%s7 + $0x8] sm:$0xf]
        %v1095 = vld [vmem:[%s7 + $0xc] sm:$0xf]
        %v1096 = vld [vmem:[%s7 + $0x10] sm:$0xf]
        %v1097 = vld [vmem:[%s7 + $0x14] sm:$0xf]
        %v1098 = vld [vmem:[%s7 + $0x18] sm:$0xf]
        %v1099 = vld [vmem:[%s7 + $0x1c] sm:$0xf]
        %v1100 = vld [vmem:[%s7 + $0x20] sm:$0xf]
        %v1101 = vld [vmem:[%s7 + $0x24] sm:$0xf]
        %v1102 = vld [vmem:[%s7 + $0x28] sm:$0xf]
        %v1103 = vld [vmem:[%s7 + $0x2c] sm:$0xf]
        %v1104 = vld [vmem:[%s7 + $0x30] sm:$0xf]
        %v1105 = vld [vmem:[%s7 + $0x34] sm:$0xf]
        %v1106 = vld [vmem:[%s7 + $0x38] sm:$0xf]
        %v1107 = vld [vmem:[%s7 + $0x3c] sm:$0xf]
        %v1108 = vld [vmem:[%s8] sm:$0x1]
        %v1110 = vlaneseq
        %v1111 = vshrl.u32 %v1110, 7
        %v1112 = vsub.s32 0, %v1111
        %v1113 = vrot.slane %v1108, %v1112
        %v1131 = vunpack.c.l.b16 %v1092
        %v1132 = vunpack.c.l.b16 %v1093
        %v1133 = vunpack.c.l.b16 %v1094
        %v1134 = vunpack.c.l.b16 %v1095
        %v1135 = vunpack.c.l.b16 %v1096
        %v1136 = vunpack.c.l.b16 %v1097
        %v1137 = vunpack.c.l.b16 %v1098
        %v1138 = vunpack.c.l.b16 %v1099
        %v1139 = vunpack.c.l.b16 %v1100
        %v1140 = vunpack.c.l.b16 %v1101
        %v1141 = vunpack.c.l.b16 %v1102
        %v1142 = vunpack.c.l.b16 %v1103
        %v1143 = vunpack.c.l.b16 %v1104
        %v1144 = vunpack.c.l.b16 %v1105
        %v1145 = vunpack.c.l.b16 %v1106
        %v1146 = vunpack.c.l.b16 %v1107
        %v1147 = vpack.c.b16 %v1132, %v1131
        %v1148 = vpack.c.b16 %v1134, %v1133
        %v1149 = vpack.c.b16 %v1136, %v1135
        %v1150 = vpack.c.b16 %v1138, %v1137
        %v1151 = vpack.c.b16 %v1140, %v1139
        %v1152 = vpack.c.b16 %v1142, %v1141
        %v1153 = vpack.c.b16 %v1144, %v1143
        %v1154 = vpack.c.b16 %v1146, %v1145
        %1163 = vmatprep.subr.bf16.mxu0 0
        %1164 = vmatpush1.bf16.msra.mxu0 %v1154
        %1165 = vmatprep.subr.bf16.mxu0 0
        %1166 = vmatpush1.bf16.msra.mxu0 %v1153
        %1167 = vmatprep.subr.bf16.mxu0 0
        %1168 = vmatpush1.bf16.msra.mxu0 %v1152
        %1169 = vmatprep.subr.bf16.mxu0 0
        %1170 = vmatpush1.bf16.msra.mxu0 %v1151
        %1171 = vmatprep.subr.bf16.mxu0 0
        %1172 = vmatpush1.bf16.msra.mxu0 %v1150
        %1173 = vmatprep.subr.bf16.mxu0 0
        %1174 = vmatpush1.bf16.msra.mxu0 %v1149
        %1175 = vmatprep.subr.bf16.mxu0 0
        %1176 = vmatpush1.bf16.msra.mxu0 %v1148
        %1177 = vmatprep.subr.bf16.mxu0 0
        %1178 = vmatpush1.bf16.msra.mxu0 %v1147
        %1179 = vmatprep.subr.bf16.mxu0 0
        %1180 = vmatpush2.bf16.msra.mxu0 0
        %1181 = vmatprep.subr.bf16.mxu0 0
        %1182 = vmatpush2.bf16.msra.mxu0 0
        %1183 = vmatprep.subr.bf16.mxu0 0
        %1184 = vmatpush2.bf16.msra.mxu0 0
        %1185 = vmatprep.subr.bf16.mxu0 0
        %1186 = vmatpush2.bf16.msra.mxu0 0
        %1187 = vmatprep.subr.bf16.mxu0 0
        %1188 = vmatpush2.bf16.msra.mxu0 0
        %1189 = vmatprep.subr.bf16.mxu0 0
        %1190 = vmatpush2.bf16.msra.mxu0 0
        %1191 = vmatprep.subr.bf16.mxu0 0
        %1192 = vmatpush2.bf16.msra.mxu0 0
        %1193 = vmatprep.subr.bf16.mxu0 0
        %1194 = vmatpush2.bf16.msra.mxu0 0
        %1195 = vmatprep.mubr.bf16.mxu0 0
        %1196 = vmatmul.mubr.bf16.gmra.mxu0 %v1085
        %v1197 = vpop.f32.mrf.mxu0
        %v1198 = vadd.f32 %v1113, %v1197
        %v1199 = vpop.f32.mrf.mxu0
        %v1200 = vpop.f32.mrf.mxu0
        %v1201 = vadd.f32 %v1113, %v1200
        %v1202 = vpop.f32.mrf.mxu0
        %1203 = vmatprep.mubr.bf16.mxu0 0
        %1204 = vmatmul.mubr.bf16.gmra.mxu0 %v1086
        %v1205 = vpop.f32.mrf.mxu0
        %v1206 = vadd.f32 %v1113, %v1205
        %v1207 = vpop.f32.mrf.mxu0
        %v1208 = vpop.f32.mrf.mxu0
        %v1209 = vadd.f32 %v1113, %v1208
        %v1210 = vpop.f32.mrf.mxu0
        %1211 = vmatprep.mubr.bf16.mxu0 0
        %1212 = vmatmul.mubr.bf16.gmra.mxu0 %v1087
        %v1213 = vpop.f32.mrf.mxu0
        %v1214 = vadd.f32 %v1113, %v1213
        %v1215 = vpop.f32.mrf.mxu0
        %v1216 = vpop.f32.mrf.mxu0
        %v1217 = vadd.f32 %v1113, %v1216
        %v1218 = vpop.f32.mrf.mxu0
        %1219 = vmatprep.mubr.bf16.mxu0 0
        %1220 = vmatmul.mubr.bf16.gmra.mxu0 %v1088
        %v1221 = vpop.f32.mrf.mxu0
        %v1222 = vadd.f32 %v1113, %v1221
        %v1223 = vpop.f32.mrf.mxu0
        %v1224 = vpop.f32.mrf.mxu0
        %v1225 = vadd.f32 %v1113, %v1224
        %v1226 = vpop.f32.mrf.mxu0
        %1227 = vmatprep.mubr.bf16.mxu0 0
        %1228 = vmatmul.mubr.bf16.gmra.mxu0 %v1089
        %v1229 = vpop.f32.mrf.mxu0
        %v1230 = vadd.f32 %v1113, %v1229
        %v1231 = vpop.f32.mrf.mxu0
        %v1232 = vpop.f32.mrf.mxu0
        %v1233 = vadd.f32 %v1113, %v1232
        %v1234 = vpop.f32.mrf.mxu0
        %1235 = vmatprep.mubr.bf16.mxu0 0
        %1236 = vmatmul.mubr.bf16.gmra.mxu0 %v1090
        %v1237 = vpop.f32.mrf.mxu0
        %v1238 = vadd.f32 %v1113, %v1237
        %v1239 = vpop.f32.mrf.mxu0
        %v1240 = vpop.f32.mrf.mxu0
        %v1241 = vadd.f32 %v1113, %v1240
        %v1242 = vpop.f32.mrf.mxu0
        %1243 = vmatprep.mubr.bf16.mxu0 0
        %1244 = vmatmul.mubr.bf16.gmra.mxu0 %v1091
        %v1245 = vpop.f32.mrf.mxu0
        %v1246 = vadd.f32 %v1113, %v1245
        %v1247 = vpop.f32.mrf.mxu0
        %v1248 = vpop.f32.mrf.mxu0
        %v1249 = vadd.f32 %v1113, %v1248
        %v1250 = vpop.f32.mrf.mxu0
        %1251 = vdwg.mxu0
        %v1252 = vmul.f32 %v1198, 0.5
        %v1253 = vmul.f32 %v1201, 0.5
        %v1254 = vmul.f32 %v1206, 0.5
        %v1255 = vmul.f32 %v1209, 0.5
        %v1256 = vmul.f32 %v1214, 0.5
        %v1257 = vmul.f32 %v1217, 0.5
        %v1258 = vmul.f32 %v1222, 0.5
        %v1259 = vmul.f32 %v1225, 0.5
        %v1260 = vmul.f32 %v1230, 0.5
        %v1261 = vmul.f32 %v1233, 0.5
        %v1262 = vmul.f32 %v1238, 0.5
        %v1263 = vmul.f32 %v1241, 0.5
        %v1264 = vmul.f32 %v1246, 0.5
        %v1265 = vmul.f32 %v1249, 0.5
        %v1266 = vtanh.pop %v1252
        %v1267 = vtanh.pop %v1253
        %v1268 = vtanh.pop %v1254
        %v1269 = vtanh.pop %v1255
        %v1270 = vtanh.pop %v1256
        %v1271 = vtanh.pop %v1257
        %v1272 = vtanh.pop %v1258
        %v1273 = vtanh.pop %v1259
        %v1274 = vtanh.pop %v1260
        %v1275 = vtanh.pop %v1261
        %v1276 = vtanh.pop %v1262
        %v1277 = vtanh.pop %v1263
        %v1278 = vtanh.pop %v1264
        %v1279 = vtanh.pop %v1265
        %v1280 = vadd.f32 %v1266, 1.0
        %v1281 = vadd.f32 %v1267, 1.0
        %v1282 = vadd.f32 %v1268, 1.0
        %v1283 = vadd.f32 %v1269, 1.0
        %v1284 = vadd.f32 %v1270, 1.0
        %v1285 = vadd.f32 %v1271, 1.0
        %v1286 = vadd.f32 %v1272, 1.0
        %v1287 = vadd.f32 %v1273, 1.0
        %v1288 = vadd.f32 %v1274, 1.0
        %v1289 = vadd.f32 %v1275, 1.0
        %v1290 = vadd.f32 %v1276, 1.0
        %v1291 = vadd.f32 %v1277, 1.0
        %v1292 = vadd.f32 %v1278, 1.0
        %v1293 = vadd.f32 %v1279, 1.0
        %v1294 = vmul.f32 %v1252, %v1280
        %v1295 = vmul.f32 %v1253, %v1281
        %v1296 = vmul.f32 %v1254, %v1282
        %v1297 = vmul.f32 %v1255, %v1283
        %v1298 = vmul.f32 %v1256, %v1284
        %v1299 = vmul.f32 %v1257, %v1285
        %v1300 = vmul.f32 %v1258, %v1286
        %v1301 = vmul.f32 %v1259, %v1287
        %v1302 = vmul.f32 %v1260, %v1288
        %v1303 = vmul.f32 %v1261, %v1289
        %v1304 = vmul.f32 %v1262, %v1290
        %v1305 = vmul.f32 %v1263, %v1291
        %v1306 = vmul.f32 %v1264, %v1292
        %v1307 = vmul.f32 %v1265, %v1293
        %v1308 = vpack.c.bf16 %v1295, %v1294
        %v1309 = vpack.c.bf16 %v1297, %v1296
        %v1310 = vpack.c.bf16 %v1299, %v1298
        %v1311 = vpack.c.bf16 %v1301, %v1300
        %v1312 = vpack.c.bf16 %v1303, %v1302
        %v1313 = vpack.c.bf16 %v1305, %v1304
        %v1314 = vpack.c.bf16 %v1307, %v1306
        %v1315 = vld [vmem:[%s9] sm:$0xf]
        %v1316 = vld [vmem:[%s9 + $0x4] sm:$0xf]
        %v1317 = vld [vmem:[%s9 + $0x8] sm:$0xf]
        %v1318 = vld [vmem:[%s9 + $0xc] sm:$0xf]
        %v1319 = vld [vmem:[%s9 + $0x10] sm:$0xf]
        %v1320 = vld [vmem:[%s9 + $0x14] sm:$0xf]
        %v1321 = vld [vmem:[%s9 + $0x18] sm:$0xf]
        %v1322 = vld [vmem:[%s9 + $0x1c] sm:$0xf]
        %v1323 = vld [vmem:[%s9 + $0x20] sm:$0xf]
        %v1324 = vld [vmem:[%s9 + $0x24] sm:$0xf]
        %v1325 = vld [vmem:[%s9 + $0x28] sm:$0xf]
        %v1326 = vld [vmem:[%s9 + $0x2c] sm:$0xf]
        %v1327 = vld [vmem:[%s9 + $0x30] sm:$0xf]
        %v1328 = vld [vmem:[%s9 + $0x34] sm:$0xf]
        %v1329 = vld [vmem:[%s9 + $0x38] sm:$0xf]
        %v1330 = vld [vmem:[%s9 + $0x3c] sm:$0xf]
        %v1331 = vld [vmem:[%s10] sm:$0x1]
        %v1333 = vlaneseq
        %v1334 = vshrl.u32 %v1333, 7
        %v1335 = vsub.s32 0, %v1334
        %v1336 = vrot.slane %v1331, %v1335
        %v1354 = vunpack.c.l.b16 %v1315
        %v1355 = vunpack.c.l.b16 %v1316
        %v1356 = vunpack.c.l.b16 %v1317
        %v1357 = vunpack.c.l.b16 %v1318
        %v1358 = vunpack.c.l.b16 %v1319
        %v1359 = vunpack.c.l.b16 %v1320
        %v1360 = vunpack.c.l.b16 %v1321
        %v1361 = vunpack.c.l.b16 %v1322
        %v1362 = vunpack.c.l.b16 %v1323
        %v1363 = vunpack.c.l.b16 %v1324
        %v1364 = vunpack.c.l.b16 %v1325
        %v1365 = vunpack.c.l.b16 %v1326
        %v1366 = vunpack.c.l.b16 %v1327
        %v1367 = vunpack.c.l.b16 %v1328
        %v1368 = vunpack.c.l.b16 %v1329
        %v1369 = vunpack.c.l.b16 %v1330
        %v1370 = vpack.c.b16 %v1355, %v1354
        %v1371 = vpack.c.b16 %v1357, %v1356
        %v1372 = vpack.c.b16 %v1359, %v1358
        %v1373 = vpack.c.b16 %v1361, %v1360
        %v1374 = vpack.c.b16 %v1363, %v1362
        %v1375 = vpack.c.b16 %v1365, %v1364
        %v1376 = vpack.c.b16 %v1367, %v1366
        %v1377 = vpack.c.b16 %v1369, %v1368
        %1386 = vmatprep.subr.bf16.mxu0 0
        %1387 = vmatpush1.bf16.msra.mxu0 %v1377
        %1388 = vmatprep.subr.bf16.mxu0 0
        %1389 = vmatpush1.bf16.msra.mxu0 %v1376
        %1390 = vmatprep.subr.bf16.mxu0 0
        %1391 = vmatpush1.bf16.msra.mxu0 %v1375
        %1392 = vmatprep.subr.bf16.mxu0 0
        %1393 = vmatpush1.bf16.msra.mxu0 %v1374
        %1394 = vmatprep.subr.bf16.mxu0 0
        %1395 = vmatpush1.bf16.msra.mxu0 %v1373
        %1396 = vmatprep.subr.bf16.mxu0 0
        %1397 = vmatpush1.bf16.msra.mxu0 %v1372
        %1398 = vmatprep.subr.bf16.mxu0 0
        %1399 = vmatpush1.bf16.msra.mxu0 %v1371
        %1400 = vmatprep.subr.bf16.mxu0 0
        %1401 = vmatpush1.bf16.msra.mxu0 %v1370
        %1402 = vmatprep.subr.bf16.mxu0 0
        %1403 = vmatpush2.bf16.msra.mxu0 0
        %1404 = vmatprep.subr.bf16.mxu0 0
        %1405 = vmatpush2.bf16.msra.mxu0 0
        %1406 = vmatprep.subr.bf16.mxu0 0
        %1407 = vmatpush2.bf16.msra.mxu0 0
        %1408 = vmatprep.subr.bf16.mxu0 0
        %1409 = vmatpush2.bf16.msra.mxu0 0
        %1410 = vmatprep.subr.bf16.mxu0 0
        %1411 = vmatpush2.bf16.msra.mxu0 0
        %1412 = vmatprep.subr.bf16.mxu0 0
        %1413 = vmatpush2.bf16.msra.mxu0 0
        %1414 = vmatprep.subr.bf16.mxu0 0
        %1415 = vmatpush2.bf16.msra.mxu0 0
        %1416 = vmatprep.subr.bf16.mxu0 0
        %1417 = vmatpush2.bf16.msra.mxu0 0
        %1418 = vmatprep.mubr.bf16.mxu0 0
        %1419 = vmatmul.mubr.bf16.gmra.mxu0 %v1308
        %v1420 = vpop.f32.mrf.mxu0
        %v1421 = vadd.f32 %v1336, %v1420
        %v1422 = vpop.f32.mrf.mxu0
        %v1423 = vpop.f32.mrf.mxu0
        %v1424 = vadd.f32 %v1336, %v1423
        %v1425 = vpop.f32.mrf.mxu0
        %1426 = vmatprep.mubr.bf16.mxu0 0
        %1427 = vmatmul.mubr.bf16.gmra.mxu0 %v1309
        %v1428 = vpop.f32.mrf.mxu0
        %v1429 = vadd.f32 %v1336, %v1428
        %v1430 = vpop.f32.mrf.mxu0
        %v1431 = vpop.f32.mrf.mxu0
        %v1432 = vadd.f32 %v1336, %v1431
        %v1433 = vpop.f32.mrf.mxu0
        %1434 = vmatprep.mubr.bf16.mxu0 0
        %1435 = vmatmul.mubr.bf16.gmra.mxu0 %v1310
        %v1436 = vpop.f32.mrf.mxu0
        %v1437 = vadd.f32 %v1336, %v1436
        %v1438 = vpop.f32.mrf.mxu0
        %v1439 = vpop.f32.mrf.mxu0
        %v1440 = vadd.f32 %v1336, %v1439
        %v1441 = vpop.f32.mrf.mxu0
        %1442 = vmatprep.mubr.bf16.mxu0 0
        %1443 = vmatmul.mubr.bf16.gmra.mxu0 %v1311
        %v1444 = vpop.f32.mrf.mxu0
        %v1445 = vadd.f32 %v1336, %v1444
        %v1446 = vpop.f32.mrf.mxu0
        %v1447 = vpop.f32.mrf.mxu0
        %v1448 = vadd.f32 %v1336, %v1447
        %v1449 = vpop.f32.mrf.mxu0
        %1450 = vmatprep.mubr.bf16.mxu0 0
        %1451 = vmatmul.mubr.bf16.gmra.mxu0 %v1312
        %v1452 = vpop.f32.mrf.mxu0
        %v1453 = vadd.f32 %v1336, %v1452
        %v1454 = vpop.f32.mrf.mxu0
        %v1455 = vpop.f32.mrf.mxu0
        %v1456 = vadd.f32 %v1336, %v1455
        %v1457 = vpop.f32.mrf.mxu0
        %1458 = vmatprep.mubr.bf16.mxu0 0
        %1459 = vmatmul.mubr.bf16.gmra.mxu0 %v1313
        %v1460 = vpop.f32.mrf.mxu0
        %v1461 = vadd.f32 %v1336, %v1460
        %v1462 = vpop.f32.mrf.mxu0
        %v1463 = vpop.f32.mrf.mxu0
        %v1464 = vadd.f32 %v1336, %v1463
        %v1465 = vpop.f32.mrf.mxu0
        %1466 = vmatprep.mubr.bf16.mxu0 0
        %1467 = vmatmul.mubr.bf16.gmra.mxu0 %v1314
        %v1468 = vpop.f32.mrf.mxu0
        %v1469 = vadd.f32 %v1336, %v1468
        %v1470 = vpop.f32.mrf.mxu0
        %v1471 = vpop.f32.mrf.mxu0
        %v1472 = vadd.f32 %v1336, %v1471
        %v1473 = vpop.f32.mrf.mxu0
        %1474 = vdwg.mxu0
        %1475 = vst [vmem:[%s407] sm:$0xff] %v1421
        %1476 = vst [vmem:[%s407 + $0x8] sm:$0xff] %v1424
        %1477 = vst [vmem:[%s407 + $0x10] sm:$0xff] %v1429
        %1478 = vst [vmem:[%s407 + $0x18] sm:$0xff] %v1432
        %1479 = vst [vmem:[%s407 + $0x20] sm:$0xff] %v1437
        %1480 = vst [vmem:[%s407 + $0x28] sm:$0xff] %v1440
        %1481 = vst [vmem:[%s407 + $0x30] sm:$0xff] %v1445
        %1482 = vst [vmem:[%s407 + $0x38] sm:$0xff] %v1448
        %1483 = vst [vmem:[%s407 + $0x40] sm:$0xff] %v1453
        %1484 = vst [vmem:[%s407 + $0x48] sm:$0xff] %v1456
        %1485 = vst [vmem:[%s407 + $0x50] sm:$0xff] %v1461
        %1486 = vst [vmem:[%s407 + $0x58] sm:$0xff] %v1464
        %1487 = vst [vmem:[%s407 + $0x60] sm:$0xff] %v1469
        %1488 = vst [vmem:[%s407 + $0x68] sm:$0xff] %v1472
        %s1489 = sand.u32 %s270, 1
        %s1490 = scalar_lea.sflag [#allocation4], %s1489
        %s1491 = sand.u32 %s270, 1
        %s1492 = smul.addr %s1491, 112
        %s1493 = scalar_lea.vmem [#allocation5], %s1492
        // Predicated region
        $region69: #{tpu_custom_call.1} parent=63 // pred_check
          %p1494 = pneg %p280
        $region70: #{tpu_custom_call.1} parent=63 // pred_check_branch
          %1496 = sbr.rel (%p1494) target = $region72
        $region71: #{tpu_custom_call.1} parent=63 // pred_region
          %s1497 = smul.u32 14, %s26
          %s1498 = ssub.s32 25, %s1497
          %p1499 = scmp.lt.s32.totalorder %s1498, 14
          %s1500 = scalar_select %p1499, %s1498, 14
          %s1501 = smul.u32 128, %s1500
          %s1503 = ssub.s32 1792, %s1501
          %1504 = vsyncadd %s1490, %s1503
          %p1505 = scmp.ne.s32.totalorder 0, %s1501
          %s1506 = smul.addr %s1497, 128
          %s1507 = scalar_lea.hbm %s11, %s1506
          %s1508 = smul.u32 8, %s1500
          %s1509 = sshll.u32 %s1493, 4
          %s1510 = int_to_ptr.vmem [resolvable:$true] %s1509
          %s1511 = sshll.u32 %s1508, 4
          %1515 = dma.vmem_to_hbm [thread:$0]  (%p1505), %s1510, %s1511, %s1507, %s1490, 128, 128, 8
        $region72: #{tpu_custom_call.1} parent=63 // pred_fallthru
          _
      $region64: #{tpu_custom_call.1} parent=5 // pred_fallthru
        _
      %p1516 = scmp.le.s32.totalorder 2, %s21
      // Predicated region
      $region73: #{tpu_custom_call.1} parent=5 // pred_check
        %p1517 = pneg %p1516
      $region74: #{tpu_custom_call.1} parent=5 // pred_check_branch
        %1519 = sbr.rel (%p1517) target = $region76
      $region75: #{tpu_custom_call.1} parent=5 // pred_region
        %s1520 = ssub.s32 %s21, 2
        // Predicated region
        $region77: #{tpu_custom_call.1} parent=75 // pred_check
          %p1521 = pneg %p286
        $region78: #{tpu_custom_call.1} parent=75 // pred_check_branch
          %1523 = sbr.rel (%p1521) target = $region80
        $region79: #{tpu_custom_call.1} parent=75 // pred_region
          %s1524 = sand.u32 %s271, 1
          %s1525 = scalar_lea.sflag [#allocation4], %s1524
          %s1526 = sand.u32 %s271, 1
          %s1527 = smul.addr %s1526, 112
          %s1528 = scalar_lea.vmem [#allocation5], %s1527
          %1529 = dma.done %s1525, 1792
        $region80: #{tpu_custom_call.1} parent=75 // pred_fallthru
          _
      $region76: #{tpu_custom_call.1} parent=5 // pred_fallthru
        _
    $region6: #{tpu_custom_call.1} parent=1 // loop_footer
      %s25 = sadd.s32 1, %s21
    $region7: #{tpu_custom_call.1} parent=1 // loop_footer_branch
      %20 = sbr.rel target = $region3
    $region8: #{tpu_custom_call.1} parent=1 // loop_exit
      _
    %1530 = vsyncpa [#allocation3], 1
    %s1531 = scalar_lea.sflag [#allocation3], 1
    %1532 = vsyncpa %s1531, 1
    %1533 = vsyncpa [#allocation4], 1
    %s1534 = scalar_lea.sflag [#allocation4], 1
    %1535 = vsyncpa %s1534, 1

</llo_original>
